<compile_context>
chip_gen: v7x
topology: tpu7x:2x2x1
jax: 0.10.0
libtpu: 0.0.40
codegen_flags: <defaults>
</compile_context>

<pallas_src>
import functools

import jax
import jax.numpy as jnp
from jax.experimental import pallas as pl
from jax.experimental.pallas import tpu as pltpu


def _bidir_recurrence(xp_ref, w_hh, o_ref, *, B, H, T):
    """Serial bidirectional LSTM recurrence over precomputed input projections.

    xp_ref: (T*B, 8H) VMEM ref; rows [t*B : t*B+B] hold the per-timestep input
            pre-activations x_t @ W_ih + b, fwd gates in [:4H], rev gates in [4H:].
    w_hh  : (H, 8H) value = [W_hh_fwd^T | W_hh_rev^T] (single packed MXU RHS).
    o_ref : (T*B, 2H) VMEM ref; fwd hidden written to [:, :H], rev to [:, H:].
    """
    H4 = 4 * H
    h_stack = jnp.zeros((2 * B, H), jnp.float32)   # rows [:B] = fwd, [B:] = rev
    c_stack = jnp.zeros((2 * B, H), jnp.float32)
    for step in range(T):                          # T small & static -> fully unrolled
        tf = step
        tr = T - 1 - step
        # One packed MXU push per serial step: [h_f; h_r] @ [W_hh_f | W_hh_r].
        mm = jnp.dot(h_stack, w_hh, preferred_element_type=jnp.float32)     # (2B, 8H)
        g_f = mm[:B, 0:H4] + xp_ref[pl.ds(tf * B, B), 0:H4]                 # (B, 4H)
        g_r = mm[B:, H4:2 * H4] + xp_ref[pl.ds(tr * B, B), H4:2 * H4]       # (B, 4H)
        gates = jnp.concatenate([g_f, g_r], axis=0)                         # (2B, 4H)
        sg = jax.nn.sigmoid(gates)     # one EUP pass over the stacked gate vreg
        th = jnp.tanh(gates)
        i = sg[:, 0:H]
        f = sg[:, H:2 * H]
        g = th[:, 2 * H:3 * H]
        o = sg[:, 3 * H:4 * H]
        c_stack = f * c_stack + i * g
        h_stack = o * jnp.tanh(c_stack)
        o_ref[pl.ds(tf * B, B), 0:H] = h_stack[:B].astype(o_ref.dtype)
        o_ref[pl.ds(tr * B, B), H:2 * H] = h_stack[B:].astype(o_ref.dtype)


def _bilstm2_kernel(x_ref,
                    wih1_ref, whh1_ref, b1_ref,
                    wih2_ref, whh2_ref, b2_ref,
                    out_ref, xp_ref, h1_ref, *, hidden, batch, seqlen):
    """Fused 2-layer bidirectional LSTM (single block, everything VMEM-resident).

    x_ref   : (T*B, D_in)   time-major input slab
    wih1_ref: (D_in, 8H)    layer-1 input weights  [fwd | rev]
    whh1_ref: (H, 8H)       layer-1 recurrent weights [fwd | rev]
    b1_ref  : (1, 8H)
    wih2_ref: (2H, 8H)      layer-2 input weights (input = concat(h1_fwd, h1_rev))
    whh2_ref: (H, 8H)
    b2_ref  : (1, 8H)
    out_ref : (T*B, 2H)     layer-2 output, fwd in [:, :H], rev in [:, H:]
    xp_ref  : (T*B, 8H) f32 scratch (input projections; reused across both layers)
    h1_ref  : (T*B, 2H) f32 scratch (layer-1 hiddens)
    """
    H, B, T = hidden, batch, seqlen

    # ---------------- layer 1 ----------------
    # Batched input projection: one MXU push + one bias add for all T steps.
    xp_ref[...] = (jnp.dot(x_ref[...], wih1_ref[...],
                           preferred_element_type=jnp.float32) + b1_ref[...])
    _bidir_recurrence(xp_ref, whh1_ref[...], h1_ref, B=B, H=H, T=T)

    # ---------------- layer 2 ----------------
    # Layer-2 input is concat(h1_fwd, h1_rev) per timestep, already laid out in
    # h1_ref as (T*B, 2H) -> one batched projection matmul.
    xp_ref[...] = (jnp.dot(h1_ref[...], wih2_ref[...],
                           preferred_element_type=jnp.float32) + b2_ref[...])
    _bidir_recurrence(xp_ref, whh2_ref[...], out_ref, B=B, H=H, T=T)


def _cost_estimate(B, T, D, H):
    H8 = 8 * H
    flops = (2 * T * B * D * H8                    # layer-1 input projection
             + 2 * T * B * (2 * H) * H8            # layer-2 input projection
             + 2 * 2 * T * (2 * B) * H * H8)       # 2 layers x T packed recurrent dots
    transcendentals = 2 * T * (2 * (2 * B) * 4 * H + (2 * B) * H)
    bytes_accessed = 4 * (T * B * D                          # x
                          + D * H8 + H * H8 + H8             # layer-1 weights
                          + 2 * H * H8 + H * H8 + H8         # layer-2 weights
                          + T * B * 2 * H)                   # output
    return pl.CostEstimate(flops=flops, transcendentals=transcendentals,
                           bytes_accessed=bytes_accessed)


def long_term_temporal_module(x, params, hidden):
    """x: (B, T, input_size) -> (B, T, 2*hidden). Mirrors nn.LSTM(2 layers, bidir)."""
    B, T, D = x.shape
    x_flat = jnp.transpose(x, (1, 0, 2)).reshape(T * B, D)   # time-major slab (free reshape)
    p1, p2 = params

    kernel = functools.partial(_bilstm2_kernel, hidden=hidden, batch=B, seqlen=T)
    vmem = pl.BlockSpec(memory_space=pltpu.MemorySpace.VMEM)
    out = pl.pallas_call(
        kernel,
        out_shape=jax.ShapeDtypeStruct((T * B, 2 * hidden), jnp.float32),
        in_specs=[vmem] * 7,
        out_specs=vmem,
        scratch_shapes=[pltpu.VMEM((T * B, 8 * hidden), jnp.float32),
                        pltpu.VMEM((T * B, 2 * hidden), jnp.float32)],
        cost_estimate=_cost_estimate(B, T, D, hidden),
    )(x_flat,
      p1['w_ih'], p1['w_hh'], p1['b'],
      p2['w_ih'], p2['w_hh'], p2['b'])

    # Tiny XLA epilogue: reshape (metadata only) + batch-first transpose.
    return jnp.transpose(out.reshape(T, B, 2 * hidden), (1, 0, 2))   # (B, T, 2H)


def init_lstm_params(key, input_size, hidden, num_layers=2):
    """Deterministic init matching PyTorch LSTM shapes: U(-1/sqrt(H), 1/sqrt(H))."""
    stdv = float(1.0 / (hidden ** 0.5))
    params = []
    in_sz = input_size
    for _ in range(num_layers):
        raw = {}
        for direction in ('f', 'r'):
            key, k1, k2, k3, k4 = jax.random.split(key, 5)
            w_ih = jax.random.uniform(k1, (4 * hidden, in_sz), jnp.float32, -stdv, stdv)
            w_hh = jax.random.uniform(k2, (4 * hidden, hidden), jnp.float32, -stdv, stdv)
            b_ih = jax.random.uniform(k3, (4 * hidden,), jnp.float32, -stdv, stdv)
            b_hh = jax.random.uniform(k4, (4 * hidden,), jnp.float32, -stdv, stdv)
            raw[direction] = (w_ih, w_hh, b_ih, b_hh)
        params.append(dict(
            w_ih=jnp.concatenate([raw['f'][0].T, raw['r'][0].T], axis=1),   # (in_sz, 8H)
            w_hh=jnp.concatenate([raw['f'][1].T, raw['r'][1].T], axis=1),   # (H, 8H)
            b=jnp.concatenate([raw['f'][2] + raw['f'][3],
                               raw['r'][2] + raw['r'][3]])[None, :],        # (1, 8H)
        ))
        in_sz = 2 * hidden
    return params


# ----------------------- pure-JAX reference (for verification) -----------------------
def _lstm_dir_ref(x_tbd, w_ih, w_hh, b, hidden, reverse):
    xs = x_tbd[::-1] if reverse else x_tbd
    B = x_tbd.shape[1]

    def step(carry, x_t):
        h, c = carry
        gates = (jnp.dot(x_t, w_ih, precision=jax.lax.Precision.HIGHEST)
                 + jnp.dot(h, w_hh, precision=jax.lax.Precision.HIGHEST) + b)
        i = jax.nn.sigmoid(gates[:, :hidden])
        f = jax.nn.sigmoid(gates[:, hidden:2 * hidden])
        g = jnp.tanh(gates[:, 2 * hidden:3 * hidden])
        o = jax.nn.sigmoid(gates[:, 3 * hidden:])
        c = f * c + i * g
        h = o * jnp.tanh(c)
        return (h, c), h

    init = (jnp.zeros((B, hidden), jnp.float32), jnp.zeros((B, hidden), jnp.float32))
    _, ys = jax.lax.scan(step, init, xs)
    return ys[::-1] if reverse else ys


def long_term_temporal_module_ref(x, params, hidden):
    h = x
    H4 = 4 * hidden
    for p in params:
        x_tbd = jnp.transpose(h, (1, 0, 2))
        out_f = _lstm_dir_ref(x_tbd, p['w_ih'][:, :H4], p['w_hh'][:, :H4],
                              p['b'][:, :H4], hidden, reverse=False)
        out_r = _lstm_dir_ref(x_tbd, p['w_ih'][:, H4:], p['w_hh'][:, H4:],
                              p['b'][:, H4:], hidden, reverse=True)
        h = jnp.transpose(jnp.concatenate([out_f, out_r], axis=-1), (1, 0, 2))
    return h


if __name__ == "__main__":
    B, T, INPUT_SIZE, HIDDEN = 2, 8, 16, 32

    key = jax.random.PRNGKey(0)
    kx, kp = jax.random.split(key)
    x = jax.random.normal(kx, (B, T, INPUT_SIZE), jnp.float32)
    params = init_lstm_params(kp, INPUT_SIZE, HIDDEN)

    out = jax.block_until_ready(long_term_temporal_module(x, params, HIDDEN))
    assert out.shape == (B, T, 2 * HIDDEN), out.shape

    ref = jax.block_until_ready(long_term_temporal_module_ref(x, params, HIDDEN))
    if not jnp.allclose(out, ref, atol=1e-2, rtol=1e-2):
        raise AssertionError("Pallas fused bidirectional LSTM does not match reference")

    print("KERNEL_OK")
</pallas_src>

<mosaic_0001>
module attributes {stable_mosaic.version = 11 : i64} {
  func.func @_bilstm2_kernel(%arg0: memref<16x16xf32, #tpu.memory_space<vmem>>, %arg1: memref<16x256xf32, #tpu.memory_space<vmem>>, %arg2: memref<32x256xf32, #tpu.memory_space<vmem>>, %arg3: memref<1x256xf32, #tpu.memory_space<vmem>>, %arg4: memref<64x256xf32, #tpu.memory_space<vmem>>, %arg5: memref<32x256xf32, #tpu.memory_space<vmem>>, %arg6: memref<1x256xf32, #tpu.memory_space<vmem>>, %arg7: memref<16x64xf32, #tpu.memory_space<vmem>>, %arg8: memref<16x256xf32, #tpu.memory_space<vmem>>, %arg9: memref<16x64xf32, #tpu.memory_space<vmem>>) attributes {dimension_semantics = [], scalar_prefetch = 0 : i64, scratch_operands = 2 : i64, tpu.core_type = #tpu.core_type<tc>} {
    %c0 = arith.constant 0 : index
    %c0_0 = arith.constant 0 : index
    %0 = vector.load %arg0[%c0, %c0_0] : memref<16x16xf32, #tpu.memory_space<vmem>>, vector<16x16xf32>
    %c0_1 = arith.constant 0 : index
    %c0_2 = arith.constant 0 : index
    %1 = vector.load %arg1[%c0_1, %c0_2] : memref<16x256xf32, #tpu.memory_space<vmem>>, vector<16x256xf32>
    %cst = arith.constant dense<0.000000e+00> : vector<16x256xf32>
    %2 = tpu.matmul %0, %1, %cst {dimension_numbers = #tpu.dot_dimension_numbers<[1], [0], [0], [1], [0, 0, 1, 1], [], []>} : vector<16x16xf32>, vector<16x256xf32>, vector<16x256xf32> -> vector<16x256xf32>
    %c0_3 = arith.constant 0 : index
    %c0_4 = arith.constant 0 : index
    %3 = vector.load %arg3[%c0_3, %c0_4] : memref<1x256xf32, #tpu.memory_space<vmem>>, vector<1x256xf32>
    %4 = vector.broadcast %3 : vector<1x256xf32> to vector<16x256xf32>
    %5 = arith.addf %2, %4 : vector<16x256xf32>
    %c0_5 = arith.constant 0 : index
    %c0_6 = arith.constant 0 : index
    %6 = vector.load %arg8[%c0_5, %c0_6] : memref<16x256xf32, #tpu.memory_space<vmem>>, vector<16x256xf32>
    tpu.vector_store %arg8[%c0_5, %c0_6], %5 {strides = array<i32>} : memref<16x256xf32, #tpu.memory_space<vmem>>, vector<16x256xf32>,
    %c0_7 = arith.constant 0 : index
    %c0_8 = arith.constant 0 : index
    %7 = vector.load %arg2[%c0_7, %c0_8] : memref<32x256xf32, #tpu.memory_space<vmem>>, vector<32x256xf32>
    %cst_9 = arith.constant 0.000000e+00 : f32
    %8 = vector.broadcast %cst_9 : f32 to vector<4x32xf32>
    %cst_10 = arith.constant 0.000000e+00 : f32
    %9 = vector.broadcast %cst_10 : f32 to vector<4x32xf32>
    %cst_11 = arith.constant dense<0.000000e+00> : vector<4x256xf32>
    %10 = tpu.matmul %8, %7, %cst_11 {dimension_numbers = #tpu.dot_dimension_numbers<[1], [0], [0], [1], [0, 0, 1, 1], [], []>} : vector<4x32xf32>, vector<32x256xf32>, vector<4x256xf32> -> vector<4x256xf32>
    %11 = vector.extract_strided_slice %10 {offsets = [0, 0], sizes = [2, 128], strides = [1, 1]} : vector<4x256xf32> to vector<2x128xf32>
    %c0_12 = arith.constant 0 : index
    %c0_13 = arith.constant 0 : index
    %12 = vector.load %arg8[%c0_12, %c0_13] : memref<16x256xf32, #tpu.memory_space<vmem>>, vector<2x128xf32>
    %13 = arith.addf %11, %12 : vector<2x128xf32>
    %14 = vector.extract_strided_slice %10 {offsets = [2, 128], sizes = [2, 128], strides = [1, 1]} : vector<4x256xf32> to vector<2x128xf32>
    %c14 = arith.constant 14 : index
    %c128 = arith.constant 128 : index
    %15 = vector.load %arg8[%c14, %c128] : memref<16x256xf32, #tpu.memory_space<vmem>>, vector<2x128xf32>
    %16 = arith.addf %14, %15 : vector<2x128xf32>
    %17 = tpu.concatenate %13, %16 in 0 : vector<2x128xf32>, vector<2x128xf32> -> vector<4x128xf32>
    %18 = arith.negf %17 : vector<4x128xf32>
    %19 = math.exp %18 : vector<4x128xf32>
    %cst_14 = arith.constant 1.000000e+00 : f32
    %20 = vector.broadcast %cst_14 : f32 to vector<4x128xf32>
    %21 = arith.addf %20, %19 : vector<4x128xf32>
    %22 = arith.divf %20, %21 : vector<4x128xf32>
    %23 = math.tanh %17 : vector<4x128xf32>
    %24 = vector.extract_strided_slice %22 {offsets = [0, 0], sizes = [4, 32], strides = [1, 1]} : vector<4x128xf32> to vector<4x32xf32>
    %25 = vector.extract_strided_slice %22 {offsets = [0, 32], sizes = [4, 32], strides = [1, 1]} : vector<4x128xf32> to vector<4x32xf32>
    %26 = vector.extract_strided_slice %23 {offsets = [0, 64], sizes = [4, 32], strides = [1, 1]} : vector<4x128xf32> to vector<4x32xf32>
    %27 = vector.extract_strided_slice %22 {offsets = [0, 96], sizes = [4, 32], strides = [1, 1]} : vector<4x128xf32> to vector<4x32xf32>
    %28 = arith.mulf %25, %9 : vector<4x32xf32>
    %29 = arith.mulf %24, %26 : vector<4x32xf32>
    %30 = arith.addf %28, %29 : vector<4x32xf32>
    %31 = math.tanh %30 : vector<4x32xf32>
    %32 = arith.mulf %27, %31 : vector<4x32xf32>
    %33 = vector.extract_strided_slice %32 {offsets = [0, 0], sizes = [2, 32], strides = [1, 1]} : vector<4x32xf32> to vector<2x32xf32>
    %c0_15 = arith.constant 0 : index
    %c0_16 = arith.constant 0 : index
    %34 = vector.load %arg9[%c0_15, %c0_16] : memref<16x64xf32, #tpu.memory_space<vmem>>, vector<2x32xf32>
    tpu.vector_store %arg9[%c0_15, %c0_16], %33 {strides = array<i32>} : memref<16x64xf32, #tpu.memory_space<vmem>>, vector<2x32xf32>,
    %35 = vector.extract_strided_slice %32 {offsets = [2, 0], sizes = [2, 32], strides = [1, 1]} : vector<4x32xf32> to vector<2x32xf32>
    %c14_17 = arith.constant 14 : index
    %c32 = arith.constant 32 : index
    %36 = vector.load %arg9[%c14_17, %c32] : memref<16x64xf32, #tpu.memory_space<vmem>>, vector<2x32xf32>
    tpu.vector_store %arg9[%c14_17, %c32], %35 {strides = array<i32>} : memref<16x64xf32, #tpu.memory_space<vmem>>, vector<2x32xf32>,
    %cst_18 = arith.constant dense<0.000000e+00> : vector<4x256xf32>
    %37 = tpu.matmul %32, %7, %cst_18 {dimension_numbers = #tpu.dot_dimension_numbers<[1], [0], [0], [1], [0, 0, 1, 1], [], []>} : vector<4x32xf32>, vector<32x256xf32>, vector<4x256xf32> -> vector<4x256xf32>
    %38 = vector.extract_strided_slice %37 {offsets = [0, 0], sizes = [2, 128], strides = [1, 1]} : vector<4x256xf32> to vector<2x128xf32>
    %c2 = arith.constant 2 : index
    %c0_19 = arith.constant 0 : index
    %39 = vector.load %arg8[%c2, %c0_19] : memref<16x256xf32, #tpu.memory_space<vmem>>, vector<2x128xf32>
    %40 = arith.addf %38, %39 : vector<2x128xf32>
    %41 = vector.extract_strided_slice %37 {offsets = [2, 128], sizes = [2, 128], strides = [1, 1]} : vector<4x256xf32> to vector<2x128xf32>
    %c12 = arith.constant 12 : index
    %c128_20 = arith.constant 128 : index
    %42 = vector.load %arg8[%c12, %c128_20] : memref<16x256xf32, #tpu.memory_space<vmem>>, vector<2x128xf32>
    %43 = arith.addf %41, %42 : vector<2x128xf32>
    %44 = tpu.concatenate %40, %43 in 0 : vector<2x128xf32>, vector<2x128xf32> -> vector<4x128xf32>
    %45 = arith.negf %44 : vector<4x128xf32>
    %46 = math.exp %45 : vector<4x128xf32>
    %cst_21 = arith.constant 1.000000e+00 : f32
    %47 = vector.broadcast %cst_21 : f32 to vector<4x128xf32>
    %48 = arith.addf %47, %46 : vector<4x128xf32>
    %49 = arith.divf %47, %48 : vector<4x128xf32>
    %50 = math.tanh %44 : vector<4x128xf32>
    %51 = vector.extract_strided_slice %49 {offsets = [0, 0], sizes = [4, 32], strides = [1, 1]} : vector<4x128xf32> to vector<4x32xf32>
    %52 = vector.extract_strided_slice %49 {offsets = [0, 32], sizes = [4, 32], strides = [1, 1]} : vector<4x128xf32> to vector<4x32xf32>
    %53 = vector.extract_strided_slice %50 {offsets = [0, 64], sizes = [4, 32], strides = [1, 1]} : vector<4x128xf32> to vector<4x32xf32>
    %54 = vector.extract_strided_slice %49 {offsets = [0, 96], sizes = [4, 32], strides = [1, 1]} : vector<4x128xf32> to vector<4x32xf32>
    %55 = arith.mulf %52, %30 : vector<4x32xf32>
    %56 = arith.mulf %51, %53 : vector<4x32xf32>
    %57 = arith.addf %55, %56 : vector<4x32xf32>
    %58 = math.tanh %57 : vector<4x32xf32>
    %59 = arith.mulf %54, %58 : vector<4x32xf32>
    %60 = vector.extract_strided_slice %59 {offsets = [0, 0], sizes = [2, 32], strides = [1, 1]} : vector<4x32xf32> to vector<2x32xf32>
    %c2_22 = arith.constant 2 : index
    %c0_23 = arith.constant 0 : index
    %61 = vector.load %arg9[%c2_22, %c0_23] : memref<16x64xf32, #tpu.memory_space<vmem>>, vector<2x32xf32>
    tpu.vector_store %arg9[%c2_22, %c0_23], %60 {strides = array<i32>} : memref<16x64xf32, #tpu.memory_space<vmem>>, vector<2x32xf32>,
    %62 = vector.extract_strided_slice %59 {offsets = [2, 0], sizes = [2, 32], strides = [1, 1]} : vector<4x32xf32> to vector<2x32xf32>
    %c12_24 = arith.constant 12 : index
    %c32_25 = arith.constant 32 : index
    %63 = vector.load %arg9[%c12_24, %c32_25] : memref<16x64xf32, #tpu.memory_space<vmem>>, vector<2x32xf32>
    tpu.vector_store %arg9[%c12_24, %c32_25], %62 {strides = array<i32>} : memref<16x64xf32, #tpu.memory_space<vmem>>, vector<2x32xf32>,
    %cst_26 = arith.constant dense<0.000000e+00> : vector<4x256xf32>
    %64 = tpu.matmul %59, %7, %cst_26 {dimension_numbers = #tpu.dot_dimension_numbers<[1], [0], [0], [1], [0, 0, 1, 1], [], []>} : vector<4x32xf32>, vector<32x256xf32>, vector<4x256xf32> -> vector<4x256xf32>
    %65 = vector.extract_strided_slice %64 {offsets = [0, 0], sizes = [2, 128], strides = [1, 1]} : vector<4x256xf32> to vector<2x128xf32>
    %c4 = arith.constant 4 : index
    %c0_27 = arith.constant 0 : index
    %66 = vector.load %arg8[%c4, %c0_27] : memref<16x256xf32, #tpu.memory_space<vmem>>, vector<2x128xf32>
    %67 = arith.addf %65, %66 : vector<2x128xf32>
    %68 = vector.extract_strided_slice %64 {offsets = [2, 128], sizes = [2, 128], strides = [1, 1]} : vector<4x256xf32> to vector<2x128xf32>
    %c10 = arith.constant 10 : index
    %c128_28 = arith.constant 128 : index
    %69 = vector.load %arg8[%c10, %c128_28] : memref<16x256xf32, #tpu.memory_space<vmem>>, vector<2x128xf32>
    %70 = arith.addf %68, %69 : vector<2x128xf32>
    %71 = tpu.concatenate %67, %70 in 0 : vector<2x128xf32>, vector<2x128xf32> -> vector<4x128xf32>
    %72 = arith.negf %71 : vector<4x128xf32>
    %73 = math.exp %72 : vector<4x128xf32>
    %cst_29 = arith.constant 1.000000e+00 : f32
    %74 = vector.broadcast %cst_29 : f32 to vector<4x128xf32>
    %75 = arith.addf %74, %73 : vector<4x128xf32>
    %76 = arith.divf %74, %75 : vector<4x128xf32>
    %77 = math.tanh %71 : vector<4x128xf32>
    %78 = vector.extract_strided_slice %76 {offsets = [0, 0], sizes = [4, 32], strides = [1, 1]} : vector<4x128xf32> to vector<4x32xf32>
    %79 = vector.extract_strided_slice %76 {offsets = [0, 32], sizes = [4, 32], strides = [1, 1]} : vector<4x128xf32> to vector<4x32xf32>
    %80 = vector.extract_strided_slice %77 {offsets = [0, 64], sizes = [4, 32], strides = [1, 1]} : vector<4x128xf32> to vector<4x32xf32>
    %81 = vector.extract_strided_slice %76 {offsets = [0, 96], sizes = [4, 32], strides = [1, 1]} : vector<4x128xf32> to vector<4x32xf32>
    %82 = arith.mulf %79, %57 : vector<4x32xf32>
    %83 = arith.mulf %78, %80 : vector<4x32xf32>
    %84 = arith.addf %82, %83 : vector<4x32xf32>
    %85 = math.tanh %84 : vector<4x32xf32>
    %86 = arith.mulf %81, %85 : vector<4x32xf32>
    %87 = vector.extract_strided_slice %86 {offsets = [0, 0], sizes = [2, 32], strides = [1, 1]} : vector<4x32xf32> to vector<2x32xf32>
    %c4_30 = arith.constant 4 : index
    %c0_31 = arith.constant 0 : index
    %88 = vector.load %arg9[%c4_30, %c0_31] : memref<16x64xf32, #tpu.memory_space<vmem>>, vector<2x32xf32>
    tpu.vector_store %arg9[%c4_30, %c0_31], %87 {strides = array<i32>} : memref<16x64xf32, #tpu.memory_space<vmem>>, vector<2x32xf32>,
    %89 = vector.extract_strided_slice %86 {offsets = [2, 0], sizes = [2, 32], strides = [1, 1]} : vector<4x32xf32> to vector<2x32xf32>
    %c10_32 = arith.constant 10 : index
    %c32_33 = arith.constant 32 : index
    %90 = vector.load %arg9[%c10_32, %c32_33] : memref<16x64xf32, #tpu.memory_space<vmem>>, vector<2x32xf32>
    tpu.vector_store %arg9[%c10_32, %c32_33], %89 {strides = array<i32>} : memref<16x64xf32, #tpu.memory_space<vmem>>, vector<2x32xf32>,
    %cst_34 = arith.constant dense<0.000000e+00> : vector<4x256xf32>
    %91 = tpu.matmul %86, %7, %cst_34 {dimension_numbers = #tpu.dot_dimension_numbers<[1], [0], [0], [1], [0, 0, 1, 1], [], []>} : vector<4x32xf32>, vector<32x256xf32>, vector<4x256xf32> -> vector<4x256xf32>
    %92 = vector.extract_strided_slice %91 {offsets = [0, 0], sizes = [2, 128], strides = [1, 1]} : vector<4x256xf32> to vector<2x128xf32>
    %c6 = arith.constant 6 : index
    %c0_35 = arith.constant 0 : index
    %93 = vector.load %arg8[%c6, %c0_35] : memref<16x256xf32, #tpu.memory_space<vmem>>, vector<2x128xf32>
    %94 = arith.addf %92, %93 : vector<2x128xf32>
    %95 = vector.extract_strided_slice %91 {offsets = [2, 128], sizes = [2, 128], strides = [1, 1]} : vector<4x256xf32> to vector<2x128xf32>
    %c8 = arith.constant 8 : index
    %c128_36 = arith.constant 128 : index
    %96 = vector.load %arg8[%c8, %c128_36] : memref<16x256xf32, #tpu.memory_space<vmem>>, vector<2x128xf32>
    %97 = arith.addf %95, %96 : vector<2x128xf32>
    %98 = tpu.concatenate %94, %97 in 0 : vector<2x128xf32>, vector<2x128xf32> -> vector<4x128xf32>
    %99 = arith.negf %98 : vector<4x128xf32>
    %100 = math.exp %99 : vector<4x128xf32>
    %cst_37 = arith.constant 1.000000e+00 : f32
    %101 = vector.broadcast %cst_37 : f32 to vector<4x128xf32>
    %102 = arith.addf %101, %100 : vector<4x128xf32>
    %103 = arith.divf %101, %102 : vector<4x128xf32>
    %104 = math.tanh %98 : vector<4x128xf32>
    %105 = vector.extract_strided_slice %103 {offsets = [0, 0], sizes = [4, 32], strides = [1, 1]} : vector<4x128xf32> to vector<4x32xf32>
    %106 = vector.extract_strided_slice %103 {offsets = [0, 32], sizes = [4, 32], strides = [1, 1]} : vector<4x128xf32> to vector<4x32xf32>
    %107 = vector.extract_strided_slice %104 {offsets = [0, 64], sizes = [4, 32], strides = [1, 1]} : vector<4x128xf32> to vector<4x32xf32>
    %108 = vector.extract_strided_slice %103 {offsets = [0, 96], sizes = [4, 32], strides = [1, 1]} : vector<4x128xf32> to vector<4x32xf32>
    %109 = arith.mulf %106, %84 : vector<4x32xf32>
    %110 = arith.mulf %105, %107 : vector<4x32xf32>
    %111 = arith.addf %109, %110 : vector<4x32xf32>
    %112 = math.tanh %111 : vector<4x32xf32>
    %113 = arith.mulf %108, %112 : vector<4x32xf32>
    %114 = vector.extract_strided_slice %113 {offsets = [0, 0], sizes = [2, 32], strides = [1, 1]} : vector<4x32xf32> to vector<2x32xf32>
    %c6_38 = arith.constant 6 : index
    %c0_39 = arith.constant 0 : index
    %115 = vector.load %arg9[%c6_38, %c0_39] : memref<16x64xf32, #tpu.memory_space<vmem>>, vector<2x32xf32>
    tpu.vector_store %arg9[%c6_38, %c0_39], %114 {strides = array<i32>} : memref<16x64xf32, #tpu.memory_space<vmem>>, vector<2x32xf32>,
    %116 = vector.extract_strided_slice %113 {offsets = [2, 0], sizes = [2, 32], strides = [1, 1]} : vector<4x32xf32> to vector<2x32xf32>
    %c8_40 = arith.constant 8 : index
    %c32_41 = arith.constant 32 : index
    %117 = vector.load %arg9[%c8_40, %c32_41] : memref<16x64xf32, #tpu.memory_space<vmem>>, vector<2x32xf32>
    tpu.vector_store %arg9[%c8_40, %c32_41], %116 {strides = array<i32>} : memref<16x64xf32, #tpu.memory_space<vmem>>, vector<2x32xf32>,
    %cst_42 = arith.constant dense<0.000000e+00> : vector<4x256xf32>
    %118 = tpu.matmul %113, %7, %cst_42 {dimension_numbers = #tpu.dot_dimension_numbers<[1], [0], [0], [1], [0, 0, 1, 1], [], []>} : vector<4x32xf32>, vector<32x256xf32>, vector<4x256xf32> -> vector<4x256xf32>
    %119 = vector.extract_strided_slice %118 {offsets = [0, 0], sizes = [2, 128], strides = [1, 1]} : vector<4x256xf32> to vector<2x128xf32>
    %c8_43 = arith.constant 8 : index
    %c0_44 = arith.constant 0 : index
    %120 = vector.load %arg8[%c8_43, %c0_44] : memref<16x256xf32, #tpu.memory_space<vmem>>, vector<2x128xf32>
    %121 = arith.addf %119, %120 : vector<2x128xf32>
    %122 = vector.extract_strided_slice %118 {offsets = [2, 128], sizes = [2, 128], strides = [1, 1]} : vector<4x256xf32> to vector<2x128xf32>
    %c6_45 = arith.constant 6 : index
    %c128_46 = arith.constant 128 : index
    %123 = vector.load %arg8[%c6_45, %c128_46] : memref<16x256xf32, #tpu.memory_space<vmem>>, vector<2x128xf32>
    %124 = arith.addf %122, %123 : vector<2x128xf32>
    %125 = tpu.concatenate %121, %124 in 0 : vector<2x128xf32>, vector<2x128xf32> -> vector<4x128xf32>
    %126 = arith.negf %125 : vector<4x128xf32>
    %127 = math.exp %126 : vector<4x128xf32>
    %cst_47 = arith.constant 1.000000e+00 : f32
    %128 = vector.broadcast %cst_47 : f32 to vector<4x128xf32>
    %129 = arith.addf %128, %127 : vector<4x128xf32>
    %130 = arith.divf %128, %129 : vector<4x128xf32>
    %131 = math.tanh %125 : vector<4x128xf32>
    %132 = vector.extract_strided_slice %130 {offsets = [0, 0], sizes = [4, 32], strides = [1, 1]} : vector<4x128xf32> to vector<4x32xf32>
    %133 = vector.extract_strided_slice %130 {offsets = [0, 32], sizes = [4, 32], strides = [1, 1]} : vector<4x128xf32> to vector<4x32xf32>
    %134 = vector.extract_strided_slice %131 {offsets = [0, 64], sizes = [4, 32], strides = [1, 1]} : vector<4x128xf32> to vector<4x32xf32>
    %135 = vector.extract_strided_slice %130 {offsets = [0, 96], sizes = [4, 32], strides = [1, 1]} : vector<4x128xf32> to vector<4x32xf32>
    %136 = arith.mulf %133, %111 : vector<4x32xf32>
    %137 = arith.mulf %132, %134 : vector<4x32xf32>
    %138 = arith.addf %136, %137 : vector<4x32xf32>
    %139 = math.tanh %138 : vector<4x32xf32>
    %140 = arith.mulf %135, %139 : vector<4x32xf32>
    %141 = vector.extract_strided_slice %140 {offsets = [0, 0], sizes = [2, 32], strides = [1, 1]} : vector<4x32xf32> to vector<2x32xf32>
    %c8_48 = arith.constant 8 : index
    %c0_49 = arith.constant 0 : index
    %142 = vector.load %arg9[%c8_48, %c0_49] : memref<16x64xf32, #tpu.memory_space<vmem>>, vector<2x32xf32>
    tpu.vector_store %arg9[%c8_48, %c0_49], %141 {strides = array<i32>} : memref<16x64xf32, #tpu.memory_space<vmem>>, vector<2x32xf32>,
    %143 = vector.extract_strided_slice %140 {offsets = [2, 0], sizes = [2, 32], strides = [1, 1]} : vector<4x32xf32> to vector<2x32xf32>
    %c6_50 = arith.constant 6 : index
    %c32_51 = arith.constant 32 : index
    %144 = vector.load %arg9[%c6_50, %c32_51] : memref<16x64xf32, #tpu.memory_space<vmem>>, vector<2x32xf32>
    tpu.vector_store %arg9[%c6_50, %c32_51], %143 {strides = array<i32>} : memref<16x64xf32, #tpu.memory_space<vmem>>, vector<2x32xf32>,
    %cst_52 = arith.constant dense<0.000000e+00> : vector<4x256xf32>
    %145 = tpu.matmul %140, %7, %cst_52 {dimension_numbers = #tpu.dot_dimension_numbers<[1], [0], [0], [1], [0, 0, 1, 1], [], []>} : vector<4x32xf32>, vector<32x256xf32>, vector<4x256xf32> -> vector<4x256xf32>
    %146 = vector.extract_strided_slice %145 {offsets = [0, 0], sizes = [2, 128], strides = [1, 1]} : vector<4x256xf32> to vector<2x128xf32>
    %c10_53 = arith.constant 10 : index
    %c0_54 = arith.constant 0 : index
    %147 = vector.load %arg8[%c10_53, %c0_54] : memref<16x256xf32, #tpu.memory_space<vmem>>, vector<2x128xf32>
    %148 = arith.addf %146, %147 : vector<2x128xf32>
    %149 = vector.extract_strided_slice %145 {offsets = [2, 128], sizes = [2, 128], strides = [1, 1]} : vector<4x256xf32> to vector<2x128xf32>
    %c4_55 = arith.constant 4 : index
    %c128_56 = arith.constant 128 : index
    %150 = vector.load %arg8[%c4_55, %c128_56] : memref<16x256xf32, #tpu.memory_space<vmem>>, vector<2x128xf32>
    %151 = arith.addf %149, %150 : vector<2x128xf32>
    %152 = tpu.concatenate %148, %151 in 0 : vector<2x128xf32>, vector<2x128xf32> -> vector<4x128xf32>
    %153 = arith.negf %152 : vector<4x128xf32>
    %154 = math.exp %153 : vector<4x128xf32>
    %cst_57 = arith.constant 1.000000e+00 : f32
    %155 = vector.broadcast %cst_57 : f32 to vector<4x128xf32>
    %156 = arith.addf %155, %154 : vector<4x128xf32>
    %157 = arith.divf %155, %156 : vector<4x128xf32>
    %158 = math.tanh %152 : vector<4x128xf32>
    %159 = vector.extract_strided_slice %157 {offsets = [0, 0], sizes = [4, 32], strides = [1, 1]} : vector<4x128xf32> to vector<4x32xf32>
    %160 = vector.extract_strided_slice %157 {offsets = [0, 32], sizes = [4, 32], strides = [1, 1]} : vector<4x128xf32> to vector<4x32xf32>
    %161 = vector.extract_strided_slice %158 {offsets = [0, 64], sizes = [4, 32], strides = [1, 1]} : vector<4x128xf32> to vector<4x32xf32>
    %162 = vector.extract_strided_slice %157 {offsets = [0, 96], sizes = [4, 32], strides = [1, 1]} : vector<4x128xf32> to vector<4x32xf32>
    %163 = arith.mulf %160, %138 : vector<4x32xf32>
    %164 = arith.mulf %159, %161 : vector<4x32xf32>
    %165 = arith.addf %163, %164 : vector<4x32xf32>
    %166 = math.tanh %165 : vector<4x32xf32>
    %167 = arith.mulf %162, %166 : vector<4x32xf32>
    %168 = vector.extract_strided_slice %167 {offsets = [0, 0], sizes = [2, 32], strides = [1, 1]} : vector<4x32xf32> to vector<2x32xf32>
    %c10_58 = arith.constant 10 : index
    %c0_59 = arith.constant 0 : index
    %169 = vector.load %arg9[%c10_58, %c0_59] : memref<16x64xf32, #tpu.memory_space<vmem>>, vector<2x32xf32>
    tpu.vector_store %arg9[%c10_58, %c0_59], %168 {strides = array<i32>} : memref<16x64xf32, #tpu.memory_space<vmem>>, vector<2x32xf32>,
    %170 = vector.extract_strided_slice %167 {offsets = [2, 0], sizes = [2, 32], strides = [1, 1]} : vector<4x32xf32> to vector<2x32xf32>
    %c4_60 = arith.constant 4 : index
    %c32_61 = arith.constant 32 : index
    %171 = vector.load %arg9[%c4_60, %c32_61] : memref<16x64xf32, #tpu.memory_space<vmem>>, vector<2x32xf32>
    tpu.vector_store %arg9[%c4_60, %c32_61], %170 {strides = array<i32>} : memref<16x64xf32, #tpu.memory_space<vmem>>, vector<2x32xf32>,
    %cst_62 = arith.constant dense<0.000000e+00> : vector<4x256xf32>
    %172 = tpu.matmul %167, %7, %cst_62 {dimension_numbers = #tpu.dot_dimension_numbers<[1], [0], [0], [1], [0, 0, 1, 1], [], []>} : vector<4x32xf32>, vector<32x256xf32>, vector<4x256xf32> -> vector<4x256xf32>
    %173 = vector.extract_strided_slice %172 {offsets = [0, 0], sizes = [2, 128], strides = [1, 1]} : vector<4x256xf32> to vector<2x128xf32>
    %c12_63 = arith.constant 12 : index
    %c0_64 = arith.constant 0 : index
    %174 = vector.load %arg8[%c12_63, %c0_64] : memref<16x256xf32, #tpu.memory_space<vmem>>, vector<2x128xf32>
    %175 = arith.addf %173, %174 : vector<2x128xf32>
    %176 = vector.extract_strided_slice %172 {offsets = [2, 128], sizes = [2, 128], strides = [1, 1]} : vector<4x256xf32> to vector<2x128xf32>
    %c2_65 = arith.constant 2 : index
    %c128_66 = arith.constant 128 : index
    %177 = vector.load %arg8[%c2_65, %c128_66] : memref<16x256xf32, #tpu.memory_space<vmem>>, vector<2x128xf32>
    %178 = arith.addf %176, %177 : vector<2x128xf32>
    %179 = tpu.concatenate %175, %178 in 0 : vector<2x128xf32>, vector<2x128xf32> -> vector<4x128xf32>
    %180 = arith.negf %179 : vector<4x128xf32>
    %181 = math.exp %180 : vector<4x128xf32>
    %cst_67 = arith.constant 1.000000e+00 : f32
    %182 = vector.broadcast %cst_67 : f32 to vector<4x128xf32>
    %183 = arith.addf %182, %181 : vector<4x128xf32>
    %184 = arith.divf %182, %183 : vector<4x128xf32>
    %185 = math.tanh %179 : vector<4x128xf32>
    %186 = vector.extract_strided_slice %184 {offsets = [0, 0], sizes = [4, 32], strides = [1, 1]} : vector<4x128xf32> to vector<4x32xf32>
    %187 = vector.extract_strided_slice %184 {offsets = [0, 32], sizes = [4, 32], strides = [1, 1]} : vector<4x128xf32> to vector<4x32xf32>
    %188 = vector.extract_strided_slice %185 {offsets = [0, 64], sizes = [4, 32], strides = [1, 1]} : vector<4x128xf32> to vector<4x32xf32>
    %189 = vector.extract_strided_slice %184 {offsets = [0, 96], sizes = [4, 32], strides = [1, 1]} : vector<4x128xf32> to vector<4x32xf32>
    %190 = arith.mulf %187, %165 : vector<4x32xf32>
    %191 = arith.mulf %186, %188 : vector<4x32xf32>
    %192 = arith.addf %190, %191 : vector<4x32xf32>
    %193 = math.tanh %192 : vector<4x32xf32>
    %194 = arith.mulf %189, %193 : vector<4x32xf32>
    %195 = vector.extract_strided_slice %194 {offsets = [0, 0], sizes = [2, 32], strides = [1, 1]} : vector<4x32xf32> to vector<2x32xf32>
    %c12_68 = arith.constant 12 : index
    %c0_69 = arith.constant 0 : index
    %196 = vector.load %arg9[%c12_68, %c0_69] : memref<16x64xf32, #tpu.memory_space<vmem>>, vector<2x32xf32>
    tpu.vector_store %arg9[%c12_68, %c0_69], %195 {strides = array<i32>} : memref<16x64xf32, #tpu.memory_space<vmem>>, vector<2x32xf32>,
    %197 = vector.extract_strided_slice %194 {offsets = [2, 0], sizes = [2, 32], strides = [1, 1]} : vector<4x32xf32> to vector<2x32xf32>
    %c2_70 = arith.constant 2 : index
    %c32_71 = arith.constant 32 : index
    %198 = vector.load %arg9[%c2_70, %c32_71] : memref<16x64xf32, #tpu.memory_space<vmem>>, vector<2x32xf32>
    tpu.vector_store %arg9[%c2_70, %c32_71], %197 {strides = array<i32>} : memref<16x64xf32, #tpu.memory_space<vmem>>, vector<2x32xf32>,
    %cst_72 = arith.constant dense<0.000000e+00> : vector<4x256xf32>
    %199 = tpu.matmul %194, %7, %cst_72 {dimension_numbers = #tpu.dot_dimension_numbers<[1], [0], [0], [1], [0, 0, 1, 1], [], []>} : vector<4x32xf32>, vector<32x256xf32>, vector<4x256xf32> -> vector<4x256xf32>
    %200 = vector.extract_strided_slice %199 {offsets = [0, 0], sizes = [2, 128], strides = [1, 1]} : vector<4x256xf32> to vector<2x128xf32>
    %c14_73 = arith.constant 14 : index
    %c0_74 = arith.constant 0 : index
    %201 = vector.load %arg8[%c14_73, %c0_74] : memref<16x256xf32, #tpu.memory_space<vmem>>, vector<2x128xf32>
    %202 = arith.addf %200, %201 : vector<2x128xf32>
    %203 = vector.extract_strided_slice %199 {offsets = [2, 128], sizes = [2, 128], strides = [1, 1]} : vector<4x256xf32> to vector<2x128xf32>
    %c0_75 = arith.constant 0 : index
    %c128_76 = arith.constant 128 : index
    %204 = vector.load %arg8[%c0_75, %c128_76] : memref<16x256xf32, #tpu.memory_space<vmem>>, vector<2x128xf32>
    %205 = arith.addf %203, %204 : vector<2x128xf32>
    %206 = tpu.concatenate %202, %205 in 0 : vector<2x128xf32>, vector<2x128xf32> -> vector<4x128xf32>
    %207 = arith.negf %206 : vector<4x128xf32>
    %208 = math.exp %207 : vector<4x128xf32>
    %cst_77 = arith.constant 1.000000e+00 : f32
    %209 = vector.broadcast %cst_77 : f32 to vector<4x128xf32>
    %210 = arith.addf %209, %208 : vector<4x128xf32>
    %211 = arith.divf %209, %210 : vector<4x128xf32>
    %212 = math.tanh %206 : vector<4x128xf32>
    %213 = vector.extract_strided_slice %211 {offsets = [0, 0], sizes = [4, 32], strides = [1, 1]} : vector<4x128xf32> to vector<4x32xf32>
    %214 = vector.extract_strided_slice %211 {offsets = [0, 32], sizes = [4, 32], strides = [1, 1]} : vector<4x128xf32> to vector<4x32xf32>
    %215 = vector.extract_strided_slice %212 {offsets = [0, 64], sizes = [4, 32], strides = [1, 1]} : vector<4x128xf32> to vector<4x32xf32>
    %216 = vector.extract_strided_slice %211 {offsets = [0, 96], sizes = [4, 32], strides = [1, 1]} : vector<4x128xf32> to vector<4x32xf32>
    %217 = arith.mulf %214, %192 : vector<4x32xf32>
    %218 = arith.mulf %213, %215 : vector<4x32xf32>
    %219 = arith.addf %217, %218 : vector<4x32xf32>
    %220 = math.tanh %219 : vector<4x32xf32>
    %221 = arith.mulf %216, %220 : vector<4x32xf32>
    %222 = vector.extract_strided_slice %221 {offsets = [0, 0], sizes = [2, 32], strides = [1, 1]} : vector<4x32xf32> to vector<2x32xf32>
    %c14_78 = arith.constant 14 : index
    %c0_79 = arith.constant 0 : index
    %223 = vector.load %arg9[%c14_78, %c0_79] : memref<16x64xf32, #tpu.memory_space<vmem>>, vector<2x32xf32>
    tpu.vector_store %arg9[%c14_78, %c0_79], %222 {strides = array<i32>} : memref<16x64xf32, #tpu.memory_space<vmem>>, vector<2x32xf32>,
    %224 = vector.extract_strided_slice %221 {offsets = [2, 0], sizes = [2, 32], strides = [1, 1]} : vector<4x32xf32> to vector<2x32xf32>
    %c0_80 = arith.constant 0 : index
    %c32_81 = arith.constant 32 : index
    %225 = vector.load %arg9[%c0_80, %c32_81] : memref<16x64xf32, #tpu.memory_space<vmem>>, vector<2x32xf32>
    tpu.vector_store %arg9[%c0_80, %c32_81], %224 {strides = array<i32>} : memref<16x64xf32, #tpu.memory_space<vmem>>, vector<2x32xf32>,
    %c0_82 = arith.constant 0 : index
    %c0_83 = arith.constant 0 : index
    %226 = vector.load %arg9[%c0_82, %c0_83] : memref<16x64xf32, #tpu.memory_space<vmem>>, vector<16x64xf32>
    %c0_84 = arith.constant 0 : index
    %c0_85 = arith.constant 0 : index
    %227 = vector.load %arg4[%c0_84, %c0_85] : memref<64x256xf32, #tpu.memory_space<vmem>>, vector<64x256xf32>
    %cst_86 = arith.constant dense<0.000000e+00> : vector<16x256xf32>
    %228 = tpu.matmul %226, %227, %cst_86 {dimension_numbers = #tpu.dot_dimension_numbers<[1], [0], [0], [1], [0, 0, 1, 1], [], []>} : vector<16x64xf32>, vector<64x256xf32>, vector<16x256xf32> -> vector<16x256xf32>
    %c0_87 = arith.constant 0 : index
    %c0_88 = arith.constant 0 : index
    %229 = vector.load %arg6[%c0_87, %c0_88] : memref<1x256xf32, #tpu.memory_space<vmem>>, vector<1x256xf32>
    %230 = vector.broadcast %229 : vector<1x256xf32> to vector<16x256xf32>
    %231 = arith.addf %228, %230 : vector<16x256xf32>
    %c0_89 = arith.constant 0 : index
    %c0_90 = arith.constant 0 : index
    %232 = vector.load %arg8[%c0_89, %c0_90] : memref<16x256xf32, #tpu.memory_space<vmem>>, vector<16x256xf32>
    tpu.vector_store %arg8[%c0_89, %c0_90], %231 {strides = array<i32>} : memref<16x256xf32, #tpu.memory_space<vmem>>, vector<16x256xf32>,
    %c0_91 = arith.constant 0 : index
    %c0_92 = arith.constant 0 : index
    %233 = vector.load %arg5[%c0_91, %c0_92] : memref<32x256xf32, #tpu.memory_space<vmem>>, vector<32x256xf32>
    %cst_93 = arith.constant 0.000000e+00 : f32
    %234 = vector.broadcast %cst_93 : f32 to vector<4x32xf32>
    %cst_94 = arith.constant 0.000000e+00 : f32
    %235 = vector.broadcast %cst_94 : f32 to vector<4x32xf32>
    %cst_95 = arith.constant dense<0.000000e+00> : vector<4x256xf32>
    %236 = tpu.matmul %234, %233, %cst_95 {dimension_numbers = #tpu.dot_dimension_numbers<[1], [0], [0], [1], [0, 0, 1, 1], [], []>} : vector<4x32xf32>, vector<32x256xf32>, vector<4x256xf32> -> vector<4x256xf32>
    %237 = vector.extract_strided_slice %236 {offsets = [0, 0], sizes = [2, 128], strides = [1, 1]} : vector<4x256xf32> to vector<2x128xf32>
    %c0_96 = arith.constant 0 : index
    %c0_97 = arith.constant 0 : index
    %238 = vector.load %arg8[%c0_96, %c0_97] : memref<16x256xf32, #tpu.memory_space<vmem>>, vector<2x128xf32>
    %239 = arith.addf %237, %238 : vector<2x128xf32>
    %240 = vector.extract_strided_slice %236 {offsets = [2, 128], sizes = [2, 128], strides = [1, 1]} : vector<4x256xf32> to vector<2x128xf32>
    %c14_98 = arith.constant 14 : index
    %c128_99 = arith.constant 128 : index
    %241 = vector.load %arg8[%c14_98, %c128_99] : memref<16x256xf32, #tpu.memory_space<vmem>>, vector<2x128xf32>
    %242 = arith.addf %240, %241 : vector<2x128xf32>
    %243 = tpu.concatenate %239, %242 in 0 : vector<2x128xf32>, vector<2x128xf32> -> vector<4x128xf32>
    %244 = arith.negf %243 : vector<4x128xf32>
    %245 = math.exp %244 : vector<4x128xf32>
    %cst_100 = arith.constant 1.000000e+00 : f32
    %246 = vector.broadcast %cst_100 : f32 to vector<4x128xf32>
    %247 = arith.addf %246, %245 : vector<4x128xf32>
    %248 = arith.divf %246, %247 : vector<4x128xf32>
    %249 = math.tanh %243 : vector<4x128xf32>
    %250 = vector.extract_strided_slice %248 {offsets = [0, 0], sizes = [4, 32], strides = [1, 1]} : vector<4x128xf32> to vector<4x32xf32>
    %251 = vector.extract_strided_slice %248 {offsets = [0, 32], sizes = [4, 32], strides = [1, 1]} : vector<4x128xf32> to vector<4x32xf32>
    %252 = vector.extract_strided_slice %249 {offsets = [0, 64], sizes = [4, 32], strides = [1, 1]} : vector<4x128xf32> to vector<4x32xf32>
    %253 = vector.extract_strided_slice %248 {offsets = [0, 96], sizes = [4, 32], strides = [1, 1]} : vector<4x128xf32> to vector<4x32xf32>
    %254 = arith.mulf %251, %235 : vector<4x32xf32>
    %255 = arith.mulf %250, %252 : vector<4x32xf32>
    %256 = arith.addf %254, %255 : vector<4x32xf32>
    %257 = math.tanh %256 : vector<4x32xf32>
    %258 = arith.mulf %253, %257 : vector<4x32xf32>
    %259 = vector.extract_strided_slice %258 {offsets = [0, 0], sizes = [2, 32], strides = [1, 1]} : vector<4x32xf32> to vector<2x32xf32>
    %c0_101 = arith.constant 0 : index
    %c0_102 = arith.constant 0 : index
    %260 = vector.load %arg7[%c0_101, %c0_102] : memref<16x64xf32, #tpu.memory_space<vmem>>, vector<2x32xf32>
    tpu.vector_store %arg7[%c0_101, %c0_102], %259 {strides = array<i32>} : memref<16x64xf32, #tpu.memory_space<vmem>>, vector<2x32xf32>,
    %261 = vector.extract_strided_slice %258 {offsets = [2, 0], sizes = [2, 32], strides = [1, 1]} : vector<4x32xf32> to vector<2x32xf32>
    %c14_103 = arith.constant 14 : index
    %c32_104 = arith.constant 32 : index
    %262 = vector.load %arg7[%c14_103, %c32_104] : memref<16x64xf32, #tpu.memory_space<vmem>>, vector<2x32xf32>
    tpu.vector_store %arg7[%c14_103, %c32_104], %261 {strides = array<i32>} : memref<16x64xf32, #tpu.memory_space<vmem>>, vector<2x32xf32>,
    %cst_105 = arith.constant dense<0.000000e+00> : vector<4x256xf32>
    %263 = tpu.matmul %258, %233, %cst_105 {dimension_numbers = #tpu.dot_dimension_numbers<[1], [0], [0], [1], [0, 0, 1, 1], [], []>} : vector<4x32xf32>, vector<32x256xf32>, vector<4x256xf32> -> vector<4x256xf32>
    %264 = vector.extract_strided_slice %263 {offsets = [0, 0], sizes = [2, 128], strides = [1, 1]} : vector<4x256xf32> to vector<2x128xf32>
    %c2_106 = arith.constant 2 : index
    %c0_107 = arith.constant 0 : index
    %265 = vector.load %arg8[%c2_106, %c0_107] : memref<16x256xf32, #tpu.memory_space<vmem>>, vector<2x128xf32>
    %266 = arith.addf %264, %265 : vector<2x128xf32>
    %267 = vector.extract_strided_slice %263 {offsets = [2, 128], sizes = [2, 128], strides = [1, 1]} : vector<4x256xf32> to vector<2x128xf32>
    %c12_108 = arith.constant 12 : index
    %c128_109 = arith.constant 128 : index
    %268 = vector.load %arg8[%c12_108, %c128_109] : memref<16x256xf32, #tpu.memory_space<vmem>>, vector<2x128xf32>
    %269 = arith.addf %267, %268 : vector<2x128xf32>
    %270 = tpu.concatenate %266, %269 in 0 : vector<2x128xf32>, vector<2x128xf32> -> vector<4x128xf32>
    %271 = arith.negf %270 : vector<4x128xf32>
    %272 = math.exp %271 : vector<4x128xf32>
    %cst_110 = arith.constant 1.000000e+00 : f32
    %273 = vector.broadcast %cst_110 : f32 to vector<4x128xf32>
    %274 = arith.addf %273, %272 : vector<4x128xf32>
    %275 = arith.divf %273, %274 : vector<4x128xf32>
    %276 = math.tanh %270 : vector<4x128xf32>
    %277 = vector.extract_strided_slice %275 {offsets = [0, 0], sizes = [4, 32], strides = [1, 1]} : vector<4x128xf32> to vector<4x32xf32>
    %278 = vector.extract_strided_slice %275 {offsets = [0, 32], sizes = [4, 32], strides = [1, 1]} : vector<4x128xf32> to vector<4x32xf32>
    %279 = vector.extract_strided_slice %276 {offsets = [0, 64], sizes = [4, 32], strides = [1, 1]} : vector<4x128xf32> to vector<4x32xf32>
    %280 = vector.extract_strided_slice %275 {offsets = [0, 96], sizes = [4, 32], strides = [1, 1]} : vector<4x128xf32> to vector<4x32xf32>
    %281 = arith.mulf %278, %256 : vector<4x32xf32>
    %282 = arith.mulf %277, %279 : vector<4x32xf32>
    %283 = arith.addf %281, %282 : vector<4x32xf32>
    %284 = math.tanh %283 : vector<4x32xf32>
    %285 = arith.mulf %280, %284 : vector<4x32xf32>
    %286 = vector.extract_strided_slice %285 {offsets = [0, 0], sizes = [2, 32], strides = [1, 1]} : vector<4x32xf32> to vector<2x32xf32>
    %c2_111 = arith.constant 2 : index
    %c0_112 = arith.constant 0 : index
    %287 = vector.load %arg7[%c2_111, %c0_112] : memref<16x64xf32, #tpu.memory_space<vmem>>, vector<2x32xf32>
    tpu.vector_store %arg7[%c2_111, %c0_112], %286 {strides = array<i32>} : memref<16x64xf32, #tpu.memory_space<vmem>>, vector<2x32xf32>,
    %288 = vector.extract_strided_slice %285 {offsets = [2, 0], sizes = [2, 32], strides = [1, 1]} : vector<4x32xf32> to vector<2x32xf32>
    %c12_113 = arith.constant 12 : index
    %c32_114 = arith.constant 32 : index
    %289 = vector.load %arg7[%c12_113, %c32_114] : memref<16x64xf32, #tpu.memory_space<vmem>>, vector<2x32xf32>
    tpu.vector_store %arg7[%c12_113, %c32_114], %288 {strides = array<i32>} : memref<16x64xf32, #tpu.memory_space<vmem>>, vector<2x32xf32>,
    %cst_115 = arith.constant dense<0.000000e+00> : vector<4x256xf32>
    %290 = tpu.matmul %285, %233, %cst_115 {dimension_numbers = #tpu.dot_dimension_numbers<[1], [0], [0], [1], [0, 0, 1, 1], [], []>} : vector<4x32xf32>, vector<32x256xf32>, vector<4x256xf32> -> vector<4x256xf32>
    %291 = vector.extract_strided_slice %290 {offsets = [0, 0], sizes = [2, 128], strides = [1, 1]} : vector<4x256xf32> to vector<2x128xf32>
    %c4_116 = arith.constant 4 : index
    %c0_117 = arith.constant 0 : index
    %292 = vector.load %arg8[%c4_116, %c0_117] : memref<16x256xf32, #tpu.memory_space<vmem>>, vector<2x128xf32>
    %293 = arith.addf %291, %292 : vector<2x128xf32>
    %294 = vector.extract_strided_slice %290 {offsets = [2, 128], sizes = [2, 128], strides = [1, 1]} : vector<4x256xf32> to vector<2x128xf32>
    %c10_118 = arith.constant 10 : index
    %c128_119 = arith.constant 128 : index
    %295 = vector.load %arg8[%c10_118, %c128_119] : memref<16x256xf32, #tpu.memory_space<vmem>>, vector<2x128xf32>
    %296 = arith.addf %294, %295 : vector<2x128xf32>
    %297 = tpu.concatenate %293, %296 in 0 : vector<2x128xf32>, vector<2x128xf32> -> vector<4x128xf32>
    %298 = arith.negf %297 : vector<4x128xf32>
    %299 = math.exp %298 : vector<4x128xf32>
    %cst_120 = arith.constant 1.000000e+00 : f32
    %300 = vector.broadcast %cst_120 : f32 to vector<4x128xf32>
    %301 = arith.addf %300, %299 : vector<4x128xf32>
    %302 = arith.divf %300, %301 : vector<4x128xf32>
    %303 = math.tanh %297 : vector<4x128xf32>
    %304 = vector.extract_strided_slice %302 {offsets = [0, 0], sizes = [4, 32], strides = [1, 1]} : vector<4x128xf32> to vector<4x32xf32>
    %305 = vector.extract_strided_slice %302 {offsets = [0, 32], sizes = [4, 32], strides = [1, 1]} : vector<4x128xf32> to vector<4x32xf32>
    %306 = vector.extract_strided_slice %303 {offsets = [0, 64], sizes = [4, 32], strides = [1, 1]} : vector<4x128xf32> to vector<4x32xf32>
    %307 = vector.extract_strided_slice %302 {offsets = [0, 96], sizes = [4, 32], strides = [1, 1]} : vector<4x128xf32> to vector<4x32xf32>
    %308 = arith.mulf %305, %283 : vector<4x32xf32>
    %309 = arith.mulf %304, %306 : vector<4x32xf32>
    %310 = arith.addf %308, %309 : vector<4x32xf32>
    %311 = math.tanh %310 : vector<4x32xf32>
    %312 = arith.mulf %307, %311 : vector<4x32xf32>
    %313 = vector.extract_strided_slice %312 {offsets = [0, 0], sizes = [2, 32], strides = [1, 1]} : vector<4x32xf32> to vector<2x32xf32>
    %c4_121 = arith.constant 4 : index
    %c0_122 = arith.constant 0 : index
    %314 = vector.load %arg7[%c4_121, %c0_122] : memref<16x64xf32, #tpu.memory_space<vmem>>, vector<2x32xf32>
    tpu.vector_store %arg7[%c4_121, %c0_122], %313 {strides = array<i32>} : memref<16x64xf32, #tpu.memory_space<vmem>>, vector<2x32xf32>,
    %315 = vector.extract_strided_slice %312 {offsets = [2, 0], sizes = [2, 32], strides = [1, 1]} : vector<4x32xf32> to vector<2x32xf32>
    %c10_123 = arith.constant 10 : index
    %c32_124 = arith.constant 32 : index
    %316 = vector.load %arg7[%c10_123, %c32_124] : memref<16x64xf32, #tpu.memory_space<vmem>>, vector<2x32xf32>
    tpu.vector_store %arg7[%c10_123, %c32_124], %315 {strides = array<i32>} : memref<16x64xf32, #tpu.memory_space<vmem>>, vector<2x32xf32>,
    %cst_125 = arith.constant dense<0.000000e+00> : vector<4x256xf32>
    %317 = tpu.matmul %312, %233, %cst_125 {dimension_numbers = #tpu.dot_dimension_numbers<[1], [0], [0], [1], [0, 0, 1, 1], [], []>} : vector<4x32xf32>, vector<32x256xf32>, vector<4x256xf32> -> vector<4x256xf32>
    %318 = vector.extract_strided_slice %317 {offsets = [0, 0], sizes = [2, 128], strides = [1, 1]} : vector<4x256xf32> to vector<2x128xf32>
    %c6_126 = arith.constant 6 : index
    %c0_127 = arith.constant 0 : index
    %319 = vector.load %arg8[%c6_126, %c0_127] : memref<16x256xf32, #tpu.memory_space<vmem>>, vector<2x128xf32>
    %320 = arith.addf %318, %319 : vector<2x128xf32>
    %321 = vector.extract_strided_slice %317 {offsets = [2, 128], sizes = [2, 128], strides = [1, 1]} : vector<4x256xf32> to vector<2x128xf32>
    %c8_128 = arith.constant 8 : index
    %c128_129 = arith.constant 128 : index
    %322 = vector.load %arg8[%c8_128, %c128_129] : memref<16x256xf32, #tpu.memory_space<vmem>>, vector<2x128xf32>
    %323 = arith.addf %321, %322 : vector<2x128xf32>
    %324 = tpu.concatenate %320, %323 in 0 : vector<2x128xf32>, vector<2x128xf32> -> vector<4x128xf32>
    %325 = arith.negf %324 : vector<4x128xf32>
    %326 = math.exp %325 : vector<4x128xf32>
    %cst_130 = arith.constant 1.000000e+00 : f32
    %327 = vector.broadcast %cst_130 : f32 to vector<4x128xf32>
    %328 = arith.addf %327, %326 : vector<4x128xf32>
    %329 = arith.divf %327, %328 : vector<4x128xf32>
    %330 = math.tanh %324 : vector<4x128xf32>
    %331 = vector.extract_strided_slice %329 {offsets = [0, 0], sizes = [4, 32], strides = [1, 1]} : vector<4x128xf32> to vector<4x32xf32>
    %332 = vector.extract_strided_slice %329 {offsets = [0, 32], sizes = [4, 32], strides = [1, 1]} : vector<4x128xf32> to vector<4x32xf32>
    %333 = vector.extract_strided_slice %330 {offsets = [0, 64], sizes = [4, 32], strides = [1, 1]} : vector<4x128xf32> to vector<4x32xf32>
    %334 = vector.extract_strided_slice %329 {offsets = [0, 96], sizes = [4, 32], strides = [1, 1]} : vector<4x128xf32> to vector<4x32xf32>
    %335 = arith.mulf %332, %310 : vector<4x32xf32>
    %336 = arith.mulf %331, %333 : vector<4x32xf32>
    %337 = arith.addf %335, %336 : vector<4x32xf32>
    %338 = math.tanh %337 : vector<4x32xf32>
    %339 = arith.mulf %334, %338 : vector<4x32xf32>
    %340 = vector.extract_strided_slice %339 {offsets = [0, 0], sizes = [2, 32], strides = [1, 1]} : vector<4x32xf32> to vector<2x32xf32>
    %c6_131 = arith.constant 6 : index
    %c0_132 = arith.constant 0 : index
    %341 = vector.load %arg7[%c6_131, %c0_132] : memref<16x64xf32, #tpu.memory_space<vmem>>, vector<2x32xf32>
    tpu.vector_store %arg7[%c6_131, %c0_132], %340 {strides = array<i32>} : memref<16x64xf32, #tpu.memory_space<vmem>>, vector<2x32xf32>,
    %342 = vector.extract_strided_slice %339 {offsets = [2, 0], sizes = [2, 32], strides = [1, 1]} : vector<4x32xf32> to vector<2x32xf32>
    %c8_133 = arith.constant 8 : index
    %c32_134 = arith.constant 32 : index
    %343 = vector.load %arg7[%c8_133, %c32_134] : memref<16x64xf32, #tpu.memory_space<vmem>>, vector<2x32xf32>
    tpu.vector_store %arg7[%c8_133, %c32_134], %342 {strides = array<i32>} : memref<16x64xf32, #tpu.memory_space<vmem>>, vector<2x32xf32>,
    %cst_135 = arith.constant dense<0.000000e+00> : vector<4x256xf32>
    %344 = tpu.matmul %339, %233, %cst_135 {dimension_numbers = #tpu.dot_dimension_numbers<[1], [0], [0], [1], [0, 0, 1, 1], [], []>} : vector<4x32xf32>, vector<32x256xf32>, vector<4x256xf32> -> vector<4x256xf32>
    %345 = vector.extract_strided_slice %344 {offsets = [0, 0], sizes = [2, 128], strides = [1, 1]} : vector<4x256xf32> to vector<2x128xf32>
    %c8_136 = arith.constant 8 : index
    %c0_137 = arith.constant 0 : index
    %346 = vector.load %arg8[%c8_136, %c0_137] : memref<16x256xf32, #tpu.memory_space<vmem>>, vector<2x128xf32>
    %347 = arith.addf %345, %346 : vector<2x128xf32>
    %348 = vector.extract_strided_slice %344 {offsets = [2, 128], sizes = [2, 128], strides = [1, 1]} : vector<4x256xf32> to vector<2x128xf32>
    %c6_138 = arith.constant 6 : index
    %c128_139 = arith.constant 128 : index
    %349 = vector.load %arg8[%c6_138, %c128_139] : memref<16x256xf32, #tpu.memory_space<vmem>>, vector<2x128xf32>
    %350 = arith.addf %348, %349 : vector<2x128xf32>
    %351 = tpu.concatenate %347, %350 in 0 : vector<2x128xf32>, vector<2x128xf32> -> vector<4x128xf32>
    %352 = arith.negf %351 : vector<4x128xf32>
    %353 = math.exp %352 : vector<4x128xf32>
    %cst_140 = arith.constant 1.000000e+00 : f32
    %354 = vector.broadcast %cst_140 : f32 to vector<4x128xf32>
    %355 = arith.addf %354, %353 : vector<4x128xf32>
    %356 = arith.divf %354, %355 : vector<4x128xf32>
    %357 = math.tanh %351 : vector<4x128xf32>
    %358 = vector.extract_strided_slice %356 {offsets = [0, 0], sizes = [4, 32], strides = [1, 1]} : vector<4x128xf32> to vector<4x32xf32>
    %359 = vector.extract_strided_slice %356 {offsets = [0, 32], sizes = [4, 32], strides = [1, 1]} : vector<4x128xf32> to vector<4x32xf32>
    %360 = vector.extract_strided_slice %357 {offsets = [0, 64], sizes = [4, 32], strides = [1, 1]} : vector<4x128xf32> to vector<4x32xf32>
    %361 = vector.extract_strided_slice %356 {offsets = [0, 96], sizes = [4, 32], strides = [1, 1]} : vector<4x128xf32> to vector<4x32xf32>
    %362 = arith.mulf %359, %337 : vector<4x32xf32>
    %363 = arith.mulf %358, %360 : vector<4x32xf32>
    %364 = arith.addf %362, %363 : vector<4x32xf32>
    %365 = math.tanh %364 : vector<4x32xf32>
    %366 = arith.mulf %361, %365 : vector<4x32xf32>
    %367 = vector.extract_strided_slice %366 {offsets = [0, 0], sizes = [2, 32], strides = [1, 1]} : vector<4x32xf32> to vector<2x32xf32>
    %c8_141 = arith.constant 8 : index
    %c0_142 = arith.constant 0 : index
    %368 = vector.load %arg7[%c8_141, %c0_142] : memref<16x64xf32, #tpu.memory_space<vmem>>, vector<2x32xf32>
    tpu.vector_store %arg7[%c8_141, %c0_142], %367 {strides = array<i32>} : memref<16x64xf32, #tpu.memory_space<vmem>>, vector<2x32xf32>,
    %369 = vector.extract_strided_slice %366 {offsets = [2, 0], sizes = [2, 32], strides = [1, 1]} : vector<4x32xf32> to vector<2x32xf32>
    %c6_143 = arith.constant 6 : index
    %c32_144 = arith.constant 32 : index
    %370 = vector.load %arg7[%c6_143, %c32_144] : memref<16x64xf32, #tpu.memory_space<vmem>>, vector<2x32xf32>
    tpu.vector_store %arg7[%c6_143, %c32_144], %369 {strides = array<i32>} : memref<16x64xf32, #tpu.memory_space<vmem>>, vector<2x32xf32>,
    %cst_145 = arith.constant dense<0.000000e+00> : vector<4x256xf32>
    %371 = tpu.matmul %366, %233, %cst_145 {dimension_numbers = #tpu.dot_dimension_numbers<[1], [0], [0], [1], [0, 0, 1, 1], [], []>} : vector<4x32xf32>, vector<32x256xf32>, vector<4x256xf32> -> vector<4x256xf32>
    %372 = vector.extract_strided_slice %371 {offsets = [0, 0], sizes = [2, 128], strides = [1, 1]} : vector<4x256xf32> to vector<2x128xf32>
    %c10_146 = arith.constant 10 : index
    %c0_147 = arith.constant 0 : index
    %373 = vector.load %arg8[%c10_146, %c0_147] : memref<16x256xf32, #tpu.memory_space<vmem>>, vector<2x128xf32>
    %374 = arith.addf %372, %373 : vector<2x128xf32>
    %375 = vector.extract_strided_slice %371 {offsets = [2, 128], sizes = [2, 128], strides = [1, 1]} : vector<4x256xf32> to vector<2x128xf32>
    %c4_148 = arith.constant 4 : index
    %c128_149 = arith.constant 128 : index
    %376 = vector.load %arg8[%c4_148, %c128_149] : memref<16x256xf32, #tpu.memory_space<vmem>>, vector<2x128xf32>
    %377 = arith.addf %375, %376 : vector<2x128xf32>
    %378 = tpu.concatenate %374, %377 in 0 : vector<2x128xf32>, vector<2x128xf32> -> vector<4x128xf32>
    %379 = arith.negf %378 : vector<4x128xf32>
    %380 = math.exp %379 : vector<4x128xf32>
    %cst_150 = arith.constant 1.000000e+00 : f32
    %381 = vector.broadcast %cst_150 : f32 to vector<4x128xf32>
    %382 = arith.addf %381, %380 : vector<4x128xf32>
    %383 = arith.divf %381, %382 : vector<4x128xf32>
    %384 = math.tanh %378 : vector<4x128xf32>
    %385 = vector.extract_strided_slice %383 {offsets = [0, 0], sizes = [4, 32], strides = [1, 1]} : vector<4x128xf32> to vector<4x32xf32>
    %386 = vector.extract_strided_slice %383 {offsets = [0, 32], sizes = [4, 32], strides = [1, 1]} : vector<4x128xf32> to vector<4x32xf32>
    %387 = vector.extract_strided_slice %384 {offsets = [0, 64], sizes = [4, 32], strides = [1, 1]} : vector<4x128xf32> to vector<4x32xf32>
    %388 = vector.extract_strided_slice %383 {offsets = [0, 96], sizes = [4, 32], strides = [1, 1]} : vector<4x128xf32> to vector<4x32xf32>
    %389 = arith.mulf %386, %364 : vector<4x32xf32>
    %390 = arith.mulf %385, %387 : vector<4x32xf32>
    %391 = arith.addf %389, %390 : vector<4x32xf32>
    %392 = math.tanh %391 : vector<4x32xf32>
    %393 = arith.mulf %388, %392 : vector<4x32xf32>
    %394 = vector.extract_strided_slice %393 {offsets = [0, 0], sizes = [2, 32], strides = [1, 1]} : vector<4x32xf32> to vector<2x32xf32>
    %c10_151 = arith.constant 10 : index
    %c0_152 = arith.constant 0 : index
    %395 = vector.load %arg7[%c10_151, %c0_152] : memref<16x64xf32, #tpu.memory_space<vmem>>, vector<2x32xf32>
    tpu.vector_store %arg7[%c10_151, %c0_152], %394 {strides = array<i32>} : memref<16x64xf32, #tpu.memory_space<vmem>>, vector<2x32xf32>,
    %396 = vector.extract_strided_slice %393 {offsets = [2, 0], sizes = [2, 32], strides = [1, 1]} : vector<4x32xf32> to vector<2x32xf32>
    %c4_153 = arith.constant 4 : index
    %c32_154 = arith.constant 32 : index
    %397 = vector.load %arg7[%c4_153, %c32_154] : memref<16x64xf32, #tpu.memory_space<vmem>>, vector<2x32xf32>
    tpu.vector_store %arg7[%c4_153, %c32_154], %396 {strides = array<i32>} : memref<16x64xf32, #tpu.memory_space<vmem>>, vector<2x32xf32>,
    %cst_155 = arith.constant dense<0.000000e+00> : vector<4x256xf32>
    %398 = tpu.matmul %393, %233, %cst_155 {dimension_numbers = #tpu.dot_dimension_numbers<[1], [0], [0], [1], [0, 0, 1, 1], [], []>} : vector<4x32xf32>, vector<32x256xf32>, vector<4x256xf32> -> vector<4x256xf32>
    %399 = vector.extract_strided_slice %398 {offsets = [0, 0], sizes = [2, 128], strides = [1, 1]} : vector<4x256xf32> to vector<2x128xf32>
    %c12_156 = arith.constant 12 : index
    %c0_157 = arith.constant 0 : index
    %400 = vector.load %arg8[%c12_156, %c0_157] : memref<16x256xf32, #tpu.memory_space<vmem>>, vector<2x128xf32>
    %401 = arith.addf %399, %400 : vector<2x128xf32>
    %402 = vector.extract_strided_slice %398 {offsets = [2, 128], sizes = [2, 128], strides = [1, 1]} : vector<4x256xf32> to vector<2x128xf32>
    %c2_158 = arith.constant 2 : index
    %c128_159 = arith.constant 128 : index
    %403 = vector.load %arg8[%c2_158, %c128_159] : memref<16x256xf32, #tpu.memory_space<vmem>>, vector<2x128xf32>
    %404 = arith.addf %402, %403 : vector<2x128xf32>
    %405 = tpu.concatenate %401, %404 in 0 : vector<2x128xf32>, vector<2x128xf32> -> vector<4x128xf32>
    %406 = arith.negf %405 : vector<4x128xf32>
    %407 = math.exp %406 : vector<4x128xf32>
    %cst_160 = arith.constant 1.000000e+00 : f32
    %408 = vector.broadcast %cst_160 : f32 to vector<4x128xf32>
    %409 = arith.addf %408, %407 : vector<4x128xf32>
    %410 = arith.divf %408, %409 : vector<4x128xf32>
    %411 = math.tanh %405 : vector<4x128xf32>
    %412 = vector.extract_strided_slice %410 {offsets = [0, 0], sizes = [4, 32], strides = [1, 1]} : vector<4x128xf32> to vector<4x32xf32>
    %413 = vector.extract_strided_slice %410 {offsets = [0, 32], sizes = [4, 32], strides = [1, 1]} : vector<4x128xf32> to vector<4x32xf32>
    %414 = vector.extract_strided_slice %411 {offsets = [0, 64], sizes = [4, 32], strides = [1, 1]} : vector<4x128xf32> to vector<4x32xf32>
    %415 = vector.extract_strided_slice %410 {offsets = [0, 96], sizes = [4, 32], strides = [1, 1]} : vector<4x128xf32> to vector<4x32xf32>
    %416 = arith.mulf %413, %391 : vector<4x32xf32>
    %417 = arith.mulf %412, %414 : vector<4x32xf32>
    %418 = arith.addf %416, %417 : vector<4x32xf32>
    %419 = math.tanh %418 : vector<4x32xf32>
    %420 = arith.mulf %415, %419 : vector<4x32xf32>
    %421 = vector.extract_strided_slice %420 {offsets = [0, 0], sizes = [2, 32], strides = [1, 1]} : vector<4x32xf32> to vector<2x32xf32>
    %c12_161 = arith.constant 12 : index
    %c0_162 = arith.constant 0 : index
    %422 = vector.load %arg7[%c12_161, %c0_162] : memref<16x64xf32, #tpu.memory_space<vmem>>, vector<2x32xf32>
    tpu.vector_store %arg7[%c12_161, %c0_162], %421 {strides = array<i32>} : memref<16x64xf32, #tpu.memory_space<vmem>>, vector<2x32xf32>,
    %423 = vector.extract_strided_slice %420 {offsets = [2, 0], sizes = [2, 32], strides = [1, 1]} : vector<4x32xf32> to vector<2x32xf32>
    %c2_163 = arith.constant 2 : index
    %c32_164 = arith.constant 32 : index
    %424 = vector.load %arg7[%c2_163, %c32_164] : memref<16x64xf32, #tpu.memory_space<vmem>>, vector<2x32xf32>
    tpu.vector_store %arg7[%c2_163, %c32_164], %423 {strides = array<i32>} : memref<16x64xf32, #tpu.memory_space<vmem>>, vector<2x32xf32>,
    %cst_165 = arith.constant dense<0.000000e+00> : vector<4x256xf32>
    %425 = tpu.matmul %420, %233, %cst_165 {dimension_numbers = #tpu.dot_dimension_numbers<[1], [0], [0], [1], [0, 0, 1, 1], [], []>} : vector<4x32xf32>, vector<32x256xf32>, vector<4x256xf32> -> vector<4x256xf32>
    %426 = vector.extract_strided_slice %425 {offsets = [0, 0], sizes = [2, 128], strides = [1, 1]} : vector<4x256xf32> to vector<2x128xf32>
    %c14_166 = arith.constant 14 : index
    %c0_167 = arith.constant 0 : index
    %427 = vector.load %arg8[%c14_166, %c0_167] : memref<16x256xf32, #tpu.memory_space<vmem>>, vector<2x128xf32>
    %428 = arith.addf %426, %427 : vector<2x128xf32>
    %429 = vector.extract_strided_slice %425 {offsets = [2, 128], sizes = [2, 128], strides = [1, 1]} : vector<4x256xf32> to vector<2x128xf32>
    %c0_168 = arith.constant 0 : index
    %c128_169 = arith.constant 128 : index
    %430 = vector.load %arg8[%c0_168, %c128_169] : memref<16x256xf32, #tpu.memory_space<vmem>>, vector<2x128xf32>
    %431 = arith.addf %429, %430 : vector<2x128xf32>
    %432 = tpu.concatenate %428, %431 in 0 : vector<2x128xf32>, vector<2x128xf32> -> vector<4x128xf32>
    %433 = arith.negf %432 : vector<4x128xf32>
    %434 = math.exp %433 : vector<4x128xf32>
    %cst_170 = arith.constant 1.000000e+00 : f32
    %435 = vector.broadcast %cst_170 : f32 to vector<4x128xf32>
    %436 = arith.addf %435, %434 : vector<4x128xf32>
    %437 = arith.divf %435, %436 : vector<4x128xf32>
    %438 = math.tanh %432 : vector<4x128xf32>
    %439 = vector.extract_strided_slice %437 {offsets = [0, 0], sizes = [4, 32], strides = [1, 1]} : vector<4x128xf32> to vector<4x32xf32>
    %440 = vector.extract_strided_slice %437 {offsets = [0, 32], sizes = [4, 32], strides = [1, 1]} : vector<4x128xf32> to vector<4x32xf32>
    %441 = vector.extract_strided_slice %438 {offsets = [0, 64], sizes = [4, 32], strides = [1, 1]} : vector<4x128xf32> to vector<4x32xf32>
    %442 = vector.extract_strided_slice %437 {offsets = [0, 96], sizes = [4, 32], strides = [1, 1]} : vector<4x128xf32> to vector<4x32xf32>
    %443 = arith.mulf %440, %418 : vector<4x32xf32>
    %444 = arith.mulf %439, %441 : vector<4x32xf32>
    %445 = arith.addf %443, %444 : vector<4x32xf32>
    %446 = math.tanh %445 : vector<4x32xf32>
    %447 = arith.mulf %442, %446 : vector<4x32xf32>
    %448 = vector.extract_strided_slice %447 {offsets = [0, 0], sizes = [2, 32], strides = [1, 1]} : vector<4x32xf32> to vector<2x32xf32>
    %c14_171 = arith.constant 14 : index
    %c0_172 = arith.constant 0 : index
    %449 = vector.load %arg7[%c14_171, %c0_172] : memref<16x64xf32, #tpu.memory_space<vmem>>, vector<2x32xf32>
    tpu.vector_store %arg7[%c14_171, %c0_172], %448 {strides = array<i32>} : memref<16x64xf32, #tpu.memory_space<vmem>>, vector<2x32xf32>,
    %450 = vector.extract_strided_slice %447 {offsets = [2, 0], sizes = [2, 32], strides = [1, 1]} : vector<4x32xf32> to vector<2x32xf32>
    %c0_173 = arith.constant 0 : index
    %c32_174 = arith.constant 32 : index
    %451 = vector.load %arg7[%c0_173, %c32_174] : memref<16x64xf32, #tpu.memory_space<vmem>>, vector<2x32xf32>
    tpu.vector_store %arg7[%c0_173, %c32_174], %450 {strides = array<i32>} : memref<16x64xf32, #tpu.memory_space<vmem>>, vector<2x32xf32>,
    return
  }
}

</mosaic_0001>

<llo_original>
// kernel: tpu_custom_call.1
$region0: #{tpu_custom_call.1}
  #allocation0 [shape = 'u32[]', space=smem, size = 0x4, offset = 0x4, fixed_abs, tag = 'smem constant byte address 0x4 - core index']
  #allocation1 [shape = 'u32[144,128]{1,0:T(1,128)}', space=vmem, size = 0x12000, scoped, tag = 'internal scratch']
  #allocation2 [shape = 'f32[16,256]{1,0:T(8,128)}', space=vmem, size = 0x4000, scoped, tag = 'scratch operand']
  #allocation3 [shape = 'f32[16,64]{1,0:T(8,128)}', space=vmem, size = 0x2000, scoped, tag = 'scratch operand']
  %s0 = inlined_call_operand.hbm [shape: f32[16,16], index: 0, kind: input, shape index: {}]
  %s1 = inlined_call_operand.hbm [shape: f32[16,256], index: 1, kind: input, shape index: {}]
  %s2 = inlined_call_operand.hbm [shape: f32[32,256], index: 2, kind: input, shape index: {}]
  %s3 = inlined_call_operand.vmem [shape: f32[1,256], index: 3, kind: input, shape index: {}]
  %s4 = inlined_call_operand.hbm [shape: f32[64,256], index: 4, kind: input, shape index: {}]
  %s5 = inlined_call_operand.hbm [shape: f32[32,256], index: 5, kind: input, shape index: {}]
  %s6 = inlined_call_operand.vmem [shape: f32[1,256], index: 6, kind: input, shape index: {}]
  %s7 = inlined_call_operand.hbm [shape: f32[16,64], index: 7, kind: output, shape index: {}]
  %s8 = sld [smem:[#allocation0]]
  $region58: #{tpu_custom_call.1} parent=0
    _
  %s10 = ssub.s32 1, %s8
  %s11 = scalar_select 0, %s10, %s8
  $region1: #{tpu_custom_call.1} parent=0
    #allocation4 [shape = 'u8[8192]{0}', space=vmem, size = 0x2000, scoped, tag = 'input window, operand 0, single buffered']
    #allocation5 [shape = 's32[1]{0}', space=sflag, size = 0x4, scoped, tag = 'scoped memory for tpu_custom_call.1']
    #allocation6 [shape = 's32[1]{0}', space=sflag, size = 0x4, scoped, tag = 'scoped memory for tpu_custom_call.1']
    #allocation7 [shape = 'u8[16384]{0}', space=vmem, size = 0x4000, scoped, tag = 'input window, operand 1, single buffered']
    #allocation8 [shape = 's32[1]{0}', space=sflag, size = 0x4, scoped, tag = 'scoped memory for tpu_custom_call.1']
    #allocation9 [shape = 'u8[32768]{0}', space=vmem, size = 0x8000, scoped, tag = 'input window, operand 2, single buffered']
    #allocation10 [shape = 'u8[65536]{0}', space=vmem, size = 0x10000, scoped, tag = 'input window, operand 4, single buffered']
    #allocation11 [shape = 's32[1]{0}', space=sflag, size = 0x4, scoped, tag = 'scoped memory for tpu_custom_call.1']
    #allocation12 [shape = 'u8[32768]{0}', space=vmem, size = 0x8000, scoped, tag = 'input window, operand 5, single buffered']
    #allocation13 [shape = 'u8[8192]{0}', space=vmem, size = 0x2000, scoped, tag = 'output window, operand 0, single buffered']
    %12 = vsyncpa [#allocation5], 0
    %13 = vsyncpa [#allocation8], 0
    %14 = vsyncpa [#allocation11], 0
    %15 = vsyncpa [#allocation6], 0
    // Predicated region
    $region2: #{tpu_custom_call.1} parent=1 // pred_check
      _
    $region3: #{tpu_custom_call.1} parent=1 // pred_check_branch
      %17 = sbr.rel (0) target = $region5
    $region4: #{tpu_custom_call.1} parent=1 // pred_region
      %s19 = ssub.s32 256, 256
      %20 = vsyncadd [#allocation5], %s19
      %s21 = sshll.u32 [#allocation4], 4
      %s22 = int_to_ptr.vmem [resolvable:$true] %s21
      %27 = dma.hbm_to_vmem [thread:$0]  %s0, 256, %s22, [#allocation5], 128, 128, 8
    $region5: #{tpu_custom_call.1} parent=1 // pred_fallthru
      _
    // Predicated region
    $region6: #{tpu_custom_call.1} parent=1 // pred_check
      _
    $region7: #{tpu_custom_call.1} parent=1 // pred_check_branch
      %29 = sbr.rel (0) target = $region9
    $region8: #{tpu_custom_call.1} parent=1 // pred_region
      %s31 = ssub.s32 512, 512
      %32 = vsyncadd [#allocation8], %s31
      %s33 = sshll.u32 [#allocation7], 4
      %s34 = int_to_ptr.vmem [resolvable:$true] %s33
      %39 = dma.hbm_to_vmem [thread:$0]  %s1, 512, %s34, [#allocation8], 256, 256, 16
    $region9: #{tpu_custom_call.1} parent=1 // pred_fallthru
      _
    // Predicated region
    $region10: #{tpu_custom_call.1} parent=1 // pred_check
      _
    $region11: #{tpu_custom_call.1} parent=1 // pred_check_branch
      %41 = sbr.rel (0) target = $region13
    $region12: #{tpu_custom_call.1} parent=1 // pred_region
      %s43 = ssub.s32 1024, 1024
      %44 = vsyncadd [#allocation8], %s43
      %s45 = sshll.u32 [#allocation9], 4
      %s46 = int_to_ptr.vmem [resolvable:$true] %s45
      %51 = dma.hbm_to_vmem [thread:$0]  %s2, 1024, %s46, [#allocation8], 256, 256, 16
    $region13: #{tpu_custom_call.1} parent=1 // pred_fallthru
      _
    // Predicated region
    $region14: #{tpu_custom_call.1} parent=1 // pred_check
      _
    $region15: #{tpu_custom_call.1} parent=1 // pred_check_branch
      %53 = sbr.rel (0) target = $region17
    $region16: #{tpu_custom_call.1} parent=1 // pred_region
      _
    $region17: #{tpu_custom_call.1} parent=1 // pred_fallthru
      _
    // Predicated region
    $region18: #{tpu_custom_call.1} parent=1 // pred_check
      _
    $region19: #{tpu_custom_call.1} parent=1 // pred_check_branch
      %55 = sbr.rel (0) target = $region21
    $region20: #{tpu_custom_call.1} parent=1 // pred_region
      %s57 = ssub.s32 2048, 2048
      %58 = vsyncadd [#allocation11], %s57
      %s59 = sshll.u32 [#allocation10], 4
      %s60 = int_to_ptr.vmem [resolvable:$true] %s59
      %65 = dma.hbm_to_vmem [thread:$0]  %s4, 2048, %s60, [#allocation11], 256, 256, 16
    $region21: #{tpu_custom_call.1} parent=1 // pred_fallthru
      _
    // Predicated region
    $region22: #{tpu_custom_call.1} parent=1 // pred_check
      _
    $region23: #{tpu_custom_call.1} parent=1 // pred_check_branch
      %67 = sbr.rel (0) target = $region25
    $region24: #{tpu_custom_call.1} parent=1 // pred_region
      %s69 = ssub.s32 1024, 1024
      %70 = vsyncadd [#allocation11], %s69
      %s71 = sshll.u32 [#allocation12], 4
      %s72 = int_to_ptr.vmem [resolvable:$true] %s71
      %77 = dma.hbm_to_vmem [thread:$0]  %s5, 1024, %s72, [#allocation11], 256, 256, 16
    $region25: #{tpu_custom_call.1} parent=1 // pred_fallthru
      _
    // Predicated region
    $region26: #{tpu_custom_call.1} parent=1 // pred_check
      _
    $region27: #{tpu_custom_call.1} parent=1 // pred_check_branch
      %79 = sbr.rel (0) target = $region29
    $region28: #{tpu_custom_call.1} parent=1 // pred_region
      _
    $region29: #{tpu_custom_call.1} parent=1 // pred_fallthru
      _
    // Predicated region
    $region30: #{tpu_custom_call.1} parent=1 // pred_check
      _
    $region31: #{tpu_custom_call.1} parent=1 // pred_check_branch
      %81 = sbr.rel (0) target = $region33
    $region32: #{tpu_custom_call.1} parent=1 // pred_region
      %82 = dma.done [#allocation5], 256
    $region33: #{tpu_custom_call.1} parent=1 // pred_fallthru
      _
    // Predicated region
    $region34: #{tpu_custom_call.1} parent=1 // pred_check
      _
    $region35: #{tpu_custom_call.1} parent=1 // pred_check_branch
      %84 = sbr.rel (0) target = $region37
    $region36: #{tpu_custom_call.1} parent=1 // pred_region
      %85 = dma.done [#allocation8], 512
    $region37: #{tpu_custom_call.1} parent=1 // pred_fallthru
      _
    // Predicated region
    $region38: #{tpu_custom_call.1} parent=1 // pred_check
      _
    $region39: #{tpu_custom_call.1} parent=1 // pred_check_branch
      %87 = sbr.rel (0) target = $region41
    $region40: #{tpu_custom_call.1} parent=1 // pred_region
      %88 = dma.done [#allocation8], 1024
    $region41: #{tpu_custom_call.1} parent=1 // pred_fallthru
      _
    // Predicated region
    $region42: #{tpu_custom_call.1} parent=1 // pred_check
      _
    $region43: #{tpu_custom_call.1} parent=1 // pred_check_branch
      %90 = sbr.rel (0) target = $region45
    $region44: #{tpu_custom_call.1} parent=1 // pred_region
      %91 = dma.done [#allocation11], 2048
    $region45: #{tpu_custom_call.1} parent=1 // pred_fallthru
      _
    // Predicated region
    $region46: #{tpu_custom_call.1} parent=1 // pred_check
      _
    $region47: #{tpu_custom_call.1} parent=1 // pred_check_branch
      %93 = sbr.rel (0) target = $region49
    $region48: #{tpu_custom_call.1} parent=1 // pred_region
      %94 = dma.done [#allocation11], 1024
    $region49: #{tpu_custom_call.1} parent=1 // pred_fallthru
      _
    %v95 = vld [vmem:[#allocation4] sm:$0xff]
    %v96 = vld [vmem:[#allocation4 + $0x8] sm:$0xff]
    %v97 = vld [vmem:[#allocation7] sm:$0xff]
    %v98 = vld [vmem:[#allocation7 + $0x8] sm:$0xff]
    %v99 = vld [vmem:[#allocation7 + $0x10] sm:$0xff]
    %v100 = vld [vmem:[#allocation7 + $0x18] sm:$0xff]
    %v101 = vld [vmem:[%s3] sm:$0x3]
    %v103 = vlaneseq
    %v104 = vshrl.u32 %v103, 7
    %v105 = vsub.s32 0, %v104
    %v106 = vrot.slane %v101, %v105
    %v107 = vlaneseq
    %v108 = vshrl.u32 %v107, 7
    %v109 = vsub.s32 1, %v108
    %v110 = vrot.slane %v101, %v109
    %vm113 = vcmask 130048
    %v115 = vsel %vm113, %v95, 0
    %v118 = vsel %vm113, %v96, 0
    %120 = vmatprep.subr.mxu0 %v98
    %121 = vmatpush1.msra.mxu0 %v97
    %122 = vmatprep.subr.mxu0 %v100
    %123 = vmatpush1.msra.mxu0 %v99
    %124 = vmatprep.subr.mxu0 0.0
    %125 = vmatpush1.msra.mxu0 0.0
    %126 = vmatprep.subr.mxu0 0.0
    %127 = vmatpush1.msra.mxu0 0.0
    %128 = vmatprep.subr.mxu0 0.0
    %129 = vmatpush1.msra.mxu0 0.0
    %130 = vmatprep.subr.mxu0 0.0
    %131 = vmatpush1.msra.mxu0 0.0
    %132 = vmatprep.subr.mxu0 0.0
    %133 = vmatpush1.msra.mxu0 0.0
    %134 = vmatprep.subr.mxu0 0.0
    %135 = vmatpush1.msra.mxu0 0.0
    %136 = vmatprep.subr.mxu0 0.0
    %137 = vmatpush1.msra.mxu0 0.0
    %138 = vmatprep.subr.mxu0 0.0
    %139 = vmatpush1.msra.mxu0 0.0
    %140 = vmatprep.subr.mxu0 0.0
    %141 = vmatpush1.msra.mxu0 0.0
    %142 = vmatprep.subr.mxu0 0.0
    %143 = vmatpush1.msra.mxu0 0.0
    %144 = vmatprep.subr.mxu0 0.0
    %145 = vmatpush1.msra.mxu0 0.0
    %146 = vmatprep.subr.mxu0 0.0
    %147 = vmatpush1.msra.mxu0 0.0
    %148 = vmatprep.subr.mxu0 0.0
    %149 = vmatpush1.msra.mxu0 0.0
    %150 = vmatprep.subr.mxu0 0.0
    %151 = vmatpush1.msra.mxu0 0.0
    %152 = vmatprep.subr.mxu0 0.0
    %153 = vmatpush1.msra.mxu0 0.0
    %154 = vmatprep.subr.mxu0 0.0
    %155 = vmatpush1.msra.mxu0 0.0
    %156 = vmatprep.subr.mxu0 0.0
    %157 = vmatpush1.msra.mxu0 0.0
    %158 = vmatprep.subr.mxu0 0.0
    %159 = vmatpush1.msra.mxu0 0.0
    %160 = vmatprep.subr.mxu0 0.0
    %161 = vmatpush1.msra.mxu0 0.0
    %162 = vmatprep.subr.mxu0 0.0
    %163 = vmatpush1.msra.mxu0 0.0
    %164 = vmatprep.subr.mxu0 0.0
    %165 = vmatpush1.msra.mxu0 0.0
    %166 = vmatprep.subr.mxu0 0.0
    %167 = vmatpush1.msra.mxu0 0.0
    %168 = vmatprep.subr.mxu0 0.0
    %169 = vmatpush1.msra.mxu0 0.0
    %170 = vmatprep.subr.mxu0 0.0
    %171 = vmatpush1.msra.mxu0 0.0
    %172 = vmatprep.subr.mxu0 0.0
    %173 = vmatpush1.msra.mxu0 0.0
    %174 = vmatprep.subr.mxu0 0.0
    %175 = vmatpush1.msra.mxu0 0.0
    %176 = vmatprep.subr.mxu0 0.0
    %177 = vmatpush1.msra.mxu0 0.0
    %178 = vmatprep.subr.mxu0 0.0
    %179 = vmatpush1.msra.mxu0 0.0
    %180 = vmatprep.subr.mxu0 0.0
    %181 = vmatpush1.msra.mxu0 0.0
    %182 = vmatprep.subr.mxu0 0.0
    %183 = vmatpush1.msra.mxu0 0.0
    %184 = vmatprep.mubr.f32.mxu0 0.0
    %185 = vmatmul.mubr.f32.gmra.mrb[0].mxu0 %v115
    %v186 = vpop.f32.mrb[0].mxu0
    %v187 = vadd.f32 %v106, %v186
    %v188 = vpop.f32.mrb[0].mxu0
    %v189 = vadd.f32 %v110, %v188
    %190 = vmatprep.mubr.f32.mxu0 0.0
    %191 = vmatmul.mubr.f32.gmra.mrb[0].mxu0 %v118
    %v192 = vpop.f32.mrb[0].mxu0
    %v193 = vadd.f32 %v106, %v192
    %v194 = vpop.f32.mrb[0].mxu0
    %v195 = vadd.f32 %v110, %v194
    %196 = vdwg.mxu0
    %197 = vst [vmem:[#allocation2] sm:$0xff] %v187
    %198 = vst [vmem:[#allocation2 + $0x8] sm:$0xff] %v189
    %199 = vst [vmem:[#allocation2 + $0x10] sm:$0xff] %v193
    %200 = vst [vmem:[#allocation2 + $0x18] sm:$0xff] %v195
    %v201 = vld [vmem:[#allocation9] sm:$0xff]
    %v202 = vld [vmem:[#allocation9 + $0x8] sm:$0xff]
    %v203 = vld [vmem:[#allocation9 + $0x10] sm:$0xff]
    %v204 = vld [vmem:[#allocation9 + $0x18] sm:$0xff]
    %v205 = vld [vmem:[#allocation9 + $0x20] sm:$0xff]
    %v206 = vld [vmem:[#allocation9 + $0x28] sm:$0xff]
    %v207 = vld [vmem:[#allocation9 + $0x30] sm:$0xff]
    %v208 = vld [vmem:[#allocation9 + $0x38] sm:$0xff]
    %vm209 = vcmask 261120
    %v211 = vsel %vm209, 0.0, 0
    %213 = vmatprep.subr.mxu0 %v202
    %214 = vmatpush1.msra.mxu0 %v201
    %215 = vmatprep.subr.mxu0 %v204
    %216 = vmatpush1.msra.mxu0 %v203
    %217 = vmatprep.subr.mxu0 %v206
    %218 = vmatpush1.msra.mxu0 %v205
    %219 = vmatprep.subr.mxu0 %v208
    %220 = vmatpush1.msra.mxu0 %v207
    %221 = vmatprep.subr.mxu0 0.0
    %222 = vmatpush1.msra.mxu0 0.0
    %223 = vmatprep.subr.mxu0 0.0
    %224 = vmatpush1.msra.mxu0 0.0
    %225 = vmatprep.subr.mxu0 0.0
    %226 = vmatpush1.msra.mxu0 0.0
    %227 = vmatprep.subr.mxu0 0.0
    %228 = vmatpush1.msra.mxu0 0.0
    %229 = vmatprep.subr.mxu0 0.0
    %230 = vmatpush1.msra.mxu0 0.0
    %231 = vmatprep.subr.mxu0 0.0
    %232 = vmatpush1.msra.mxu0 0.0
    %233 = vmatprep.subr.mxu0 0.0
    %234 = vmatpush1.msra.mxu0 0.0
    %235 = vmatprep.subr.mxu0 0.0
    %236 = vmatpush1.msra.mxu0 0.0
    %237 = vmatprep.subr.mxu0 0.0
    %238 = vmatpush1.msra.mxu0 0.0
    %239 = vmatprep.subr.mxu0 0.0
    %240 = vmatpush1.msra.mxu0 0.0
    %241 = vmatprep.subr.mxu0 0.0
    %242 = vmatpush1.msra.mxu0 0.0
    %243 = vmatprep.subr.mxu0 0.0
    %244 = vmatpush1.msra.mxu0 0.0
    %245 = vmatprep.subr.mxu0 0.0
    %246 = vmatpush1.msra.mxu0 0.0
    %247 = vmatprep.subr.mxu0 0.0
    %248 = vmatpush1.msra.mxu0 0.0
    %249 = vmatprep.subr.mxu0 0.0
    %250 = vmatpush1.msra.mxu0 0.0
    %251 = vmatprep.subr.mxu0 0.0
    %252 = vmatpush1.msra.mxu0 0.0
    %253 = vmatprep.subr.mxu0 0.0
    %254 = vmatpush1.msra.mxu0 0.0
    %255 = vmatprep.subr.mxu0 0.0
    %256 = vmatpush1.msra.mxu0 0.0
    %257 = vmatprep.subr.mxu0 0.0
    %258 = vmatpush1.msra.mxu0 0.0
    %259 = vmatprep.subr.mxu0 0.0
    %260 = vmatpush1.msra.mxu0 0.0
    %261 = vmatprep.subr.mxu0 0.0
    %262 = vmatpush1.msra.mxu0 0.0
    %263 = vmatprep.subr.mxu0 0.0
    %264 = vmatpush1.msra.mxu0 0.0
    %265 = vmatprep.subr.mxu0 0.0
    %266 = vmatpush1.msra.mxu0 0.0
    %267 = vmatprep.subr.mxu0 0.0
    %268 = vmatpush1.msra.mxu0 0.0
    %269 = vmatprep.subr.mxu0 0.0
    %270 = vmatpush1.msra.mxu0 0.0
    %271 = vmatprep.subr.mxu0 0.0
    %272 = vmatpush1.msra.mxu0 0.0
    %273 = vmatprep.subr.mxu0 0.0
    %274 = vmatpush1.msra.mxu0 0.0
    %275 = vmatprep.subr.mxu0 0.0
    %276 = vmatpush1.msra.mxu0 0.0
    %277 = vmatprep.mubr.f32.mxu0 0.0
    %278 = vmatmul.mubr.f32.gmra.mrb[0].mxu0 %v211
    %v279 = vpop.f32.mrb[0].mxu0
    %v280 = vadd.f32 0.0, %v279
    %v281 = vpop.f32.mrb[0].mxu0
    %v282 = vadd.f32 0.0, %v281
    %283 = vdwg.mxu0
    %v284 = vld [vmem:[#allocation2] sm:$0x3]
    %v285 = vadd.f32 %v280, %v284
    %v286 = vld [vmem:[#allocation2 + $0x18] sm:$0xc0]
    %v288 = vrot.slane %v286, 4
    %v290 = vadd.f32 %v282, %v288
    %vm291 = vcmask 1041408
    %v292 = vsel %vm291, %v285, %v290
    %v293 = vxor.u32 %v292, 2147483648
    %v294 = vmul.f32 %v293, 1.442695
    %v295 = vpow.pop %v294
    %v296 = vadd.f32 %v295, 1.0
    %v297 = vrcp.pop %v296
    %v298 = vmul.f32 1.0, %v297
    %v299 = vtanh.pop %v292
    %v300 = vmul.f32 %v298, 0.0
    %302 = vrot.lane.b32.xlu0 %v299, 64
    %v303 = vpop.permute.xlu0 %302
    %v305 = vmul.f32 %v298, %v303
    %307 = vrot.lane.b32.xlu0 %v305, 32
    %v308 = vpop.permute.xlu0 %307
    %v310 = vadd.f32 %v300, %v308
    %v311 = vtanh.pop %v310
    %313 = vrot.lane.b32.xlu0 %v311, 64
    %v314 = vpop.permute.xlu0 %313
    %v316 = vmul.f32 %v298, %v314
    %318 = vrot.lane.b32.xlu0 %v316, 32
    %v319 = vpop.permute.xlu0 %318
    %vm321 = vcmask 254976
    %322 = vst.msk [vmem:[#allocation3] sm:$0x3] %vm321, %v319
    %323 = vrot.lane.b32.xlu0 %v316, 64
    %v324 = vpop.permute.xlu0 %323
    %vm326 = vcmask 519426
    %327 = vst.msk [vmem:[#allocation3 + $0xc] sm:$0xc] %vm326, %v324
    %v328 = vsel %vm209, %v319, 0
    %330 = vmatprep.subr.mxu0 %v202
    %331 = vmatpush1.msra.mxu0 %v201
    %332 = vmatprep.subr.mxu0 %v204
    %333 = vmatpush1.msra.mxu0 %v203
    %334 = vmatprep.subr.mxu0 %v206
    %335 = vmatpush1.msra.mxu0 %v205
    %336 = vmatprep.subr.mxu0 %v208
    %337 = vmatpush1.msra.mxu0 %v207
    %338 = vmatprep.subr.mxu0 0.0
    %339 = vmatpush1.msra.mxu0 0.0
    %340 = vmatprep.subr.mxu0 0.0
    %341 = vmatpush1.msra.mxu0 0.0
    %342 = vmatprep.subr.mxu0 0.0
    %343 = vmatpush1.msra.mxu0 0.0
    %344 = vmatprep.subr.mxu0 0.0
    %345 = vmatpush1.msra.mxu0 0.0
    %346 = vmatprep.subr.mxu0 0.0
    %347 = vmatpush1.msra.mxu0 0.0
    %348 = vmatprep.subr.mxu0 0.0
    %349 = vmatpush1.msra.mxu0 0.0
    %350 = vmatprep.subr.mxu0 0.0
    %351 = vmatpush1.msra.mxu0 0.0
    %352 = vmatprep.subr.mxu0 0.0
    %353 = vmatpush1.msra.mxu0 0.0
    %354 = vmatprep.subr.mxu0 0.0
    %355 = vmatpush1.msra.mxu0 0.0
    %356 = vmatprep.subr.mxu0 0.0
    %357 = vmatpush1.msra.mxu0 0.0
    %358 = vmatprep.subr.mxu0 0.0
    %359 = vmatpush1.msra.mxu0 0.0
    %360 = vmatprep.subr.mxu0 0.0
    %361 = vmatpush1.msra.mxu0 0.0
    %362 = vmatprep.subr.mxu0 0.0
    %363 = vmatpush1.msra.mxu0 0.0
    %364 = vmatprep.subr.mxu0 0.0
    %365 = vmatpush1.msra.mxu0 0.0
    %366 = vmatprep.subr.mxu0 0.0
    %367 = vmatpush1.msra.mxu0 0.0
    %368 = vmatprep.subr.mxu0 0.0
    %369 = vmatpush1.msra.mxu0 0.0
    %370 = vmatprep.subr.mxu0 0.0
    %371 = vmatpush1.msra.mxu0 0.0
    %372 = vmatprep.subr.mxu0 0.0
    %373 = vmatpush1.msra.mxu0 0.0
    %374 = vmatprep.subr.mxu0 0.0
    %375 = vmatpush1.msra.mxu0 0.0
    %376 = vmatprep.subr.mxu0 0.0
    %377 = vmatpush1.msra.mxu0 0.0
    %378 = vmatprep.subr.mxu0 0.0
    %379 = vmatpush1.msra.mxu0 0.0
    %380 = vmatprep.subr.mxu0 0.0
    %381 = vmatpush1.msra.mxu0 0.0
    %382 = vmatprep.subr.mxu0 0.0
    %383 = vmatpush1.msra.mxu0 0.0
    %384 = vmatprep.subr.mxu0 0.0
    %385 = vmatpush1.msra.mxu0 0.0
    %386 = vmatprep.subr.mxu0 0.0
    %387 = vmatpush1.msra.mxu0 0.0
    %388 = vmatprep.subr.mxu0 0.0
    %389 = vmatpush1.msra.mxu0 0.0
    %390 = vmatprep.subr.mxu0 0.0
    %391 = vmatpush1.msra.mxu0 0.0
    %392 = vmatprep.subr.mxu0 0.0
    %393 = vmatpush1.msra.mxu0 0.0
    %394 = vmatprep.mubr.f32.mxu0 0.0
    %395 = vmatmul.mubr.f32.gmra.mrb[0].mxu0 %v328
    %v396 = vpop.f32.mrb[0].mxu0
    %v397 = vadd.f32 0.0, %v396
    %v398 = vpop.f32.mrb[0].mxu0
    %v399 = vadd.f32 0.0, %v398
    %400 = vdwg.mxu0
    %v401 = vld [vmem:[#allocation2] sm:$0xc]
    %v403 = vrot.slane %v401, 2
    %v405 = vadd.f32 %v397, %v403
    %v406 = vld [vmem:[#allocation2 + $0x18] sm:$0x30]
    %v408 = vrot.slane %v406, 2
    %v410 = vadd.f32 %v399, %v408
    %v411 = vsel %vm291, %v405, %v410
    %v412 = vxor.u32 %v411, 2147483648
    %v413 = vmul.f32 %v412, 1.442695
    %v414 = vpow.pop %v413
    %v415 = vadd.f32 %v414, 1.0
    %v416 = vrcp.pop %v415
    %v417 = vmul.f32 1.0, %v416
    %v418 = vtanh.pop %v411
    %v419 = vmul.f32 %v417, %v310
    %421 = vrot.lane.b32.xlu0 %v418, 64
    %v422 = vpop.permute.xlu0 %421
    %v424 = vmul.f32 %v417, %v422
    %426 = vrot.lane.b32.xlu0 %v424, 32
    %v427 = vpop.permute.xlu0 %426
    %v429 = vadd.f32 %v419, %v427
    %v430 = vtanh.pop %v429
    %432 = vrot.lane.b32.xlu0 %v430, 64
    %v433 = vpop.permute.xlu0 %432
    %v435 = vmul.f32 %v417, %v433
    %437 = vrot.lane.b32.xlu0 %v435, 32
    %v438 = vpop.permute.xlu0 %437
    %440 = vst.msk [vmem:[#allocation3 + $0x2] sm:$0x3] %vm321, %v438
    %441 = vrot.lane.b32.xlu0 %v435, 64
    %v442 = vpop.permute.xlu0 %441
    %444 = vst.msk [vmem:[#allocation3 + $0xa] sm:$0xc] %vm326, %v442
    %v445 = vsel %vm209, %v438, 0
    %447 = vmatprep.subr.mxu0 %v202
    %448 = vmatpush1.msra.mxu0 %v201
    %449 = vmatprep.subr.mxu0 %v204
    %450 = vmatpush1.msra.mxu0 %v203
    %451 = vmatprep.subr.mxu0 %v206
    %452 = vmatpush1.msra.mxu0 %v205
    %453 = vmatprep.subr.mxu0 %v208
    %454 = vmatpush1.msra.mxu0 %v207
    %455 = vmatprep.subr.mxu0 0.0
    %456 = vmatpush1.msra.mxu0 0.0
    %457 = vmatprep.subr.mxu0 0.0
    %458 = vmatpush1.msra.mxu0 0.0
    %459 = vmatprep.subr.mxu0 0.0
    %460 = vmatpush1.msra.mxu0 0.0
    %461 = vmatprep.subr.mxu0 0.0
    %462 = vmatpush1.msra.mxu0 0.0
    %463 = vmatprep.subr.mxu0 0.0
    %464 = vmatpush1.msra.mxu0 0.0
    %465 = vmatprep.subr.mxu0 0.0
    %466 = vmatpush1.msra.mxu0 0.0
    %467 = vmatprep.subr.mxu0 0.0
    %468 = vmatpush1.msra.mxu0 0.0
    %469 = vmatprep.subr.mxu0 0.0
    %470 = vmatpush1.msra.mxu0 0.0
    %471 = vmatprep.subr.mxu0 0.0
    %472 = vmatpush1.msra.mxu0 0.0
    %473 = vmatprep.subr.mxu0 0.0
    %474 = vmatpush1.msra.mxu0 0.0
    %475 = vmatprep.subr.mxu0 0.0
    %476 = vmatpush1.msra.mxu0 0.0
    %477 = vmatprep.subr.mxu0 0.0
    %478 = vmatpush1.msra.mxu0 0.0
    %479 = vmatprep.subr.mxu0 0.0
    %480 = vmatpush1.msra.mxu0 0.0
    %481 = vmatprep.subr.mxu0 0.0
    %482 = vmatpush1.msra.mxu0 0.0
    %483 = vmatprep.subr.mxu0 0.0
    %484 = vmatpush1.msra.mxu0 0.0
    %485 = vmatprep.subr.mxu0 0.0
    %486 = vmatpush1.msra.mxu0 0.0
    %487 = vmatprep.subr.mxu0 0.0
    %488 = vmatpush1.msra.mxu0 0.0
    %489 = vmatprep.subr.mxu0 0.0
    %490 = vmatpush1.msra.mxu0 0.0
    %491 = vmatprep.subr.mxu0 0.0
    %492 = vmatpush1.msra.mxu0 0.0
    %493 = vmatprep.subr.mxu0 0.0
    %494 = vmatpush1.msra.mxu0 0.0
    %495 = vmatprep.subr.mxu0 0.0
    %496 = vmatpush1.msra.mxu0 0.0
    %497 = vmatprep.subr.mxu0 0.0
    %498 = vmatpush1.msra.mxu0 0.0
    %499 = vmatprep.subr.mxu0 0.0
    %500 = vmatpush1.msra.mxu0 0.0
    %501 = vmatprep.subr.mxu0 0.0
    %502 = vmatpush1.msra.mxu0 0.0
    %503 = vmatprep.subr.mxu0 0.0
    %504 = vmatpush1.msra.mxu0 0.0
    %505 = vmatprep.subr.mxu0 0.0
    %506 = vmatpush1.msra.mxu0 0.0
    %507 = vmatprep.subr.mxu0 0.0
    %508 = vmatpush1.msra.mxu0 0.0
    %509 = vmatprep.subr.mxu0 0.0
    %510 = vmatpush1.msra.mxu0 0.0
    %511 = vmatprep.mubr.f32.mxu0 0.0
    %512 = vmatmul.mubr.f32.gmra.mrb[0].mxu0 %v445
    %v513 = vpop.f32.mrb[0].mxu0
    %v514 = vadd.f32 0.0, %v513
    %v515 = vpop.f32.mrb[0].mxu0
    %v516 = vadd.f32 0.0, %v515
    %517 = vdwg.mxu0
    %v518 = vld [vmem:[#allocation2] sm:$0x30]
    %v520 = vrot.slane %v518, 4
    %v522 = vadd.f32 %v514, %v520
    %v523 = vld [vmem:[#allocation2 + $0x18] sm:$0xc]
    %v524 = vadd.f32 %v516, %v523
    %v525 = vsel %vm291, %v522, %v524
    %v526 = vxor.u32 %v525, 2147483648
    %v527 = vmul.f32 %v526, 1.442695
    %v528 = vpow.pop %v527
    %v529 = vadd.f32 %v528, 1.0
    %v530 = vrcp.pop %v529
    %v531 = vmul.f32 1.0, %v530
    %v532 = vtanh.pop %v525
    %v533 = vmul.f32 %v531, %v429
    %535 = vrot.lane.b32.xlu0 %v532, 64
    %v536 = vpop.permute.xlu0 %535
    %v538 = vmul.f32 %v531, %v536
    %540 = vrot.lane.b32.xlu0 %v538, 32
    %v541 = vpop.permute.xlu0 %540
    %v543 = vadd.f32 %v533, %v541
    %v544 = vtanh.pop %v543
    %546 = vrot.lane.b32.xlu0 %v544, 64
    %v547 = vpop.permute.xlu0 %546
    %v549 = vmul.f32 %v531, %v547
    %551 = vrot.lane.b32.xlu0 %v549, 32
    %v552 = vpop.permute.xlu0 %551
    %554 = vst.msk [vmem:[#allocation3 + $0x4] sm:$0x3] %vm321, %v552
    %555 = vrot.lane.b32.xlu0 %v549, 64
    %v556 = vpop.permute.xlu0 %555
    %558 = vst.msk [vmem:[#allocation3 + $0x8] sm:$0xc] %vm326, %v556
    %v559 = vsel %vm209, %v552, 0
    %561 = vmatprep.subr.mxu0 %v202
    %562 = vmatpush1.msra.mxu0 %v201
    %563 = vmatprep.subr.mxu0 %v204
    %564 = vmatpush1.msra.mxu0 %v203
    %565 = vmatprep.subr.mxu0 %v206
    %566 = vmatpush1.msra.mxu0 %v205
    %567 = vmatprep.subr.mxu0 %v208
    %568 = vmatpush1.msra.mxu0 %v207
    %569 = vmatprep.subr.mxu0 0.0
    %570 = vmatpush1.msra.mxu0 0.0
    %571 = vmatprep.subr.mxu0 0.0
    %572 = vmatpush1.msra.mxu0 0.0
    %573 = vmatprep.subr.mxu0 0.0
    %574 = vmatpush1.msra.mxu0 0.0
    %575 = vmatprep.subr.mxu0 0.0
    %576 = vmatpush1.msra.mxu0 0.0
    %577 = vmatprep.subr.mxu0 0.0
    %578 = vmatpush1.msra.mxu0 0.0
    %579 = vmatprep.subr.mxu0 0.0
    %580 = vmatpush1.msra.mxu0 0.0
    %581 = vmatprep.subr.mxu0 0.0
    %582 = vmatpush1.msra.mxu0 0.0
    %583 = vmatprep.subr.mxu0 0.0
    %584 = vmatpush1.msra.mxu0 0.0
    %585 = vmatprep.subr.mxu0 0.0
    %586 = vmatpush1.msra.mxu0 0.0
    %587 = vmatprep.subr.mxu0 0.0
    %588 = vmatpush1.msra.mxu0 0.0
    %589 = vmatprep.subr.mxu0 0.0
    %590 = vmatpush1.msra.mxu0 0.0
    %591 = vmatprep.subr.mxu0 0.0
    %592 = vmatpush1.msra.mxu0 0.0
    %593 = vmatprep.subr.mxu0 0.0
    %594 = vmatpush1.msra.mxu0 0.0
    %595 = vmatprep.subr.mxu0 0.0
    %596 = vmatpush1.msra.mxu0 0.0
    %597 = vmatprep.subr.mxu0 0.0
    %598 = vmatpush1.msra.mxu0 0.0
    %599 = vmatprep.subr.mxu0 0.0
    %600 = vmatpush1.msra.mxu0 0.0
    %601 = vmatprep.subr.mxu0 0.0
    %602 = vmatpush1.msra.mxu0 0.0
    %603 = vmatprep.subr.mxu0 0.0
    %604 = vmatpush1.msra.mxu0 0.0
    %605 = vmatprep.subr.mxu0 0.0
    %606 = vmatpush1.msra.mxu0 0.0
    %607 = vmatprep.subr.mxu0 0.0
    %608 = vmatpush1.msra.mxu0 0.0
    %609 = vmatprep.subr.mxu0 0.0
    %610 = vmatpush1.msra.mxu0 0.0
    %611 = vmatprep.subr.mxu0 0.0
    %612 = vmatpush1.msra.mxu0 0.0
    %613 = vmatprep.subr.mxu0 0.0
    %614 = vmatpush1.msra.mxu0 0.0
    %615 = vmatprep.subr.mxu0 0.0
    %616 = vmatpush1.msra.mxu0 0.0
    %617 = vmatprep.subr.mxu0 0.0
    %618 = vmatpush1.msra.mxu0 0.0
    %619 = vmatprep.subr.mxu0 0.0
    %620 = vmatpush1.msra.mxu0 0.0
    %621 = vmatprep.subr.mxu0 0.0
    %622 = vmatpush1.msra.mxu0 0.0
    %623 = vmatprep.subr.mxu0 0.0
    %624 = vmatpush1.msra.mxu0 0.0
    %625 = vmatprep.mubr.f32.mxu0 0.0
    %626 = vmatmul.mubr.f32.gmra.mrb[0].mxu0 %v559
    %v627 = vpop.f32.mrb[0].mxu0
    %v628 = vadd.f32 0.0, %v627
    %v629 = vpop.f32.mrb[0].mxu0
    %v630 = vadd.f32 0.0, %v629
    %631 = vdwg.mxu0
    %v632 = vld [vmem:[#allocation2] sm:$0xc0]
    %v634 = vrot.slane %v632, 6
    %v636 = vadd.f32 %v628, %v634
    %v637 = vld [vmem:[#allocation2 + $0x18] sm:$0x3]
    %v639 = vrot.slane %v637, 6
    %v641 = vadd.f32 %v630, %v639
    %v642 = vsel %vm291, %v636, %v641
    %v643 = vxor.u32 %v642, 2147483648
    %v644 = vmul.f32 %v643, 1.442695
    %v645 = vpow.pop %v644
    %v646 = vadd.f32 %v645, 1.0
    %v647 = vrcp.pop %v646
    %v648 = vmul.f32 1.0, %v647
    %v649 = vtanh.pop %v642
    %v650 = vmul.f32 %v648, %v543
    %652 = vrot.lane.b32.xlu0 %v649, 64
    %v653 = vpop.permute.xlu0 %652
    %v655 = vmul.f32 %v648, %v653
    %657 = vrot.lane.b32.xlu0 %v655, 32
    %v658 = vpop.permute.xlu0 %657
    %v660 = vadd.f32 %v650, %v658
    %v661 = vtanh.pop %v660
    %663 = vrot.lane.b32.xlu0 %v661, 64
    %v664 = vpop.permute.xlu0 %663
    %v666 = vmul.f32 %v648, %v664
    %668 = vrot.lane.b32.xlu0 %v666, 32
    %v669 = vpop.permute.xlu0 %668
    %671 = vst.msk [vmem:[#allocation3 + $0x6] sm:$0x3] %vm321, %v669
    %672 = vrot.lane.b32.xlu0 %v666, 64
    %v673 = vpop.permute.xlu0 %672
    %675 = vst.msk [vmem:[#allocation3 + $0x6] sm:$0xc] %vm326, %v673
    %v676 = vsel %vm209, %v669, 0
    %678 = vmatprep.subr.mxu0 %v202
    %679 = vmatpush1.msra.mxu0 %v201
    %680 = vmatprep.subr.mxu0 %v204
    %681 = vmatpush1.msra.mxu0 %v203
    %682 = vmatprep.subr.mxu0 %v206
    %683 = vmatpush1.msra.mxu0 %v205
    %684 = vmatprep.subr.mxu0 %v208
    %685 = vmatpush1.msra.mxu0 %v207
    %686 = vmatprep.subr.mxu0 0.0
    %687 = vmatpush1.msra.mxu0 0.0
    %688 = vmatprep.subr.mxu0 0.0
    %689 = vmatpush1.msra.mxu0 0.0
    %690 = vmatprep.subr.mxu0 0.0
    %691 = vmatpush1.msra.mxu0 0.0
    %692 = vmatprep.subr.mxu0 0.0
    %693 = vmatpush1.msra.mxu0 0.0
    %694 = vmatprep.subr.mxu0 0.0
    %695 = vmatpush1.msra.mxu0 0.0
    %696 = vmatprep.subr.mxu0 0.0
    %697 = vmatpush1.msra.mxu0 0.0
    %698 = vmatprep.subr.mxu0 0.0
    %699 = vmatpush1.msra.mxu0 0.0
    %700 = vmatprep.subr.mxu0 0.0
    %701 = vmatpush1.msra.mxu0 0.0
    %702 = vmatprep.subr.mxu0 0.0
    %703 = vmatpush1.msra.mxu0 0.0
    %704 = vmatprep.subr.mxu0 0.0
    %705 = vmatpush1.msra.mxu0 0.0
    %706 = vmatprep.subr.mxu0 0.0
    %707 = vmatpush1.msra.mxu0 0.0
    %708 = vmatprep.subr.mxu0 0.0
    %709 = vmatpush1.msra.mxu0 0.0
    %710 = vmatprep.subr.mxu0 0.0
    %711 = vmatpush1.msra.mxu0 0.0
    %712 = vmatprep.subr.mxu0 0.0
    %713 = vmatpush1.msra.mxu0 0.0
    %714 = vmatprep.subr.mxu0 0.0
    %715 = vmatpush1.msra.mxu0 0.0
    %716 = vmatprep.subr.mxu0 0.0
    %717 = vmatpush1.msra.mxu0 0.0
    %718 = vmatprep.subr.mxu0 0.0
    %719 = vmatpush1.msra.mxu0 0.0
    %720 = vmatprep.subr.mxu0 0.0
    %721 = vmatpush1.msra.mxu0 0.0
    %722 = vmatprep.subr.mxu0 0.0
    %723 = vmatpush1.msra.mxu0 0.0
    %724 = vmatprep.subr.mxu0 0.0
    %725 = vmatpush1.msra.mxu0 0.0
    %726 = vmatprep.subr.mxu0 0.0
    %727 = vmatpush1.msra.mxu0 0.0
    %728 = vmatprep.subr.mxu0 0.0
    %729 = vmatpush1.msra.mxu0 0.0
    %730 = vmatprep.subr.mxu0 0.0
    %731 = vmatpush1.msra.mxu0 0.0
    %732 = vmatprep.subr.mxu0 0.0
    %733 = vmatpush1.msra.mxu0 0.0
    %734 = vmatprep.subr.mxu0 0.0
    %735 = vmatpush1.msra.mxu0 0.0
    %736 = vmatprep.subr.mxu0 0.0
    %737 = vmatpush1.msra.mxu0 0.0
    %738 = vmatprep.subr.mxu0 0.0
    %739 = vmatpush1.msra.mxu0 0.0
    %740 = vmatprep.subr.mxu0 0.0
    %741 = vmatpush1.msra.mxu0 0.0
    %742 = vmatprep.mubr.f32.mxu0 0.0
    %743 = vmatmul.mubr.f32.gmra.mrb[0].mxu0 %v676
    %v744 = vpop.f32.mrb[0].mxu0
    %v745 = vadd.f32 0.0, %v744
    %v746 = vpop.f32.mrb[0].mxu0
    %v747 = vadd.f32 0.0, %v746
    %748 = vdwg.mxu0
    %v749 = vld [vmem:[#allocation2 + $0x10] sm:$0x3]
    %v750 = vadd.f32 %v745, %v749
    %v751 = vld [vmem:[#allocation2 + $0x8] sm:$0xc0]
    %v753 = vrot.slane %v751, 4
    %v755 = vadd.f32 %v747, %v753
    %v756 = vsel %vm291, %v750, %v755
    %v757 = vxor.u32 %v756, 2147483648
    %v758 = vmul.f32 %v757, 1.442695
    %v759 = vpow.pop %v758
    %v760 = vadd.f32 %v759, 1.0
    %v761 = vrcp.pop %v760
    %v762 = vmul.f32 1.0, %v761
    %v763 = vtanh.pop %v756
    %v764 = vmul.f32 %v762, %v660
    %766 = vrot.lane.b32.xlu0 %v763, 64
    %v767 = vpop.permute.xlu0 %766
    %v769 = vmul.f32 %v762, %v767
    %771 = vrot.lane.b32.xlu0 %v769, 32
    %v772 = vpop.permute.xlu0 %771
    %v774 = vadd.f32 %v764, %v772
    %v775 = vtanh.pop %v774
    %777 = vrot.lane.b32.xlu0 %v775, 64
    %v778 = vpop.permute.xlu0 %777
    %v780 = vmul.f32 %v762, %v778
    %782 = vrot.lane.b32.xlu0 %v780, 32
    %v783 = vpop.permute.xlu0 %782
    %785 = vst.msk [vmem:[#allocation3 + $0x8] sm:$0x3] %vm321, %v783
    %786 = vrot.lane.b32.xlu0 %v780, 64
    %v787 = vpop.permute.xlu0 %786
    %789 = vst.msk [vmem:[#allocation3 + $0x4] sm:$0xc] %vm326, %v787
    %v790 = vsel %vm209, %v783, 0
    %792 = vmatprep.subr.mxu0 %v202
    %793 = vmatpush1.msra.mxu0 %v201
    %794 = vmatprep.subr.mxu0 %v204
    %795 = vmatpush1.msra.mxu0 %v203
    %796 = vmatprep.subr.mxu0 %v206
    %797 = vmatpush1.msra.mxu0 %v205
    %798 = vmatprep.subr.mxu0 %v208
    %799 = vmatpush1.msra.mxu0 %v207
    %800 = vmatprep.subr.mxu0 0.0
    %801 = vmatpush1.msra.mxu0 0.0
    %802 = vmatprep.subr.mxu0 0.0
    %803 = vmatpush1.msra.mxu0 0.0
    %804 = vmatprep.subr.mxu0 0.0
    %805 = vmatpush1.msra.mxu0 0.0
    %806 = vmatprep.subr.mxu0 0.0
    %807 = vmatpush1.msra.mxu0 0.0
    %808 = vmatprep.subr.mxu0 0.0
    %809 = vmatpush1.msra.mxu0 0.0
    %810 = vmatprep.subr.mxu0 0.0
    %811 = vmatpush1.msra.mxu0 0.0
    %812 = vmatprep.subr.mxu0 0.0
    %813 = vmatpush1.msra.mxu0 0.0
    %814 = vmatprep.subr.mxu0 0.0
    %815 = vmatpush1.msra.mxu0 0.0
    %816 = vmatprep.subr.mxu0 0.0
    %817 = vmatpush1.msra.mxu0 0.0
    %818 = vmatprep.subr.mxu0 0.0
    %819 = vmatpush1.msra.mxu0 0.0
    %820 = vmatprep.subr.mxu0 0.0
    %821 = vmatpush1.msra.mxu0 0.0
    %822 = vmatprep.subr.mxu0 0.0
    %823 = vmatpush1.msra.mxu0 0.0
    %824 = vmatprep.subr.mxu0 0.0
    %825 = vmatpush1.msra.mxu0 0.0
    %826 = vmatprep.subr.mxu0 0.0
    %827 = vmatpush1.msra.mxu0 0.0
    %828 = vmatprep.subr.mxu0 0.0
    %829 = vmatpush1.msra.mxu0 0.0
    %830 = vmatprep.subr.mxu0 0.0
    %831 = vmatpush1.msra.mxu0 0.0
    %832 = vmatprep.subr.mxu0 0.0
    %833 = vmatpush1.msra.mxu0 0.0
    %834 = vmatprep.subr.mxu0 0.0
    %835 = vmatpush1.msra.mxu0 0.0
    %836 = vmatprep.subr.mxu0 0.0
    %837 = vmatpush1.msra.mxu0 0.0
    %838 = vmatprep.subr.mxu0 0.0
    %839 = vmatpush1.msra.mxu0 0.0
    %840 = vmatprep.subr.mxu0 0.0
    %841 = vmatpush1.msra.mxu0 0.0
    %842 = vmatprep.subr.mxu0 0.0
    %843 = vmatpush1.msra.mxu0 0.0
    %844 = vmatprep.subr.mxu0 0.0
    %845 = vmatpush1.msra.mxu0 0.0
    %846 = vmatprep.subr.mxu0 0.0
    %847 = vmatpush1.msra.mxu0 0.0
    %848 = vmatprep.subr.mxu0 0.0
    %849 = vmatpush1.msra.mxu0 0.0
    %850 = vmatprep.subr.mxu0 0.0
    %851 = vmatpush1.msra.mxu0 0.0
    %852 = vmatprep.subr.mxu0 0.0
    %853 = vmatpush1.msra.mxu0 0.0
    %854 = vmatprep.subr.mxu0 0.0
    %855 = vmatpush1.msra.mxu0 0.0
    %856 = vmatprep.mubr.f32.mxu0 0.0
    %857 = vmatmul.mubr.f32.gmra.mrb[0].mxu0 %v790
    %v858 = vpop.f32.mrb[0].mxu0
    %v859 = vadd.f32 0.0, %v858
    %v860 = vpop.f32.mrb[0].mxu0
    %v861 = vadd.f32 0.0, %v860
    %862 = vdwg.mxu0
    %v863 = vld [vmem:[#allocation2 + $0x10] sm:$0xc]
    %v865 = vrot.slane %v863, 2
    %v867 = vadd.f32 %v859, %v865
    %v868 = vld [vmem:[#allocation2 + $0x8] sm:$0x30]
    %v870 = vrot.slane %v868, 2
    %v872 = vadd.f32 %v861, %v870
    %v873 = vsel %vm291, %v867, %v872
    %v874 = vxor.u32 %v873, 2147483648
    %v875 = vmul.f32 %v874, 1.442695
    %v876 = vpow.pop %v875
    %v877 = vadd.f32 %v876, 1.0
    %v878 = vrcp.pop %v877
    %v879 = vmul.f32 1.0, %v878
    %v880 = vtanh.pop %v873
    %v881 = vmul.f32 %v879, %v774
    %883 = vrot.lane.b32.xlu0 %v880, 64
    %v884 = vpop.permute.xlu0 %883
    %v886 = vmul.f32 %v879, %v884
    %888 = vrot.lane.b32.xlu0 %v886, 32
    %v889 = vpop.permute.xlu0 %888
    %v891 = vadd.f32 %v881, %v889
    %v892 = vtanh.pop %v891
    %894 = vrot.lane.b32.xlu0 %v892, 64
    %v895 = vpop.permute.xlu0 %894
    %v897 = vmul.f32 %v879, %v895
    %899 = vrot.lane.b32.xlu0 %v897, 32
    %v900 = vpop.permute.xlu0 %899
    %902 = vst.msk [vmem:[#allocation3 + $0xa] sm:$0x3] %vm321, %v900
    %903 = vrot.lane.b32.xlu0 %v897, 64
    %v904 = vpop.permute.xlu0 %903
    %906 = vst.msk [vmem:[#allocation3 + $0x2] sm:$0xc] %vm326, %v904
    %v907 = vsel %vm209, %v900, 0
    %909 = vmatprep.subr.mxu0 %v202
    %910 = vmatpush1.msra.mxu0 %v201
    %911 = vmatprep.subr.mxu0 %v204
    %912 = vmatpush1.msra.mxu0 %v203
    %913 = vmatprep.subr.mxu0 %v206
    %914 = vmatpush1.msra.mxu0 %v205
    %915 = vmatprep.subr.mxu0 %v208
    %916 = vmatpush1.msra.mxu0 %v207
    %917 = vmatprep.subr.mxu0 0.0
    %918 = vmatpush1.msra.mxu0 0.0
    %919 = vmatprep.subr.mxu0 0.0
    %920 = vmatpush1.msra.mxu0 0.0
    %921 = vmatprep.subr.mxu0 0.0
    %922 = vmatpush1.msra.mxu0 0.0
    %923 = vmatprep.subr.mxu0 0.0
    %924 = vmatpush1.msra.mxu0 0.0
    %925 = vmatprep.subr.mxu0 0.0
    %926 = vmatpush1.msra.mxu0 0.0
    %927 = vmatprep.subr.mxu0 0.0
    %928 = vmatpush1.msra.mxu0 0.0
    %929 = vmatprep.subr.mxu0 0.0
    %930 = vmatpush1.msra.mxu0 0.0
    %931 = vmatprep.subr.mxu0 0.0
    %932 = vmatpush1.msra.mxu0 0.0
    %933 = vmatprep.subr.mxu0 0.0
    %934 = vmatpush1.msra.mxu0 0.0
    %935 = vmatprep.subr.mxu0 0.0
    %936 = vmatpush1.msra.mxu0 0.0
    %937 = vmatprep.subr.mxu0 0.0
    %938 = vmatpush1.msra.mxu0 0.0
    %939 = vmatprep.subr.mxu0 0.0
    %940 = vmatpush1.msra.mxu0 0.0
    %941 = vmatprep.subr.mxu0 0.0
    %942 = vmatpush1.msra.mxu0 0.0
    %943 = vmatprep.subr.mxu0 0.0
    %944 = vmatpush1.msra.mxu0 0.0
    %945 = vmatprep.subr.mxu0 0.0
    %946 = vmatpush1.msra.mxu0 0.0
    %947 = vmatprep.subr.mxu0 0.0
    %948 = vmatpush1.msra.mxu0 0.0
    %949 = vmatprep.subr.mxu0 0.0
    %950 = vmatpush1.msra.mxu0 0.0
    %951 = vmatprep.subr.mxu0 0.0
    %952 = vmatpush1.msra.mxu0 0.0
    %953 = vmatprep.subr.mxu0 0.0
    %954 = vmatpush1.msra.mxu0 0.0
    %955 = vmatprep.subr.mxu0 0.0
    %956 = vmatpush1.msra.mxu0 0.0
    %957 = vmatprep.subr.mxu0 0.0
    %958 = vmatpush1.msra.mxu0 0.0
    %959 = vmatprep.subr.mxu0 0.0
    %960 = vmatpush1.msra.mxu0 0.0
    %961 = vmatprep.subr.mxu0 0.0
    %962 = vmatpush1.msra.mxu0 0.0
    %963 = vmatprep.subr.mxu0 0.0
    %964 = vmatpush1.msra.mxu0 0.0
    %965 = vmatprep.subr.mxu0 0.0
    %966 = vmatpush1.msra.mxu0 0.0
    %967 = vmatprep.subr.mxu0 0.0
    %968 = vmatpush1.msra.mxu0 0.0
    %969 = vmatprep.subr.mxu0 0.0
    %970 = vmatpush1.msra.mxu0 0.0
    %971 = vmatprep.subr.mxu0 0.0
    %972 = vmatpush1.msra.mxu0 0.0
    %973 = vmatprep.mubr.f32.mxu0 0.0
    %974 = vmatmul.mubr.f32.gmra.mrb[0].mxu0 %v907
    %v975 = vpop.f32.mrb[0].mxu0
    %v976 = vadd.f32 0.0, %v975
    %v977 = vpop.f32.mrb[0].mxu0
    %v978 = vadd.f32 0.0, %v977
    %979 = vdwg.mxu0
    %v980 = vld [vmem:[#allocation2 + $0x10] sm:$0x30]
    %v982 = vrot.slane %v980, 4
    %v984 = vadd.f32 %v976, %v982
    %v985 = vld [vmem:[#allocation2 + $0x8] sm:$0xc]
    %v986 = vadd.f32 %v978, %v985
    %v987 = vsel %vm291, %v984, %v986
    %v988 = vxor.u32 %v987, 2147483648
    %v989 = vmul.f32 %v988, 1.442695
    %v990 = vpow.pop %v989
    %v991 = vadd.f32 %v990, 1.0
    %v992 = vrcp.pop %v991
    %v993 = vmul.f32 1.0, %v992
    %v994 = vtanh.pop %v987
    %v995 = vmul.f32 %v993, %v891
    %997 = vrot.lane.b32.xlu0 %v994, 64
    %v998 = vpop.permute.xlu0 %997
    %v1000 = vmul.f32 %v993, %v998
    %1002 = vrot.lane.b32.xlu0 %v1000, 32
    %v1003 = vpop.permute.xlu0 %1002
    %v1005 = vadd.f32 %v995, %v1003
    %v1006 = vtanh.pop %v1005
    %1008 = vrot.lane.b32.xlu0 %v1006, 64
    %v1009 = vpop.permute.xlu0 %1008
    %v1011 = vmul.f32 %v993, %v1009
    %1013 = vrot.lane.b32.xlu0 %v1011, 32
    %v1014 = vpop.permute.xlu0 %1013
    %1016 = vst.msk [vmem:[#allocation3 + $0xc] sm:$0x3] %vm321, %v1014
    %1017 = vrot.lane.b32.xlu0 %v1011, 64
    %v1018 = vpop.permute.xlu0 %1017
    %1020 = vst.msk [vmem:[#allocation3] sm:$0xc] %vm326, %v1018
    %v1021 = vsel %vm209, %v1014, 0
    %1023 = vmatprep.subr.mxu0 %v202
    %1024 = vmatpush1.msra.mxu0 %v201
    %1025 = vmatprep.subr.mxu0 %v204
    %1026 = vmatpush1.msra.mxu0 %v203
    %1027 = vmatprep.subr.mxu0 %v206
    %1028 = vmatpush1.msra.mxu0 %v205
    %1029 = vmatprep.subr.mxu0 %v208
    %1030 = vmatpush1.msra.mxu0 %v207
    %1031 = vmatprep.subr.mxu0 0.0
    %1032 = vmatpush1.msra.mxu0 0.0
    %1033 = vmatprep.subr.mxu0 0.0
    %1034 = vmatpush1.msra.mxu0 0.0
    %1035 = vmatprep.subr.mxu0 0.0
    %1036 = vmatpush1.msra.mxu0 0.0
    %1037 = vmatprep.subr.mxu0 0.0
    %1038 = vmatpush1.msra.mxu0 0.0
    %1039 = vmatprep.subr.mxu0 0.0
    %1040 = vmatpush1.msra.mxu0 0.0
    %1041 = vmatprep.subr.mxu0 0.0
    %1042 = vmatpush1.msra.mxu0 0.0
    %1043 = vmatprep.subr.mxu0 0.0
    %1044 = vmatpush1.msra.mxu0 0.0
    %1045 = vmatprep.subr.mxu0 0.0
    %1046 = vmatpush1.msra.mxu0 0.0
    %1047 = vmatprep.subr.mxu0 0.0
    %1048 = vmatpush1.msra.mxu0 0.0
    %1049 = vmatprep.subr.mxu0 0.0
    %1050 = vmatpush1.msra.mxu0 0.0
    %1051 = vmatprep.subr.mxu0 0.0
    %1052 = vmatpush1.msra.mxu0 0.0
    %1053 = vmatprep.subr.mxu0 0.0
    %1054 = vmatpush1.msra.mxu0 0.0
    %1055 = vmatprep.subr.mxu0 0.0
    %1056 = vmatpush1.msra.mxu0 0.0
    %1057 = vmatprep.subr.mxu0 0.0
    %1058 = vmatpush1.msra.mxu0 0.0
    %1059 = vmatprep.subr.mxu0 0.0
    %1060 = vmatpush1.msra.mxu0 0.0
    %1061 = vmatprep.subr.mxu0 0.0
    %1062 = vmatpush1.msra.mxu0 0.0
    %1063 = vmatprep.subr.mxu0 0.0
    %1064 = vmatpush1.msra.mxu0 0.0
    %1065 = vmatprep.subr.mxu0 0.0
    %1066 = vmatpush1.msra.mxu0 0.0
    %1067 = vmatprep.subr.mxu0 0.0
    %1068 = vmatpush1.msra.mxu0 0.0
    %1069 = vmatprep.subr.mxu0 0.0
    %1070 = vmatpush1.msra.mxu0 0.0
    %1071 = vmatprep.subr.mxu0 0.0
    %1072 = vmatpush1.msra.mxu0 0.0
    %1073 = vmatprep.subr.mxu0 0.0
    %1074 = vmatpush1.msra.mxu0 0.0
    %1075 = vmatprep.subr.mxu0 0.0
    %1076 = vmatpush1.msra.mxu0 0.0
    %1077 = vmatprep.subr.mxu0 0.0
    %1078 = vmatpush1.msra.mxu0 0.0
    %1079 = vmatprep.subr.mxu0 0.0
    %1080 = vmatpush1.msra.mxu0 0.0
    %1081 = vmatprep.subr.mxu0 0.0
    %1082 = vmatpush1.msra.mxu0 0.0
    %1083 = vmatprep.subr.mxu0 0.0
    %1084 = vmatpush1.msra.mxu0 0.0
    %1085 = vmatprep.subr.mxu0 0.0
    %1086 = vmatpush1.msra.mxu0 0.0
    %1087 = vmatprep.mubr.f32.mxu0 0.0
    %1088 = vmatmul.mubr.f32.gmra.mrb[0].mxu0 %v1021
    %v1089 = vpop.f32.mrb[0].mxu0
    %v1090 = vadd.f32 0.0, %v1089
    %v1091 = vpop.f32.mrb[0].mxu0
    %v1092 = vadd.f32 0.0, %v1091
    %1093 = vdwg.mxu0
    %v1094 = vld [vmem:[#allocation2 + $0x10] sm:$0xc0]
    %v1096 = vrot.slane %v1094, 6
    %v1098 = vadd.f32 %v1090, %v1096
    %v1099 = vld [vmem:[#allocation2 + $0x8] sm:$0x3]
    %v1101 = vrot.slane %v1099, 6
    %v1103 = vadd.f32 %v1092, %v1101
    %v1104 = vsel %vm291, %v1098, %v1103
    %v1105 = vxor.u32 %v1104, 2147483648
    %v1106 = vmul.f32 %v1105, 1.442695
    %v1107 = vpow.pop %v1106
    %v1108 = vadd.f32 %v1107, 1.0
    %v1109 = vrcp.pop %v1108
    %v1110 = vmul.f32 1.0, %v1109
    %v1111 = vtanh.pop %v1104
    %v1112 = vmul.f32 %v1110, %v1005
    %1114 = vrot.lane.b32.xlu0 %v1111, 64
    %v1115 = vpop.permute.xlu0 %1114
    %v1117 = vmul.f32 %v1110, %v1115
    %1119 = vrot.lane.b32.xlu0 %v1117, 32
    %v1120 = vpop.permute.xlu0 %1119
    %v1122 = vadd.f32 %v1112, %v1120
    %v1123 = vtanh.pop %v1122
    %1125 = vrot.lane.b32.xlu0 %v1123, 64
    %v1126 = vpop.permute.xlu0 %1125
    %v1128 = vmul.f32 %v1110, %v1126
    %1130 = vrot.lane.b32.xlu0 %v1128, 32
    %v1131 = vpop.permute.xlu0 %1130
    %1133 = vst.msk [vmem:[#allocation3 + $0xe] sm:$0x3] %vm321, %v1131
    %1134 = vrot.lane.b32.xlu0 %v1128, 64
    %v1135 = vpop.permute.xlu0 %1134
    %1137 = vst.msk [vmem:[#allocation3 - $0x2] sm:$0xc] %vm326, %v1135
    %v1138 = vld [vmem:[#allocation3] sm:$0xff]
    %v1139 = vld [vmem:[#allocation3 + $0x8] sm:$0xff]
    %v1140 = vld [vmem:[#allocation10] sm:$0xff]
    %v1141 = vld [vmem:[#allocation10 + $0x8] sm:$0xff]
    %v1142 = vld [vmem:[#allocation10 + $0x10] sm:$0xff]
    %v1143 = vld [vmem:[#allocation10 + $0x18] sm:$0xff]
    %v1144 = vld [vmem:[#allocation10 + $0x20] sm:$0xff]
    %v1145 = vld [vmem:[#allocation10 + $0x28] sm:$0xff]
    %v1146 = vld [vmem:[#allocation10 + $0x30] sm:$0xff]
    %v1147 = vld [vmem:[#allocation10 + $0x38] sm:$0xff]
    %v1148 = vld [vmem:[#allocation10 + $0x40] sm:$0xff]
    %v1149 = vld [vmem:[#allocation10 + $0x48] sm:$0xff]
    %v1150 = vld [vmem:[#allocation10 + $0x50] sm:$0xff]
    %v1151 = vld [vmem:[#allocation10 + $0x58] sm:$0xff]
    %v1152 = vld [vmem:[#allocation10 + $0x60] sm:$0xff]
    %v1153 = vld [vmem:[#allocation10 + $0x68] sm:$0xff]
    %v1154 = vld [vmem:[#allocation10 + $0x70] sm:$0xff]
    %v1155 = vld [vmem:[#allocation10 + $0x78] sm:$0xff]
    %v1156 = vld [vmem:[%s6] sm:$0x3]
    %v1158 = vlaneseq
    %v1159 = vshrl.u32 %v1158, 7
    %v1160 = vsub.s32 0, %v1159
    %v1161 = vrot.slane %v1156, %v1160
    %v1162 = vlaneseq
    %v1163 = vshrl.u32 %v1162, 7
    %v1164 = vsub.s32 1, %v1163
    %v1165 = vrot.slane %v1156, %v1164
    %vm1168 = vcmask 523264
    %v1170 = vsel %vm1168, %v1138, 0
    %v1173 = vsel %vm1168, %v1139, 0
    %1175 = vmatprep.subr.mxu0 %v1141
    %1176 = vmatpush1.msra.mxu0 %v1140
    %1177 = vmatprep.subr.mxu0 %v1143
    %1178 = vmatpush1.msra.mxu0 %v1142
    %1179 = vmatprep.subr.mxu0 %v1145
    %1180 = vmatpush1.msra.mxu0 %v1144
    %1181 = vmatprep.subr.mxu0 %v1147
    %1182 = vmatpush1.msra.mxu0 %v1146
    %1183 = vmatprep.subr.mxu0 %v1149
    %1184 = vmatpush1.msra.mxu0 %v1148
    %1185 = vmatprep.subr.mxu0 %v1151
    %1186 = vmatpush1.msra.mxu0 %v1150
    %1187 = vmatprep.subr.mxu0 %v1153
    %1188 = vmatpush1.msra.mxu0 %v1152
    %1189 = vmatprep.subr.mxu0 %v1155
    %1190 = vmatpush1.msra.mxu0 %v1154
    %1191 = vmatprep.subr.mxu0 0.0
    %1192 = vmatpush1.msra.mxu0 0.0
    %1193 = vmatprep.subr.mxu0 0.0
    %1194 = vmatpush1.msra.mxu0 0.0
    %1195 = vmatprep.subr.mxu0 0.0
    %1196 = vmatpush1.msra.mxu0 0.0
    %1197 = vmatprep.subr.mxu0 0.0
    %1198 = vmatpush1.msra.mxu0 0.0
    %1199 = vmatprep.subr.mxu0 0.0
    %1200 = vmatpush1.msra.mxu0 0.0
    %1201 = vmatprep.subr.mxu0 0.0
    %1202 = vmatpush1.msra.mxu0 0.0
    %1203 = vmatprep.subr.mxu0 0.0
    %1204 = vmatpush1.msra.mxu0 0.0
    %1205 = vmatprep.subr.mxu0 0.0
    %1206 = vmatpush1.msra.mxu0 0.0
    %1207 = vmatprep.subr.mxu0 0.0
    %1208 = vmatpush1.msra.mxu0 0.0
    %1209 = vmatprep.subr.mxu0 0.0
    %1210 = vmatpush1.msra.mxu0 0.0
    %1211 = vmatprep.subr.mxu0 0.0
    %1212 = vmatpush1.msra.mxu0 0.0
    %1213 = vmatprep.subr.mxu0 0.0
    %1214 = vmatpush1.msra.mxu0 0.0
    %1215 = vmatprep.subr.mxu0 0.0
    %1216 = vmatpush1.msra.mxu0 0.0
    %1217 = vmatprep.subr.mxu0 0.0
    %1218 = vmatpush1.msra.mxu0 0.0
    %1219 = vmatprep.subr.mxu0 0.0
    %1220 = vmatpush1.msra.mxu0 0.0
    %1221 = vmatprep.subr.mxu0 0.0
    %1222 = vmatpush1.msra.mxu0 0.0
    %1223 = vmatprep.subr.mxu0 0.0
    %1224 = vmatpush1.msra.mxu0 0.0
    %1225 = vmatprep.subr.mxu0 0.0
    %1226 = vmatpush1.msra.mxu0 0.0
    %1227 = vmatprep.subr.mxu0 0.0
    %1228 = vmatpush1.msra.mxu0 0.0
    %1229 = vmatprep.subr.mxu0 0.0
    %1230 = vmatpush1.msra.mxu0 0.0
    %1231 = vmatprep.subr.mxu0 0.0
    %1232 = vmatpush1.msra.mxu0 0.0
    %1233 = vmatprep.subr.mxu0 0.0
    %1234 = vmatpush1.msra.mxu0 0.0
    %1235 = vmatprep.subr.mxu0 0.0
    %1236 = vmatpush1.msra.mxu0 0.0
    %1237 = vmatprep.subr.mxu0 0.0
    %1238 = vmatpush1.msra.mxu0 0.0
    %1239 = vmatprep.mubr.f32.mxu0 0.0
    %1240 = vmatmul.mubr.f32.gmra.mrb[0].mxu0 %v1170
    %v1241 = vpop.f32.mrb[0].mxu0
    %v1242 = vadd.f32 %v1161, %v1241
    %v1243 = vpop.f32.mrb[0].mxu0
    %v1244 = vadd.f32 %v1165, %v1243
    %1245 = vmatprep.mubr.f32.mxu0 0.0
    %1246 = vmatmul.mubr.f32.gmra.mrb[0].mxu0 %v1173
    %v1247 = vpop.f32.mrb[0].mxu0
    %v1248 = vadd.f32 %v1161, %v1247
    %v1249 = vpop.f32.mrb[0].mxu0
    %v1250 = vadd.f32 %v1165, %v1249
    %1251 = vdwg.mxu0
    %1252 = vst [vmem:[#allocation2] sm:$0xff] %v1242
    %1253 = vst [vmem:[#allocation2 + $0x8] sm:$0xff] %v1244
    %1254 = vst [vmem:[#allocation2 + $0x10] sm:$0xff] %v1248
    %1255 = vst [vmem:[#allocation2 + $0x18] sm:$0xff] %v1250
    %v1256 = vld [vmem:[#allocation12] sm:$0xff]
    %v1257 = vld [vmem:[#allocation12 + $0x8] sm:$0xff]
    %v1258 = vld [vmem:[#allocation12 + $0x10] sm:$0xff]
    %v1259 = vld [vmem:[#allocation12 + $0x18] sm:$0xff]
    %v1260 = vld [vmem:[#allocation12 + $0x20] sm:$0xff]
    %v1261 = vld [vmem:[#allocation12 + $0x28] sm:$0xff]
    %v1262 = vld [vmem:[#allocation12 + $0x30] sm:$0xff]
    %v1263 = vld [vmem:[#allocation12 + $0x38] sm:$0xff]
    %1264 = vmatprep.subr.mxu0 %v1257
    %1265 = vmatpush1.msra.mxu0 %v1256
    %1266 = vmatprep.subr.mxu0 %v1259
    %1267 = vmatpush1.msra.mxu0 %v1258
    %1268 = vmatprep.subr.mxu0 %v1261
    %1269 = vmatpush1.msra.mxu0 %v1260
    %1270 = vmatprep.subr.mxu0 %v1263
    %1271 = vmatpush1.msra.mxu0 %v1262
    %1272 = vmatprep.subr.mxu0 0.0
    %1273 = vmatpush1.msra.mxu0 0.0
    %1274 = vmatprep.subr.mxu0 0.0
    %1275 = vmatpush1.msra.mxu0 0.0
    %1276 = vmatprep.subr.mxu0 0.0
    %1277 = vmatpush1.msra.mxu0 0.0
    %1278 = vmatprep.subr.mxu0 0.0
    %1279 = vmatpush1.msra.mxu0 0.0
    %1280 = vmatprep.subr.mxu0 0.0
    %1281 = vmatpush1.msra.mxu0 0.0
    %1282 = vmatprep.subr.mxu0 0.0
    %1283 = vmatpush1.msra.mxu0 0.0
    %1284 = vmatprep.subr.mxu0 0.0
    %1285 = vmatpush1.msra.mxu0 0.0
    %1286 = vmatprep.subr.mxu0 0.0
    %1287 = vmatpush1.msra.mxu0 0.0
    %1288 = vmatprep.subr.mxu0 0.0
    %1289 = vmatpush1.msra.mxu0 0.0
    %1290 = vmatprep.subr.mxu0 0.0
    %1291 = vmatpush1.msra.mxu0 0.0
    %1292 = vmatprep.subr.mxu0 0.0
    %1293 = vmatpush1.msra.mxu0 0.0
    %1294 = vmatprep.subr.mxu0 0.0
    %1295 = vmatpush1.msra.mxu0 0.0
    %1296 = vmatprep.subr.mxu0 0.0
    %1297 = vmatpush1.msra.mxu0 0.0
    %1298 = vmatprep.subr.mxu0 0.0
    %1299 = vmatpush1.msra.mxu0 0.0
    %1300 = vmatprep.subr.mxu0 0.0
    %1301 = vmatpush1.msra.mxu0 0.0
    %1302 = vmatprep.subr.mxu0 0.0
    %1303 = vmatpush1.msra.mxu0 0.0
    %1304 = vmatprep.subr.mxu0 0.0
    %1305 = vmatpush1.msra.mxu0 0.0
    %1306 = vmatprep.subr.mxu0 0.0
    %1307 = vmatpush1.msra.mxu0 0.0
    %1308 = vmatprep.subr.mxu0 0.0
    %1309 = vmatpush1.msra.mxu0 0.0
    %1310 = vmatprep.subr.mxu0 0.0
    %1311 = vmatpush1.msra.mxu0 0.0
    %1312 = vmatprep.subr.mxu0 0.0
    %1313 = vmatpush1.msra.mxu0 0.0
    %1314 = vmatprep.subr.mxu0 0.0
    %1315 = vmatpush1.msra.mxu0 0.0
    %1316 = vmatprep.subr.mxu0 0.0
    %1317 = vmatpush1.msra.mxu0 0.0
    %1318 = vmatprep.subr.mxu0 0.0
    %1319 = vmatpush1.msra.mxu0 0.0
    %1320 = vmatprep.subr.mxu0 0.0
    %1321 = vmatpush1.msra.mxu0 0.0
    %1322 = vmatprep.subr.mxu0 0.0
    %1323 = vmatpush1.msra.mxu0 0.0
    %1324 = vmatprep.subr.mxu0 0.0
    %1325 = vmatpush1.msra.mxu0 0.0
    %1326 = vmatprep.subr.mxu0 0.0
    %1327 = vmatpush1.msra.mxu0 0.0
    %1328 = vmatprep.mubr.f32.mxu0 0.0
    %1329 = vmatmul.mubr.f32.gmra.mrb[0].mxu0 %v211
    %v1330 = vpop.f32.mrb[0].mxu0
    %v1331 = vadd.f32 0.0, %v1330
    %v1332 = vpop.f32.mrb[0].mxu0
    %v1333 = vadd.f32 0.0, %v1332
    %1334 = vdwg.mxu0
    %v1335 = vld [vmem:[#allocation2] sm:$0x3]
    %v1336 = vadd.f32 %v1331, %v1335
    %v1337 = vld [vmem:[#allocation2 + $0x18] sm:$0xc0]
    %v1339 = vrot.slane %v1337, 4
    %v1341 = vadd.f32 %v1333, %v1339
    %v1342 = vsel %vm291, %v1336, %v1341
    %v1343 = vxor.u32 %v1342, 2147483648
    %v1344 = vmul.f32 %v1343, 1.442695
    %v1345 = vpow.pop %v1344
    %v1346 = vadd.f32 %v1345, 1.0
    %v1347 = vrcp.pop %v1346
    %v1348 = vmul.f32 1.0, %v1347
    %v1349 = vtanh.pop %v1342
    %v1350 = vmul.f32 %v1348, 0.0
    %1352 = vrot.lane.b32.xlu0 %v1349, 64
    %v1353 = vpop.permute.xlu0 %1352
    %v1355 = vmul.f32 %v1348, %v1353
    %1357 = vrot.lane.b32.xlu0 %v1355, 32
    %v1358 = vpop.permute.xlu0 %1357
    %v1360 = vadd.f32 %v1350, %v1358
    %v1361 = vtanh.pop %v1360
    %1363 = vrot.lane.b32.xlu0 %v1361, 64
    %v1364 = vpop.permute.xlu0 %1363
    %v1366 = vmul.f32 %v1348, %v1364
    %1368 = vrot.lane.b32.xlu0 %v1366, 32
    %v1369 = vpop.permute.xlu0 %1368
    %1371 = vst.msk [vmem:[#allocation13] sm:$0x3] %vm321, %v1369
    %1372 = vrot.lane.b32.xlu0 %v1366, 64
    %v1373 = vpop.permute.xlu0 %1372
    %1375 = vst.msk [vmem:[#allocation13 + $0xc] sm:$0xc] %vm326, %v1373
    %v1376 = vsel %vm209, %v1369, 0
    %1378 = vmatprep.subr.mxu0 %v1257
    %1379 = vmatpush1.msra.mxu0 %v1256
    %1380 = vmatprep.subr.mxu0 %v1259
    %1381 = vmatpush1.msra.mxu0 %v1258
    %1382 = vmatprep.subr.mxu0 %v1261
    %1383 = vmatpush1.msra.mxu0 %v1260
    %1384 = vmatprep.subr.mxu0 %v1263
    %1385 = vmatpush1.msra.mxu0 %v1262
    %1386 = vmatprep.subr.mxu0 0.0
    %1387 = vmatpush1.msra.mxu0 0.0
    %1388 = vmatprep.subr.mxu0 0.0
    %1389 = vmatpush1.msra.mxu0 0.0
    %1390 = vmatprep.subr.mxu0 0.0
    %1391 = vmatpush1.msra.mxu0 0.0
    %1392 = vmatprep.subr.mxu0 0.0
    %1393 = vmatpush1.msra.mxu0 0.0
    %1394 = vmatprep.subr.mxu0 0.0
    %1395 = vmatpush1.msra.mxu0 0.0
    %1396 = vmatprep.subr.mxu0 0.0
    %1397 = vmatpush1.msra.mxu0 0.0
    %1398 = vmatprep.subr.mxu0 0.0
    %1399 = vmatpush1.msra.mxu0 0.0
    %1400 = vmatprep.subr.mxu0 0.0
    %1401 = vmatpush1.msra.mxu0 0.0
    %1402 = vmatprep.subr.mxu0 0.0
    %1403 = vmatpush1.msra.mxu0 0.0
    %1404 = vmatprep.subr.mxu0 0.0
    %1405 = vmatpush1.msra.mxu0 0.0
    %1406 = vmatprep.subr.mxu0 0.0
    %1407 = vmatpush1.msra.mxu0 0.0
    %1408 = vmatprep.subr.mxu0 0.0
    %1409 = vmatpush1.msra.mxu0 0.0
    %1410 = vmatprep.subr.mxu0 0.0
    %1411 = vmatpush1.msra.mxu0 0.0
    %1412 = vmatprep.subr.mxu0 0.0
    %1413 = vmatpush1.msra.mxu0 0.0
    %1414 = vmatprep.subr.mxu0 0.0
    %1415 = vmatpush1.msra.mxu0 0.0
    %1416 = vmatprep.subr.mxu0 0.0
    %1417 = vmatpush1.msra.mxu0 0.0
    %1418 = vmatprep.subr.mxu0 0.0
    %1419 = vmatpush1.msra.mxu0 0.0
    %1420 = vmatprep.subr.mxu0 0.0
    %1421 = vmatpush1.msra.mxu0 0.0
    %1422 = vmatprep.subr.mxu0 0.0
    %1423 = vmatpush1.msra.mxu0 0.0
    %1424 = vmatprep.subr.mxu0 0.0
    %1425 = vmatpush1.msra.mxu0 0.0
    %1426 = vmatprep.subr.mxu0 0.0
    %1427 = vmatpush1.msra.mxu0 0.0
    %1428 = vmatprep.subr.mxu0 0.0
    %1429 = vmatpush1.msra.mxu0 0.0
    %1430 = vmatprep.subr.mxu0 0.0
    %1431 = vmatpush1.msra.mxu0 0.0
    %1432 = vmatprep.subr.mxu0 0.0
    %1433 = vmatpush1.msra.mxu0 0.0
    %1434 = vmatprep.subr.mxu0 0.0
    %1435 = vmatpush1.msra.mxu0 0.0
    %1436 = vmatprep.subr.mxu0 0.0
    %1437 = vmatpush1.msra.mxu0 0.0
    %1438 = vmatprep.subr.mxu0 0.0
    %1439 = vmatpush1.msra.mxu0 0.0
    %1440 = vmatprep.subr.mxu0 0.0
    %1441 = vmatpush1.msra.mxu0 0.0
    %1442 = vmatprep.mubr.f32.mxu0 0.0
    %1443 = vmatmul.mubr.f32.gmra.mrb[0].mxu0 %v1376
    %v1444 = vpop.f32.mrb[0].mxu0
    %v1445 = vadd.f32 0.0, %v1444
    %v1446 = vpop.f32.mrb[0].mxu0
    %v1447 = vadd.f32 0.0, %v1446
    %1448 = vdwg.mxu0
    %v1449 = vld [vmem:[#allocation2] sm:$0xc]
    %v1451 = vrot.slane %v1449, 2
    %v1453 = vadd.f32 %v1445, %v1451
    %v1454 = vld [vmem:[#allocation2 + $0x18] sm:$0x30]
    %v1456 = vrot.slane %v1454, 2
    %v1458 = vadd.f32 %v1447, %v1456
    %v1459 = vsel %vm291, %v1453, %v1458
    %v1460 = vxor.u32 %v1459, 2147483648
    %v1461 = vmul.f32 %v1460, 1.442695
    %v1462 = vpow.pop %v1461
    %v1463 = vadd.f32 %v1462, 1.0
    %v1464 = vrcp.pop %v1463
    %v1465 = vmul.f32 1.0, %v1464
    %v1466 = vtanh.pop %v1459
    %v1467 = vmul.f32 %v1465, %v1360
    %1469 = vrot.lane.b32.xlu0 %v1466, 64
    %v1470 = vpop.permute.xlu0 %1469
    %v1472 = vmul.f32 %v1465, %v1470
    %1474 = vrot.lane.b32.xlu0 %v1472, 32
    %v1475 = vpop.permute.xlu0 %1474
    %v1477 = vadd.f32 %v1467, %v1475
    %v1478 = vtanh.pop %v1477
    %1480 = vrot.lane.b32.xlu0 %v1478, 64
    %v1481 = vpop.permute.xlu0 %1480
    %v1483 = vmul.f32 %v1465, %v1481
    %1485 = vrot.lane.b32.xlu0 %v1483, 32
    %v1486 = vpop.permute.xlu0 %1485
    %1488 = vst.msk [vmem:[#allocation13 + $0x2] sm:$0x3] %vm321, %v1486
    %1489 = vrot.lane.b32.xlu0 %v1483, 64
    %v1490 = vpop.permute.xlu0 %1489
    %1492 = vst.msk [vmem:[#allocation13 + $0xa] sm:$0xc] %vm326, %v1490
    %v1493 = vsel %vm209, %v1486, 0
    %1495 = vmatprep.subr.mxu0 %v1257
    %1496 = vmatpush1.msra.mxu0 %v1256
    %1497 = vmatprep.subr.mxu0 %v1259
    %1498 = vmatpush1.msra.mxu0 %v1258
    %1499 = vmatprep.subr.mxu0 %v1261
    %1500 = vmatpush1.msra.mxu0 %v1260
    %1501 = vmatprep.subr.mxu0 %v1263
    %1502 = vmatpush1.msra.mxu0 %v1262
    %1503 = vmatprep.subr.mxu0 0.0
    %1504 = vmatpush1.msra.mxu0 0.0
    %1505 = vmatprep.subr.mxu0 0.0
    %1506 = vmatpush1.msra.mxu0 0.0
    %1507 = vmatprep.subr.mxu0 0.0
    %1508 = vmatpush1.msra.mxu0 0.0
    %1509 = vmatprep.subr.mxu0 0.0
    %1510 = vmatpush1.msra.mxu0 0.0
    %1511 = vmatprep.subr.mxu0 0.0
    %1512 = vmatpush1.msra.mxu0 0.0
    %1513 = vmatprep.subr.mxu0 0.0
    %1514 = vmatpush1.msra.mxu0 0.0
    %1515 = vmatprep.subr.mxu0 0.0
    %1516 = vmatpush1.msra.mxu0 0.0
    %1517 = vmatprep.subr.mxu0 0.0
    %1518 = vmatpush1.msra.mxu0 0.0
    %1519 = vmatprep.subr.mxu0 0.0
    %1520 = vmatpush1.msra.mxu0 0.0
    %1521 = vmatprep.subr.mxu0 0.0
    %1522 = vmatpush1.msra.mxu0 0.0
    %1523 = vmatprep.subr.mxu0 0.0
    %1524 = vmatpush1.msra.mxu0 0.0
    %1525 = vmatprep.subr.mxu0 0.0
    %1526 = vmatpush1.msra.mxu0 0.0
    %1527 = vmatprep.subr.mxu0 0.0
    %1528 = vmatpush1.msra.mxu0 0.0
    %1529 = vmatprep.subr.mxu0 0.0
    %1530 = vmatpush1.msra.mxu0 0.0
    %1531 = vmatprep.subr.mxu0 0.0
    %1532 = vmatpush1.msra.mxu0 0.0
    %1533 = vmatprep.subr.mxu0 0.0
    %1534 = vmatpush1.msra.mxu0 0.0
    %1535 = vmatprep.subr.mxu0 0.0
    %1536 = vmatpush1.msra.mxu0 0.0
    %1537 = vmatprep.subr.mxu0 0.0
    %1538 = vmatpush1.msra.mxu0 0.0
    %1539 = vmatprep.subr.mxu0 0.0
    %1540 = vmatpush1.msra.mxu0 0.0
    %1541 = vmatprep.subr.mxu0 0.0
    %1542 = vmatpush1.msra.mxu0 0.0
    %1543 = vmatprep.subr.mxu0 0.0
    %1544 = vmatpush1.msra.mxu0 0.0
    %1545 = vmatprep.subr.mxu0 0.0
    %1546 = vmatpush1.msra.mxu0 0.0
    %1547 = vmatprep.subr.mxu0 0.0
    %1548 = vmatpush1.msra.mxu0 0.0
    %1549 = vmatprep.subr.mxu0 0.0
    %1550 = vmatpush1.msra.mxu0 0.0
    %1551 = vmatprep.subr.mxu0 0.0
    %1552 = vmatpush1.msra.mxu0 0.0
    %1553 = vmatprep.subr.mxu0 0.0
    %1554 = vmatpush1.msra.mxu0 0.0
    %1555 = vmatprep.subr.mxu0 0.0
    %1556 = vmatpush1.msra.mxu0 0.0
    %1557 = vmatprep.subr.mxu0 0.0
    %1558 = vmatpush1.msra.mxu0 0.0
    %1559 = vmatprep.mubr.f32.mxu0 0.0
    %1560 = vmatmul.mubr.f32.gmra.mrb[0].mxu0 %v1493
    %v1561 = vpop.f32.mrb[0].mxu0
    %v1562 = vadd.f32 0.0, %v1561
    %v1563 = vpop.f32.mrb[0].mxu0
    %v1564 = vadd.f32 0.0, %v1563
    %1565 = vdwg.mxu0
    %v1566 = vld [vmem:[#allocation2] sm:$0x30]
    %v1568 = vrot.slane %v1566, 4
    %v1570 = vadd.f32 %v1562, %v1568
    %v1571 = vld [vmem:[#allocation2 + $0x18] sm:$0xc]
    %v1572 = vadd.f32 %v1564, %v1571
    %v1573 = vsel %vm291, %v1570, %v1572
    %v1574 = vxor.u32 %v1573, 2147483648
    %v1575 = vmul.f32 %v1574, 1.442695
    %v1576 = vpow.pop %v1575
    %v1577 = vadd.f32 %v1576, 1.0
    %v1578 = vrcp.pop %v1577
    %v1579 = vmul.f32 1.0, %v1578
    %v1580 = vtanh.pop %v1573
    %v1581 = vmul.f32 %v1579, %v1477
    %1583 = vrot.lane.b32.xlu0 %v1580, 64
    %v1584 = vpop.permute.xlu0 %1583
    %v1586 = vmul.f32 %v1579, %v1584
    %1588 = vrot.lane.b32.xlu0 %v1586, 32
    %v1589 = vpop.permute.xlu0 %1588
    %v1591 = vadd.f32 %v1581, %v1589
    %v1592 = vtanh.pop %v1591
    %1594 = vrot.lane.b32.xlu0 %v1592, 64
    %v1595 = vpop.permute.xlu0 %1594
    %v1597 = vmul.f32 %v1579, %v1595
    %1599 = vrot.lane.b32.xlu0 %v1597, 32
    %v1600 = vpop.permute.xlu0 %1599
    %1602 = vst.msk [vmem:[#allocation13 + $0x4] sm:$0x3] %vm321, %v1600
    %1603 = vrot.lane.b32.xlu0 %v1597, 64
    %v1604 = vpop.permute.xlu0 %1603
    %1606 = vst.msk [vmem:[#allocation13 + $0x8] sm:$0xc] %vm326, %v1604
    %v1607 = vsel %vm209, %v1600, 0
    %1609 = vmatprep.subr.mxu0 %v1257
    %1610 = vmatpush1.msra.mxu0 %v1256
    %1611 = vmatprep.subr.mxu0 %v1259
    %1612 = vmatpush1.msra.mxu0 %v1258
    %1613 = vmatprep.subr.mxu0 %v1261
    %1614 = vmatpush1.msra.mxu0 %v1260
    %1615 = vmatprep.subr.mxu0 %v1263
    %1616 = vmatpush1.msra.mxu0 %v1262
    %1617 = vmatprep.subr.mxu0 0.0
    %1618 = vmatpush1.msra.mxu0 0.0
    %1619 = vmatprep.subr.mxu0 0.0
    %1620 = vmatpush1.msra.mxu0 0.0
    %1621 = vmatprep.subr.mxu0 0.0
    %1622 = vmatpush1.msra.mxu0 0.0
    %1623 = vmatprep.subr.mxu0 0.0
    %1624 = vmatpush1.msra.mxu0 0.0
    %1625 = vmatprep.subr.mxu0 0.0
    %1626 = vmatpush1.msra.mxu0 0.0
    %1627 = vmatprep.subr.mxu0 0.0
    %1628 = vmatpush1.msra.mxu0 0.0
    %1629 = vmatprep.subr.mxu0 0.0
    %1630 = vmatpush1.msra.mxu0 0.0
    %1631 = vmatprep.subr.mxu0 0.0
    %1632 = vmatpush1.msra.mxu0 0.0
    %1633 = vmatprep.subr.mxu0 0.0
    %1634 = vmatpush1.msra.mxu0 0.0
    %1635 = vmatprep.subr.mxu0 0.0
    %1636 = vmatpush1.msra.mxu0 0.0
    %1637 = vmatprep.subr.mxu0 0.0
    %1638 = vmatpush1.msra.mxu0 0.0
    %1639 = vmatprep.subr.mxu0 0.0
    %1640 = vmatpush1.msra.mxu0 0.0
    %1641 = vmatprep.subr.mxu0 0.0
    %1642 = vmatpush1.msra.mxu0 0.0
    %1643 = vmatprep.subr.mxu0 0.0
    %1644 = vmatpush1.msra.mxu0 0.0
    %1645 = vmatprep.subr.mxu0 0.0
    %1646 = vmatpush1.msra.mxu0 0.0
    %1647 = vmatprep.subr.mxu0 0.0
    %1648 = vmatpush1.msra.mxu0 0.0
    %1649 = vmatprep.subr.mxu0 0.0
    %1650 = vmatpush1.msra.mxu0 0.0
    %1651 = vmatprep.subr.mxu0 0.0
    %1652 = vmatpush1.msra.mxu0 0.0
    %1653 = vmatprep.subr.mxu0 0.0
    %1654 = vmatpush1.msra.mxu0 0.0
    %1655 = vmatprep.subr.mxu0 0.0
    %1656 = vmatpush1.msra.mxu0 0.0
    %1657 = vmatprep.subr.mxu0 0.0
    %1658 = vmatpush1.msra.mxu0 0.0
    %1659 = vmatprep.subr.mxu0 0.0
    %1660 = vmatpush1.msra.mxu0 0.0
    %1661 = vmatprep.subr.mxu0 0.0
    %1662 = vmatpush1.msra.mxu0 0.0
    %1663 = vmatprep.subr.mxu0 0.0
    %1664 = vmatpush1.msra.mxu0 0.0
    %1665 = vmatprep.subr.mxu0 0.0
    %1666 = vmatpush1.msra.mxu0 0.0
    %1667 = vmatprep.subr.mxu0 0.0
    %1668 = vmatpush1.msra.mxu0 0.0
    %1669 = vmatprep.subr.mxu0 0.0
    %1670 = vmatpush1.msra.mxu0 0.0
    %1671 = vmatprep.subr.mxu0 0.0
    %1672 = vmatpush1.msra.mxu0 0.0
    %1673 = vmatprep.mubr.f32.mxu0 0.0
    %1674 = vmatmul.mubr.f32.gmra.mrb[0].mxu0 %v1607
    %v1675 = vpop.f32.mrb[0].mxu0
    %v1676 = vadd.f32 0.0, %v1675
    %v1677 = vpop.f32.mrb[0].mxu0
    %v1678 = vadd.f32 0.0, %v1677
    %1679 = vdwg.mxu0
    %v1680 = vld [vmem:[#allocation2] sm:$0xc0]
    %v1682 = vrot.slane %v1680, 6
    %v1684 = vadd.f32 %v1676, %v1682
    %v1685 = vld [vmem:[#allocation2 + $0x18] sm:$0x3]
    %v1687 = vrot.slane %v1685, 6
    %v1689 = vadd.f32 %v1678, %v1687
    %v1690 = vsel %vm291, %v1684, %v1689
    %v1691 = vxor.u32 %v1690, 2147483648
    %v1692 = vmul.f32 %v1691, 1.442695
    %v1693 = vpow.pop %v1692
    %v1694 = vadd.f32 %v1693, 1.0
    %v1695 = vrcp.pop %v1694
    %v1696 = vmul.f32 1.0, %v1695
    %v1697 = vtanh.pop %v1690
    %v1698 = vmul.f32 %v1696, %v1591
    %1700 = vrot.lane.b32.xlu0 %v1697, 64
    %v1701 = vpop.permute.xlu0 %1700
    %v1703 = vmul.f32 %v1696, %v1701
    %1705 = vrot.lane.b32.xlu0 %v1703, 32
    %v1706 = vpop.permute.xlu0 %1705
    %v1708 = vadd.f32 %v1698, %v1706
    %v1709 = vtanh.pop %v1708
    %1711 = vrot.lane.b32.xlu0 %v1709, 64
    %v1712 = vpop.permute.xlu0 %1711
    %v1714 = vmul.f32 %v1696, %v1712
    %1716 = vrot.lane.b32.xlu0 %v1714, 32
    %v1717 = vpop.permute.xlu0 %1716
    %1719 = vst.msk [vmem:[#allocation13 + $0x6] sm:$0x3] %vm321, %v1717
    %1720 = vrot.lane.b32.xlu0 %v1714, 64
    %v1721 = vpop.permute.xlu0 %1720
    %1723 = vst.msk [vmem:[#allocation13 + $0x6] sm:$0xc] %vm326, %v1721
    %v1724 = vsel %vm209, %v1717, 0
    %1726 = vmatprep.subr.mxu0 %v1257
    %1727 = vmatpush1.msra.mxu0 %v1256
    %1728 = vmatprep.subr.mxu0 %v1259
    %1729 = vmatpush1.msra.mxu0 %v1258
    %1730 = vmatprep.subr.mxu0 %v1261
    %1731 = vmatpush1.msra.mxu0 %v1260
    %1732 = vmatprep.subr.mxu0 %v1263
    %1733 = vmatpush1.msra.mxu0 %v1262
    %1734 = vmatprep.subr.mxu0 0.0
    %1735 = vmatpush1.msra.mxu0 0.0
    %1736 = vmatprep.subr.mxu0 0.0
    %1737 = vmatpush1.msra.mxu0 0.0
    %1738 = vmatprep.subr.mxu0 0.0
    %1739 = vmatpush1.msra.mxu0 0.0
    %1740 = vmatprep.subr.mxu0 0.0
    %1741 = vmatpush1.msra.mxu0 0.0
    %1742 = vmatprep.subr.mxu0 0.0
    %1743 = vmatpush1.msra.mxu0 0.0
    %1744 = vmatprep.subr.mxu0 0.0
    %1745 = vmatpush1.msra.mxu0 0.0
    %1746 = vmatprep.subr.mxu0 0.0
    %1747 = vmatpush1.msra.mxu0 0.0
    %1748 = vmatprep.subr.mxu0 0.0
    %1749 = vmatpush1.msra.mxu0 0.0
    %1750 = vmatprep.subr.mxu0 0.0
    %1751 = vmatpush1.msra.mxu0 0.0
    %1752 = vmatprep.subr.mxu0 0.0
    %1753 = vmatpush1.msra.mxu0 0.0
    %1754 = vmatprep.subr.mxu0 0.0
    %1755 = vmatpush1.msra.mxu0 0.0
    %1756 = vmatprep.subr.mxu0 0.0
    %1757 = vmatpush1.msra.mxu0 0.0
    %1758 = vmatprep.subr.mxu0 0.0
    %1759 = vmatpush1.msra.mxu0 0.0
    %1760 = vmatprep.subr.mxu0 0.0
    %1761 = vmatpush1.msra.mxu0 0.0
    %1762 = vmatprep.subr.mxu0 0.0
    %1763 = vmatpush1.msra.mxu0 0.0
    %1764 = vmatprep.subr.mxu0 0.0
    %1765 = vmatpush1.msra.mxu0 0.0
    %1766 = vmatprep.subr.mxu0 0.0
    %1767 = vmatpush1.msra.mxu0 0.0
    %1768 = vmatprep.subr.mxu0 0.0
    %1769 = vmatpush1.msra.mxu0 0.0
    %1770 = vmatprep.subr.mxu0 0.0
    %1771 = vmatpush1.msra.mxu0 0.0
    %1772 = vmatprep.subr.mxu0 0.0
    %1773 = vmatpush1.msra.mxu0 0.0
    %1774 = vmatprep.subr.mxu0 0.0
    %1775 = vmatpush1.msra.mxu0 0.0
    %1776 = vmatprep.subr.mxu0 0.0
    %1777 = vmatpush1.msra.mxu0 0.0
    %1778 = vmatprep.subr.mxu0 0.0
    %1779 = vmatpush1.msra.mxu0 0.0
    %1780 = vmatprep.subr.mxu0 0.0
    %1781 = vmatpush1.msra.mxu0 0.0
    %1782 = vmatprep.subr.mxu0 0.0
    %1783 = vmatpush1.msra.mxu0 0.0
    %1784 = vmatprep.subr.mxu0 0.0
    %1785 = vmatpush1.msra.mxu0 0.0
    %1786 = vmatprep.subr.mxu0 0.0
    %1787 = vmatpush1.msra.mxu0 0.0
    %1788 = vmatprep.subr.mxu0 0.0
    %1789 = vmatpush1.msra.mxu0 0.0
    %1790 = vmatprep.mubr.f32.mxu0 0.0
    %1791 = vmatmul.mubr.f32.gmra.mrb[0].mxu0 %v1724
    %v1792 = vpop.f32.mrb[0].mxu0
    %v1793 = vadd.f32 0.0, %v1792
    %v1794 = vpop.f32.mrb[0].mxu0
    %v1795 = vadd.f32 0.0, %v1794
    %1796 = vdwg.mxu0
    %v1797 = vld [vmem:[#allocation2 + $0x10] sm:$0x3]
    %v1798 = vadd.f32 %v1793, %v1797
    %v1799 = vld [vmem:[#allocation2 + $0x8] sm:$0xc0]
    %v1801 = vrot.slane %v1799, 4
    %v1803 = vadd.f32 %v1795, %v1801
    %v1804 = vsel %vm291, %v1798, %v1803
    %v1805 = vxor.u32 %v1804, 2147483648
    %v1806 = vmul.f32 %v1805, 1.442695
    %v1807 = vpow.pop %v1806
    %v1808 = vadd.f32 %v1807, 1.0
    %v1809 = vrcp.pop %v1808
    %v1810 = vmul.f32 1.0, %v1809
    %v1811 = vtanh.pop %v1804
    %v1812 = vmul.f32 %v1810, %v1708
    %1814 = vrot.lane.b32.xlu0 %v1811, 64
    %v1815 = vpop.permute.xlu0 %1814
    %v1817 = vmul.f32 %v1810, %v1815
    %1819 = vrot.lane.b32.xlu0 %v1817, 32
    %v1820 = vpop.permute.xlu0 %1819
    %v1822 = vadd.f32 %v1812, %v1820
    %v1823 = vtanh.pop %v1822
    %1825 = vrot.lane.b32.xlu0 %v1823, 64
    %v1826 = vpop.permute.xlu0 %1825
    %v1828 = vmul.f32 %v1810, %v1826
    %1830 = vrot.lane.b32.xlu0 %v1828, 32
    %v1831 = vpop.permute.xlu0 %1830
    %1833 = vst.msk [vmem:[#allocation13 + $0x8] sm:$0x3] %vm321, %v1831
    %1834 = vrot.lane.b32.xlu0 %v1828, 64
    %v1835 = vpop.permute.xlu0 %1834
    %1837 = vst.msk [vmem:[#allocation13 + $0x4] sm:$0xc] %vm326, %v1835
    %v1838 = vsel %vm209, %v1831, 0
    %1840 = vmatprep.subr.mxu0 %v1257
    %1841 = vmatpush1.msra.mxu0 %v1256
    %1842 = vmatprep.subr.mxu0 %v1259
    %1843 = vmatpush1.msra.mxu0 %v1258
    %1844 = vmatprep.subr.mxu0 %v1261
    %1845 = vmatpush1.msra.mxu0 %v1260
    %1846 = vmatprep.subr.mxu0 %v1263
    %1847 = vmatpush1.msra.mxu0 %v1262
    %1848 = vmatprep.subr.mxu0 0.0
    %1849 = vmatpush1.msra.mxu0 0.0
    %1850 = vmatprep.subr.mxu0 0.0
    %1851 = vmatpush1.msra.mxu0 0.0
    %1852 = vmatprep.subr.mxu0 0.0
    %1853 = vmatpush1.msra.mxu0 0.0
    %1854 = vmatprep.subr.mxu0 0.0
    %1855 = vmatpush1.msra.mxu0 0.0
    %1856 = vmatprep.subr.mxu0 0.0
    %1857 = vmatpush1.msra.mxu0 0.0
    %1858 = vmatprep.subr.mxu0 0.0
    %1859 = vmatpush1.msra.mxu0 0.0
    %1860 = vmatprep.subr.mxu0 0.0
    %1861 = vmatpush1.msra.mxu0 0.0
    %1862 = vmatprep.subr.mxu0 0.0
    %1863 = vmatpush1.msra.mxu0 0.0
    %1864 = vmatprep.subr.mxu0 0.0
    %1865 = vmatpush1.msra.mxu0 0.0
    %1866 = vmatprep.subr.mxu0 0.0
    %1867 = vmatpush1.msra.mxu0 0.0
    %1868 = vmatprep.subr.mxu0 0.0
    %1869 = vmatpush1.msra.mxu0 0.0
    %1870 = vmatprep.subr.mxu0 0.0
    %1871 = vmatpush1.msra.mxu0 0.0
    %1872 = vmatprep.subr.mxu0 0.0
    %1873 = vmatpush1.msra.mxu0 0.0
    %1874 = vmatprep.subr.mxu0 0.0
    %1875 = vmatpush1.msra.mxu0 0.0
    %1876 = vmatprep.subr.mxu0 0.0
    %1877 = vmatpush1.msra.mxu0 0.0
    %1878 = vmatprep.subr.mxu0 0.0
    %1879 = vmatpush1.msra.mxu0 0.0
    %1880 = vmatprep.subr.mxu0 0.0
    %1881 = vmatpush1.msra.mxu0 0.0
    %1882 = vmatprep.subr.mxu0 0.0
    %1883 = vmatpush1.msra.mxu0 0.0
    %1884 = vmatprep.subr.mxu0 0.0
    %1885 = vmatpush1.msra.mxu0 0.0
    %1886 = vmatprep.subr.mxu0 0.0
    %1887 = vmatpush1.msra.mxu0 0.0
    %1888 = vmatprep.subr.mxu0 0.0
    %1889 = vmatpush1.msra.mxu0 0.0
    %1890 = vmatprep.subr.mxu0 0.0
    %1891 = vmatpush1.msra.mxu0 0.0
    %1892 = vmatprep.subr.mxu0 0.0
    %1893 = vmatpush1.msra.mxu0 0.0
    %1894 = vmatprep.subr.mxu0 0.0
    %1895 = vmatpush1.msra.mxu0 0.0
    %1896 = vmatprep.subr.mxu0 0.0
    %1897 = vmatpush1.msra.mxu0 0.0
    %1898 = vmatprep.subr.mxu0 0.0
    %1899 = vmatpush1.msra.mxu0 0.0
    %1900 = vmatprep.subr.mxu0 0.0
    %1901 = vmatpush1.msra.mxu0 0.0
    %1902 = vmatprep.subr.mxu0 0.0
    %1903 = vmatpush1.msra.mxu0 0.0
    %1904 = vmatprep.mubr.f32.mxu0 0.0
    %1905 = vmatmul.mubr.f32.gmra.mrb[0].mxu0 %v1838
    %v1906 = vpop.f32.mrb[0].mxu0
    %v1907 = vadd.f32 0.0, %v1906
    %v1908 = vpop.f32.mrb[0].mxu0
    %v1909 = vadd.f32 0.0, %v1908
    %1910 = vdwg.mxu0
    %v1911 = vld [vmem:[#allocation2 + $0x10] sm:$0xc]
    %v1913 = vrot.slane %v1911, 2
    %v1915 = vadd.f32 %v1907, %v1913
    %v1916 = vld [vmem:[#allocation2 + $0x8] sm:$0x30]
    %v1918 = vrot.slane %v1916, 2
    %v1920 = vadd.f32 %v1909, %v1918
    %v1921 = vsel %vm291, %v1915, %v1920
    %v1922 = vxor.u32 %v1921, 2147483648
    %v1923 = vmul.f32 %v1922, 1.442695
    %v1924 = vpow.pop %v1923
    %v1925 = vadd.f32 %v1924, 1.0
    %v1926 = vrcp.pop %v1925
    %v1927 = vmul.f32 1.0, %v1926
    %v1928 = vtanh.pop %v1921
    %v1929 = vmul.f32 %v1927, %v1822
    %1931 = vrot.lane.b32.xlu0 %v1928, 64
    %v1932 = vpop.permute.xlu0 %1931
    %v1934 = vmul.f32 %v1927, %v1932
    %1936 = vrot.lane.b32.xlu0 %v1934, 32
    %v1937 = vpop.permute.xlu0 %1936
    %v1939 = vadd.f32 %v1929, %v1937
    %v1940 = vtanh.pop %v1939
    %1942 = vrot.lane.b32.xlu0 %v1940, 64
    %v1943 = vpop.permute.xlu0 %1942
    %v1945 = vmul.f32 %v1927, %v1943
    %1947 = vrot.lane.b32.xlu0 %v1945, 32
    %v1948 = vpop.permute.xlu0 %1947
    %1950 = vst.msk [vmem:[#allocation13 + $0xa] sm:$0x3] %vm321, %v1948
    %1951 = vrot.lane.b32.xlu0 %v1945, 64
    %v1952 = vpop.permute.xlu0 %1951
    %1954 = vst.msk [vmem:[#allocation13 + $0x2] sm:$0xc] %vm326, %v1952
    %v1955 = vsel %vm209, %v1948, 0
    %1957 = vmatprep.subr.mxu0 %v1257
    %1958 = vmatpush1.msra.mxu0 %v1256
    %1959 = vmatprep.subr.mxu0 %v1259
    %1960 = vmatpush1.msra.mxu0 %v1258
    %1961 = vmatprep.subr.mxu0 %v1261
    %1962 = vmatpush1.msra.mxu0 %v1260
    %1963 = vmatprep.subr.mxu0 %v1263
    %1964 = vmatpush1.msra.mxu0 %v1262
    %1965 = vmatprep.subr.mxu0 0.0
    %1966 = vmatpush1.msra.mxu0 0.0
    %1967 = vmatprep.subr.mxu0 0.0
    %1968 = vmatpush1.msra.mxu0 0.0
    %1969 = vmatprep.subr.mxu0 0.0
    %1970 = vmatpush1.msra.mxu0 0.0
    %1971 = vmatprep.subr.mxu0 0.0
    %1972 = vmatpush1.msra.mxu0 0.0
    %1973 = vmatprep.subr.mxu0 0.0
    %1974 = vmatpush1.msra.mxu0 0.0
    %1975 = vmatprep.subr.mxu0 0.0
    %1976 = vmatpush1.msra.mxu0 0.0
    %1977 = vmatprep.subr.mxu0 0.0
    %1978 = vmatpush1.msra.mxu0 0.0
    %1979 = vmatprep.subr.mxu0 0.0
    %1980 = vmatpush1.msra.mxu0 0.0
    %1981 = vmatprep.subr.mxu0 0.0
    %1982 = vmatpush1.msra.mxu0 0.0
    %1983 = vmatprep.subr.mxu0 0.0
    %1984 = vmatpush1.msra.mxu0 0.0
    %1985 = vmatprep.subr.mxu0 0.0
    %1986 = vmatpush1.msra.mxu0 0.0
    %1987 = vmatprep.subr.mxu0 0.0
    %1988 = vmatpush1.msra.mxu0 0.0
    %1989 = vmatprep.subr.mxu0 0.0
    %1990 = vmatpush1.msra.mxu0 0.0
    %1991 = vmatprep.subr.mxu0 0.0
    %1992 = vmatpush1.msra.mxu0 0.0
    %1993 = vmatprep.subr.mxu0 0.0
    %1994 = vmatpush1.msra.mxu0 0.0
    %1995 = vmatprep.subr.mxu0 0.0
    %1996 = vmatpush1.msra.mxu0 0.0
    %1997 = vmatprep.subr.mxu0 0.0
    %1998 = vmatpush1.msra.mxu0 0.0
    %1999 = vmatprep.subr.mxu0 0.0
    %2000 = vmatpush1.msra.mxu0 0.0
    %2001 = vmatprep.subr.mxu0 0.0
    %2002 = vmatpush1.msra.mxu0 0.0
    %2003 = vmatprep.subr.mxu0 0.0
    %2004 = vmatpush1.msra.mxu0 0.0
    %2005 = vmatprep.subr.mxu0 0.0
    %2006 = vmatpush1.msra.mxu0 0.0
    %2007 = vmatprep.subr.mxu0 0.0
    %2008 = vmatpush1.msra.mxu0 0.0
    %2009 = vmatprep.subr.mxu0 0.0
    %2010 = vmatpush1.msra.mxu0 0.0
    %2011 = vmatprep.subr.mxu0 0.0
    %2012 = vmatpush1.msra.mxu0 0.0
    %2013 = vmatprep.subr.mxu0 0.0
    %2014 = vmatpush1.msra.mxu0 0.0
    %2015 = vmatprep.subr.mxu0 0.0
    %2016 = vmatpush1.msra.mxu0 0.0
    %2017 = vmatprep.subr.mxu0 0.0
    %2018 = vmatpush1.msra.mxu0 0.0
    %2019 = vmatprep.subr.mxu0 0.0
    %2020 = vmatpush1.msra.mxu0 0.0
    %2021 = vmatprep.mubr.f32.mxu0 0.0
    %2022 = vmatmul.mubr.f32.gmra.mrb[0].mxu0 %v1955
    %v2023 = vpop.f32.mrb[0].mxu0
    %v2024 = vadd.f32 0.0, %v2023
    %v2025 = vpop.f32.mrb[0].mxu0
    %v2026 = vadd.f32 0.0, %v2025
    %2027 = vdwg.mxu0
    %v2028 = vld [vmem:[#allocation2 + $0x10] sm:$0x30]
    %v2030 = vrot.slane %v2028, 4
    %v2032 = vadd.f32 %v2024, %v2030
    %v2033 = vld [vmem:[#allocation2 + $0x8] sm:$0xc]
    %v2034 = vadd.f32 %v2026, %v2033
    %v2035 = vsel %vm291, %v2032, %v2034
    %v2036 = vxor.u32 %v2035, 2147483648
    %v2037 = vmul.f32 %v2036, 1.442695
    %v2038 = vpow.pop %v2037
    %v2039 = vadd.f32 %v2038, 1.0
    %v2040 = vrcp.pop %v2039
    %v2041 = vmul.f32 1.0, %v2040
    %v2042 = vtanh.pop %v2035
    %v2043 = vmul.f32 %v2041, %v1939
    %2045 = vrot.lane.b32.xlu0 %v2042, 64
    %v2046 = vpop.permute.xlu0 %2045
    %v2048 = vmul.f32 %v2041, %v2046
    %2050 = vrot.lane.b32.xlu0 %v2048, 32
    %v2051 = vpop.permute.xlu0 %2050
    %v2053 = vadd.f32 %v2043, %v2051
    %v2054 = vtanh.pop %v2053
    %2056 = vrot.lane.b32.xlu0 %v2054, 64
    %v2057 = vpop.permute.xlu0 %2056
    %v2059 = vmul.f32 %v2041, %v2057
    %2061 = vrot.lane.b32.xlu0 %v2059, 32
    %v2062 = vpop.permute.xlu0 %2061
    %2064 = vst.msk [vmem:[#allocation13 + $0xc] sm:$0x3] %vm321, %v2062
    %2065 = vrot.lane.b32.xlu0 %v2059, 64
    %v2066 = vpop.permute.xlu0 %2065
    %2068 = vst.msk [vmem:[#allocation13] sm:$0xc] %vm326, %v2066
    %v2069 = vsel %vm209, %v2062, 0
    %2071 = vmatprep.subr.mxu0 %v1257
    %2072 = vmatpush1.msra.mxu0 %v1256
    %2073 = vmatprep.subr.mxu0 %v1259
    %2074 = vmatpush1.msra.mxu0 %v1258
    %2075 = vmatprep.subr.mxu0 %v1261
    %2076 = vmatpush1.msra.mxu0 %v1260
    %2077 = vmatprep.subr.mxu0 %v1263
    %2078 = vmatpush1.msra.mxu0 %v1262
    %2079 = vmatprep.subr.mxu0 0.0
    %2080 = vmatpush1.msra.mxu0 0.0
    %2081 = vmatprep.subr.mxu0 0.0
    %2082 = vmatpush1.msra.mxu0 0.0
    %2083 = vmatprep.subr.mxu0 0.0
    %2084 = vmatpush1.msra.mxu0 0.0
    %2085 = vmatprep.subr.mxu0 0.0
    %2086 = vmatpush1.msra.mxu0 0.0
    %2087 = vmatprep.subr.mxu0 0.0
    %2088 = vmatpush1.msra.mxu0 0.0
    %2089 = vmatprep.subr.mxu0 0.0
    %2090 = vmatpush1.msra.mxu0 0.0
    %2091 = vmatprep.subr.mxu0 0.0
    %2092 = vmatpush1.msra.mxu0 0.0
    %2093 = vmatprep.subr.mxu0 0.0
    %2094 = vmatpush1.msra.mxu0 0.0
    %2095 = vmatprep.subr.mxu0 0.0
    %2096 = vmatpush1.msra.mxu0 0.0
    %2097 = vmatprep.subr.mxu0 0.0
    %2098 = vmatpush1.msra.mxu0 0.0
    %2099 = vmatprep.subr.mxu0 0.0
    %2100 = vmatpush1.msra.mxu0 0.0
    %2101 = vmatprep.subr.mxu0 0.0
    %2102 = vmatpush1.msra.mxu0 0.0
    %2103 = vmatprep.subr.mxu0 0.0
    %2104 = vmatpush1.msra.mxu0 0.0
    %2105 = vmatprep.subr.mxu0 0.0
    %2106 = vmatpush1.msra.mxu0 0.0
    %2107 = vmatprep.subr.mxu0 0.0
    %2108 = vmatpush1.msra.mxu0 0.0
    %2109 = vmatprep.subr.mxu0 0.0
    %2110 = vmatpush1.msra.mxu0 0.0
    %2111 = vmatprep.subr.mxu0 0.0
    %2112 = vmatpush1.msra.mxu0 0.0
    %2113 = vmatprep.subr.mxu0 0.0
    %2114 = vmatpush1.msra.mxu0 0.0
    %2115 = vmatprep.subr.mxu0 0.0
    %2116 = vmatpush1.msra.mxu0 0.0
    %2117 = vmatprep.subr.mxu0 0.0
    %2118 = vmatpush1.msra.mxu0 0.0
    %2119 = vmatprep.subr.mxu0 0.0
    %2120 = vmatpush1.msra.mxu0 0.0
    %2121 = vmatprep.subr.mxu0 0.0
    %2122 = vmatpush1.msra.mxu0 0.0
    %2123 = vmatprep.subr.mxu0 0.0
    %2124 = vmatpush1.msra.mxu0 0.0
    %2125 = vmatprep.subr.mxu0 0.0
    %2126 = vmatpush1.msra.mxu0 0.0
    %2127 = vmatprep.subr.mxu0 0.0
    %2128 = vmatpush1.msra.mxu0 0.0
    %2129 = vmatprep.subr.mxu0 0.0
    %2130 = vmatpush1.msra.mxu0 0.0
    %2131 = vmatprep.subr.mxu0 0.0
    %2132 = vmatpush1.msra.mxu0 0.0
    %2133 = vmatprep.subr.mxu0 0.0
    %2134 = vmatpush1.msra.mxu0 0.0
    %2135 = vmatprep.mubr.f32.mxu0 0.0
    %2136 = vmatmul.mubr.f32.gmra.mrb[0].mxu0 %v2069
    %v2137 = vpop.f32.mrb[0].mxu0
    %v2138 = vadd.f32 0.0, %v2137
    %v2139 = vpop.f32.mrb[0].mxu0
    %v2140 = vadd.f32 0.0, %v2139
    %2141 = vdwg.mxu0
    %v2142 = vld [vmem:[#allocation2 + $0x10] sm:$0xc0]
    %v2144 = vrot.slane %v2142, 6
    %v2146 = vadd.f32 %v2138, %v2144
    %v2147 = vld [vmem:[#allocation2 + $0x8] sm:$0x3]
    %v2149 = vrot.slane %v2147, 6
    %v2151 = vadd.f32 %v2140, %v2149
    %v2152 = vsel %vm291, %v2146, %v2151
    %v2153 = vxor.u32 %v2152, 2147483648
    %v2154 = vmul.f32 %v2153, 1.442695
    %v2155 = vpow.pop %v2154
    %v2156 = vadd.f32 %v2155, 1.0
    %v2157 = vrcp.pop %v2156
    %v2158 = vmul.f32 1.0, %v2157
    %v2159 = vtanh.pop %v2152
    %v2160 = vmul.f32 %v2158, %v2053
    %2162 = vrot.lane.b32.xlu0 %v2159, 64
    %v2163 = vpop.permute.xlu0 %2162
    %v2165 = vmul.f32 %v2158, %v2163
    %2167 = vrot.lane.b32.xlu0 %v2165, 32
    %v2168 = vpop.permute.xlu0 %2167
    %v2170 = vadd.f32 %v2160, %v2168
    %v2171 = vtanh.pop %v2170
    %2173 = vrot.lane.b32.xlu0 %v2171, 64
    %v2174 = vpop.permute.xlu0 %2173
    %v2176 = vmul.f32 %v2158, %v2174
    %2178 = vrot.lane.b32.xlu0 %v2176, 32
    %v2179 = vpop.permute.xlu0 %2178
    %2181 = vst.msk [vmem:[#allocation13 + $0xe] sm:$0x3] %vm321, %v2179
    %2182 = vrot.lane.b32.xlu0 %v2176, 64
    %v2183 = vpop.permute.xlu0 %2182
    %2185 = vst.msk [vmem:[#allocation13 - $0x2] sm:$0xc] %vm326, %v2183
    // Predicated region
    $region50: #{tpu_custom_call.1} parent=1 // pred_check
      _
    $region51: #{tpu_custom_call.1} parent=1 // pred_check_branch
      %2187 = sbr.rel (0) target = $region53
    $region52: #{tpu_custom_call.1} parent=1 // pred_region
      %s2189 = ssub.s32 256, 256
      %2190 = vsyncadd [#allocation6], %s2189
      %s2191 = sshll.u32 [#allocation13], 4
      %s2192 = int_to_ptr.vmem [resolvable:$true] %s2191
      %2197 = dma.vmem_to_hbm [thread:$0]  %s2192, 256, %s7, [#allocation6], 128, 128, 8
    $region53: #{tpu_custom_call.1} parent=1 // pred_fallthru
      _
    // Predicated region
    $region54: #{tpu_custom_call.1} parent=1 // pred_check
      _
    $region55: #{tpu_custom_call.1} parent=1 // pred_check_branch
      %2199 = sbr.rel (0) target = $region57
    $region56: #{tpu_custom_call.1} parent=1 // pred_region
      %2200 = dma.done [#allocation6], 256
    $region57: #{tpu_custom_call.1} parent=1 // pred_fallthru
      _
    %2201 = vsyncpa [#allocation5], 1
    %2202 = vsyncpa [#allocation8], 1
    %2203 = vsyncpa [#allocation11], 1
    %2204 = vsyncpa [#allocation6], 1

</llo_original>
